<compile_context>
chip_gen: v6e
topology: v6e:2x2x1
jax: 0.10.0
libtpu: 0.0.40
codegen_flags: <defaults>
</compile_context>

<pallas_src>
import functools

import jax
import jax.numpy as jnp
import numpy as np
from jax.experimental import pallas as pl
from jax.experimental.pallas import tpu as pltpu


def _round_up(a, m):
    return (a + m - 1) // m * m


# ---------------------------------------------------------------------------
# Kernel
# ---------------------------------------------------------------------------
def global_attention_kernel(
    xq_ref, xkv_ref, mask_ref,
    wq_ref, bq_ref, wk_ref, bk_ref, wv_ref, bv_ref,
    wo_ref, bo_ref, w1_ref, b1_ref, w2_ref, b2_ref,
    g1_ref, be1_ref, g2_ref, be2_ref,
    o_ref, *, num_heads, head_dim_p, d_orig, scale,
):
    f32, bf16 = jnp.float32, jnp.bfloat16

    xq = xq_ref[0]                       # (TQ, Dp) f32  — this query-row tile
    xkv = xkv_ref[0]                     # (Np, Dp) f32  — all (padded) nodes of batch b
    mask = mask_ref[0]                   # (1, Np)  f32  — 1 = valid key, 0 = padded/masked
    TQ, Dp = xq.shape
    Np = xkv.shape[0]
    hdp = head_dim_p

    # Lane-validity mask so LayerNorm statistics only see the original D features.
    lane = jax.lax.broadcasted_iota(jnp.int32, (1, Dp), 1)
    dmask = (lane < d_orig).astype(f32)
    inv_d = 1.0 / float(d_orig)

    def layer_norm(t, gamma, beta, eps=1e-5):
        mean = jnp.sum(t, axis=-1, keepdims=True) * inv_d      # padded lanes are 0
        c = (t - mean) * dmask
        var = jnp.sum(c * c, axis=-1, keepdims=True) * inv_d
        return c * jax.lax.rsqrt(var + eps) * gamma + beta     # padded gamma/beta = 0

    xq_b = xq.astype(bf16)
    xkv_b = xkv.astype(bf16)

    # QKV projections: bf16 on the MXU, f32 accumulation.  K/V use the full node
    # set; Q only this row tile.  The 1/sqrt(hd) scale is folded into q once.
    q = jnp.dot(xq_b, wq_ref[...], preferred_element_type=f32) + bq_ref[...]
    k = jnp.dot(xkv_b, wk_ref[...], preferred_element_type=f32) + bk_ref[...]
    v = jnp.dot(xkv_b, wv_ref[...], preferred_element_type=f32) + bv_ref[...]
    q_b = (q * scale).astype(bf16)       # (TQ, H*hdp)
    k_b = k.astype(bf16)                 # (Np, H*hdp)
    v_b = v.astype(bf16)

    # Key-padding bias, broadcast ONCE to the score shape (f32; added to f32 scores).
    key_bias = jnp.broadcast_to((mask - 1.0) * 1e30, (TQ, Np))

    # Per-head attention.  Each head sits in its own 128-aligned lane slot, so
    # slices are vreg-tile aligned; the output projection is accumulated inside
    # the loop so no lane-axis concatenate is needed.
    dn_qkT = (((1,), (1,)), ((), ()))    # q @ k^T (contract last dims)
    attn = jnp.zeros((TQ, Dp), f32)
    for h in range(num_heads):
        sl = slice(h * hdp, (h + 1) * hdp)
        s = jax.lax.dot_general(q_b[:, sl], k_b[:, sl], dn_qkT,
                                preferred_element_type=f32)      # (TQ, Np) f32
        s = s + key_bias
        m = jnp.max(s, axis=-1, keepdims=True)
        p = jnp.exp(s - m)
        denom = jnp.sum(p, axis=-1, keepdims=True)
        p = p * pl.reciprocal(denom, approx=True)                # EUP, off the VALU path
        ctx_h = jnp.dot(p.astype(bf16), v_b[:, sl],
                        preferred_element_type=f32)              # (TQ, hdp)
        attn = attn + jnp.dot(ctx_h.astype(bf16), wo_ref[sl, :],
                              preferred_element_type=f32)        # (TQ, Dp)
    attn = attn + bo_ref[...]

    # Residual + LayerNorm 1.
    y1 = layer_norm(xq + attn, g1_ref[...], be1_ref[...])

    # FFN: Linear(D, 4D) -> ReLU -> Linear(4D, D).  Dropout = inference no-op.
    hid = jnp.dot(y1.astype(bf16), w1_ref[...], preferred_element_type=f32) + b1_ref[...]
    hid = jnp.maximum(hid, 0.0)
    ff = jnp.dot(hid.astype(bf16), w2_ref[...], preferred_element_type=f32) + b2_ref[...]

    # Residual + LayerNorm 2.  Dp is a multiple of 128 -> lane-dense store.
    o_ref[0] = layer_norm(y1 + ff, g2_ref[...], be2_ref[...])


# ---------------------------------------------------------------------------
# Parameter padding: lane-dense (multiple-of-128) feature dims, 128-aligned heads
# ---------------------------------------------------------------------------
def _pad_params(params, D, num_heads, Dp, hdp, Fp):
    (wqkv, bqkv, wo, bo, w1, b1, w2, b2, g1, be1, g2, be2) = params
    hd = D // num_heads
    HD = num_heads * hdp
    F = 4 * D
    f32, bf16 = jnp.float32, jnp.bfloat16

    wq_p = jnp.zeros((Dp, HD), f32)
    wk_p = jnp.zeros((Dp, HD), f32)
    wv_p = jnp.zeros((Dp, HD), f32)
    bq_p = jnp.zeros((1, HD), f32)
    bk_p = jnp.zeros((1, HD), f32)
    bv_p = jnp.zeros((1, HD), f32)
    wo_p = jnp.zeros((HD, Dp), f32)

    wq, wk, wv = wqkv[:, :D], wqkv[:, D:2 * D], wqkv[:, 2 * D:]
    bq, bk, bv = bqkv[:, :D], bqkv[:, D:2 * D], bqkv[:, 2 * D:]
    for h in range(num_heads):
        src = slice(h * hd, (h + 1) * hd)
        dst = slice(h * hdp, h * hdp + hd)
        wq_p = wq_p.at[:D, dst].set(wq[:, src])
        wk_p = wk_p.at[:D, dst].set(wk[:, src])
        wv_p = wv_p.at[:D, dst].set(wv[:, src])
        bq_p = bq_p.at[:, dst].set(bq[:, src])
        bk_p = bk_p.at[:, dst].set(bk[:, src])
        bv_p = bv_p.at[:, dst].set(bv[:, src])
        wo_p = wo_p.at[dst, :D].set(wo[src, :])

    bo_p = jnp.zeros((1, Dp), f32).at[:, :D].set(bo)
    w1_p = jnp.zeros((Dp, Fp), f32).at[:D, :F].set(w1)
    b1_p = jnp.zeros((1, Fp), f32).at[:, :F].set(b1)
    w2_p = jnp.zeros((Fp, Dp), f32).at[:F, :D].set(w2)
    b2_p = jnp.zeros((1, Dp), f32).at[:, :D].set(b2)
    g1_p = jnp.zeros((1, Dp), f32).at[:, :D].set(g1)
    be1_p = jnp.zeros((1, Dp), f32).at[:, :D].set(be1)
    g2_p = jnp.zeros((1, Dp), f32).at[:, :D].set(g2)
    be2_p = jnp.zeros((1, Dp), f32).at[:, :D].set(be2)

    # Weights in bf16 (halves HBM->VMEM traffic, doubles MXU rate); biases/LN in f32.
    return (wq_p.astype(bf16), bq_p, wk_p.astype(bf16), bk_p,
            wv_p.astype(bf16), bv_p, wo_p.astype(bf16), bo_p,
            w1_p.astype(bf16), b1_p, w2_p.astype(bf16), b2_p,
            g1_p, be1_p, g2_p, be2_p)


# ---------------------------------------------------------------------------
# Wrapper
# ---------------------------------------------------------------------------
def global_attention(x, params, mask=None, *, num_heads=4, row_tile=128,
                     vmem_limit_bytes=None):
    """x: (B, N, D) float32; mask: optional (B, N) bool/int (1 = valid node)."""
    B, N, D = x.shape
    assert D % num_heads == 0, "hidden_dim must be divisible by num_heads"
    hd = D // num_heads
    Dp = _round_up(D, 128)
    hdp = _round_up(hd, 128)
    Fp = _round_up(4 * D, 128)

    tq = row_tile if N >= row_tile else _round_up(N, 8)   # 128/256 at scale, >=8 always
    Np = _round_up(N, tq)
    n_qt = Np // tq

    x_pad = jnp.zeros((B, Np, Dp), jnp.float32).at[:, :N, :D].set(x)
    if mask is None:
        mask_valid = jnp.ones((B, N), jnp.float32)
    else:
        mask_valid = mask.astype(jnp.float32)
    mask_pad = jnp.zeros((B, 1, Np), jnp.float32).at[:, 0, :N].set(mask_valid)

    padded = _pad_params(params, D, num_heads, Dp, hdp, Fp)

    kernel = functools.partial(
        global_attention_kernel,
        num_heads=num_heads, head_dim_p=hdp, d_orig=D,
        scale=1.0 / float(np.sqrt(hd)))

    def _full2d(a):  # resident weight / bias / LN-param block (constant index map)
        return pl.BlockSpec(a.shape, lambda b, qi: (0, 0))

    out = pl.pallas_call(
        kernel,
        out_shape=jax.ShapeDtypeStruct((B, Np, Dp), jnp.float32),
        grid=(B, n_qt),
        in_specs=[
            pl.BlockSpec((1, tq, Dp), lambda b, qi: (b, qi, 0)),   # x: query-row tile
            pl.BlockSpec((1, Np, Dp), lambda b, qi: (b, 0, 0)),    # x: all keys of batch b
            pl.BlockSpec((1, 1, Np), lambda b, qi: (b, 0, 0)),     # key-padding mask
        ] + [_full2d(a) for a in padded],
        out_specs=pl.BlockSpec((1, tq, Dp), lambda b, qi: (b, qi, 0)),
        compiler_params=pltpu.CompilerParams(
            dimension_semantics=("parallel", "parallel"),
            vmem_limit_bytes=vmem_limit_bytes),
    )(x_pad, x_pad, mask_pad, *padded)

    return out[:, :N, :D]


# ---------------------------------------------------------------------------
# Pure-JAX reference (same math + same precision choices) for correctness check
# ---------------------------------------------------------------------------
def global_attention_ref(x, params, mask=None, *, num_heads=4,
                         matmul_dtype=jnp.bfloat16):
    (wqkv, bqkv, wo, bo, w1, b1, w2, b2, g1, be1, g2, be2) = params
    B, N, D = x.shape
    H = num_heads
    hd = D // H
    cd = matmul_dtype
    f32 = jnp.float32
    if mask is None:
        maskf = jnp.ones((B, N), f32)
    else:
        maskf = mask.astype(f32)
    key_bias = (maskf - 1.0) * 1e30

    def ln(t, g, b, eps=1e-5):
        m = t.mean(-1, keepdims=True)
        var = ((t - m) ** 2).mean(-1, keepdims=True)
        return (t - m) * jax.lax.rsqrt(var + eps) * g + b

    qkv = jnp.dot(x.astype(cd), wqkv.astype(cd), preferred_element_type=f32) + bqkv
    q, k, v = qkv[..., :D], qkv[..., D:2 * D], qkv[..., 2 * D:]
    q = q * (1.0 / np.sqrt(hd))
    qh = q.reshape(B, N, H, hd).transpose(0, 2, 1, 3).astype(cd)
    kh = k.reshape(B, N, H, hd).transpose(0, 2, 1, 3).astype(cd)
    vh = v.reshape(B, N, H, hd).transpose(0, 2, 1, 3).astype(cd)
    s = jnp.einsum("bhqd,bhkd->bhqk", qh, kh, preferred_element_type=f32)
    s = s + key_bias[:, None, None, :]
    p = jax.nn.softmax(s, axis=-1)
    ctx = jnp.einsum("bhqk,bhkd->bhqd", p.astype(cd), vh, preferred_element_type=f32)
    ctx = ctx.transpose(0, 2, 1, 3).reshape(B, N, D)
    attn = jnp.dot(ctx.astype(cd), wo.astype(cd), preferred_element_type=f32) + bo
    y1 = ln(x + attn, g1, be1)
    hid = jnp.maximum(
        jnp.dot(y1.astype(cd), w1.astype(cd), preferred_element_type=f32) + b1, 0.0)
    ff = jnp.dot(hid.astype(cd), w2.astype(cd), preferred_element_type=f32) + b2
    return ln(y1 + ff, g2, be2)


# ---------------------------------------------------------------------------
# Deterministic parameters + demo
# ---------------------------------------------------------------------------
def make_params(key, hidden_dim):
    D = hidden_dim
    ks = jax.random.split(key, 8)
    s = 0.05
    wqkv = s * jax.random.normal(ks[0], (D, 3 * D), jnp.float32)
    bqkv = s * jax.random.normal(ks[1], (1, 3 * D), jnp.float32)
    wo = s * jax.random.normal(ks[2], (D, D), jnp.float32)
    bo = s * jax.random.normal(ks[3], (1, D), jnp.float32)
    w1 = s * jax.random.normal(ks[4], (D, 4 * D), jnp.float32)
    b1 = s * jax.random.normal(ks[5], (1, 4 * D), jnp.float32)
    w2 = s * jax.random.normal(ks[6], (4 * D, D), jnp.float32)
    b2 = s * jax.random.normal(ks[7], (1, D), jnp.float32)
    g1 = jnp.ones((1, D), jnp.float32)
    be1 = jnp.zeros((1, D), jnp.float32)
    g2 = jnp.ones((1, D), jnp.float32)
    be2 = jnp.zeros((1, D), jnp.float32)
    return (wqkv, bqkv, wo, bo, w1, b1, w2, b2, g1, be1, g2, be2)


if __name__ == "__main__":
    B, N, D, H = 2, 8, 32, 4   # batch, num_nodes, hidden_dim, num_heads
    key = jax.random.PRNGKey(0)
    kx, kp = jax.random.split(key, 2)

    x = jax.random.normal(kx, (B, N, D), jnp.float32)
    params = make_params(kp, D)
    # mask: 1 = valid node, 0 = padded node (last node of batch 1 is masked out)
    mask = jnp.ones((B, N), jnp.int32).at[1, N - 1].set(0)

    out = jax.block_until_ready(global_attention(x, params, mask, num_heads=H))

    ref = global_attention_ref(x, params, mask, num_heads=H)
    # bf16 matmuls + approx reciprocal -> compare with a tolerance matched to that precision.
    np.testing.assert_allclose(np.asarray(out), np.asarray(ref), rtol=1e-2, atol=1e-2)

    print("KERNEL_OK")
</pallas_src>

<mosaic_0001>
module attributes {stable_mosaic.version = 11 : i64} {
  func.func @global_attention_kernel(%arg0: i32, %arg1: i32, %arg2: memref<1x8x128xf32, #tpu.memory_space<vmem>>, %arg3: memref<1x8x128xf32, #tpu.memory_space<vmem>>, %arg4: memref<1x1x8xf32, #tpu.memory_space<vmem>>, %arg5: memref<128x512xbf16, #tpu.memory_space<vmem>>, %arg6: memref<1x512xf32, #tpu.memory_space<vmem>>, %arg7: memref<128x512xbf16, #tpu.memory_space<vmem>>, %arg8: memref<1x512xf32, #tpu.memory_space<vmem>>, %arg9: memref<128x512xbf16, #tpu.memory_space<vmem>>, %arg10: memref<1x512xf32, #tpu.memory_space<vmem>>, %arg11: memref<512x128xbf16, #tpu.memory_space<vmem>>, %arg12: memref<1x128xf32, #tpu.memory_space<vmem>>, %arg13: memref<128x128xbf16, #tpu.memory_space<vmem>>, %arg14: memref<1x128xf32, #tpu.memory_space<vmem>>, %arg15: memref<128x128xbf16, #tpu.memory_space<vmem>>, %arg16: memref<1x128xf32, #tpu.memory_space<vmem>>, %arg17: memref<1x128xf32, #tpu.memory_space<vmem>>, %arg18: memref<1x128xf32, #tpu.memory_space<vmem>>, %arg19: memref<1x128xf32, #tpu.memory_space<vmem>>, %arg20: memref<1x128xf32, #tpu.memory_space<vmem>>, %arg21: memref<1x8x128xf32, #tpu.memory_space<vmem>>) attributes {dimension_semantics = [#tpu.dimension_semantics<parallel>, #tpu.dimension_semantics<parallel>], iteration_bounds = array<i64: 2, 1>, scalar_prefetch = 0 : i64, scratch_operands = 0 : i64, tpu.core_type = #tpu.core_type<tc>, window_params = [{transform_indices = @transform_0, window_bounds = array<i64: 1, 8, 128>}, {transform_indices = @transform_1, window_bounds = array<i64: 1, 8, 128>}, {transform_indices = @transform_2, window_bounds = array<i64: 1, 1, 8>}, {pipeline_mode = #tpu.pipeline_mode<synchronous>, transform_indices = @transform_3, window_bounds = array<i64: 128, 512>}, {pipeline_mode = #tpu.pipeline_mode<synchronous>, transform_indices = @transform_4, window_bounds = array<i64: 1, 512>}, {pipeline_mode = #tpu.pipeline_mode<synchronous>, transform_indices = @transform_5, window_bounds = array<i64: 128, 512>}, {pipeline_mode = #tpu.pipeline_mode<synchronous>, transform_indices = @transform_6, window_bounds = array<i64: 1, 512>}, {pipeline_mode = #tpu.pipeline_mode<synchronous>, transform_indices = @transform_7, window_bounds = array<i64: 128, 512>}, {pipeline_mode = #tpu.pipeline_mode<synchronous>, transform_indices = @transform_8, window_bounds = array<i64: 1, 512>}, {pipeline_mode = #tpu.pipeline_mode<synchronous>, transform_indices = @transform_9, window_bounds = array<i64: 512, 128>}, {pipeline_mode = #tpu.pipeline_mode<synchronous>, transform_indices = @transform_10, window_bounds = array<i64: 1, 128>}, {pipeline_mode = #tpu.pipeline_mode<synchronous>, transform_indices = @transform_11, window_bounds = array<i64: 128, 128>}, {pipeline_mode = #tpu.pipeline_mode<synchronous>, transform_indices = @transform_12, window_bounds = array<i64: 1, 128>}, {pipeline_mode = #tpu.pipeline_mode<synchronous>, transform_indices = @transform_13, window_bounds = array<i64: 128, 128>}, {pipeline_mode = #tpu.pipeline_mode<synchronous>, transform_indices = @transform_14, window_bounds = array<i64: 1, 128>}, {pipeline_mode = #tpu.pipeline_mode<synchronous>, transform_indices = @transform_15, window_bounds = array<i64: 1, 128>}, {pipeline_mode = #tpu.pipeline_mode<synchronous>, transform_indices = @transform_16, window_bounds = array<i64: 1, 128>}, {pipeline_mode = #tpu.pipeline_mode<synchronous>, transform_indices = @transform_17, window_bounds = array<i64: 1, 128>}, {pipeline_mode = #tpu.pipeline_mode<synchronous>, transform_indices = @transform_18, window_bounds = array<i64: 1, 128>}, {transform_indices = @transform_19, window_bounds = array<i64: 1, 8, 128>}]} {
    %c0 = arith.constant 0 : index
    %c0_0 = arith.constant 0 : index
    %c0_1 = arith.constant 0 : index
    %0 = vector.load %arg2[%c0, %c0_0, %c0_1] : memref<1x8x128xf32, #tpu.memory_space<vmem>>, vector<1x8x128xf32>
    %1 = vector.shape_cast %0 : vector<1x8x128xf32> to vector<8x128xf32>
    %c0_2 = arith.constant 0 : index
    %c0_3 = arith.constant 0 : index
    %c0_4 = arith.constant 0 : index
    %2 = vector.load %arg3[%c0_2, %c0_3, %c0_4] : memref<1x8x128xf32, #tpu.memory_space<vmem>>, vector<1x8x128xf32>
    %3 = vector.shape_cast %2 : vector<1x8x128xf32> to vector<8x128xf32>
    %c0_5 = arith.constant 0 : index
    %c0_6 = arith.constant 0 : index
    %c0_7 = arith.constant 0 : index
    %4 = vector.load %arg4[%c0_5, %c0_6, %c0_7] : memref<1x1x8xf32, #tpu.memory_space<vmem>>, vector<1x1x8xf32>
    %5 = vector.shape_cast %4 : vector<1x1x8xf32> to vector<1x8xf32>
    %6 = tpu.iota {dimensions = array<i32: 1>} : vector<1x128xi32>
    %c32_i32 = arith.constant 32 : i32
    %7 = vector.broadcast %c32_i32 : i32 to vector<1x128xi32>
    %8 = arith.cmpi slt, %6, %7 : vector<1x128xi32>
    %9 = arith.extui %8 : vector<1x128xi1> to vector<1x128xi32>
    %10 = arith.sitofp %9 : vector<1x128xi32> to vector<1x128xf32>
    %11 = arith.truncf %1 : vector<8x128xf32> to vector<8x128xbf16>
    %12 = arith.truncf %3 : vector<8x128xf32> to vector<8x128xbf16>
    %c0_8 = arith.constant 0 : index
    %c0_9 = arith.constant 0 : index
    %13 = vector.load %arg5[%c0_8, %c0_9] : memref<128x512xbf16, #tpu.memory_space<vmem>>, vector<128x512xbf16>
    %cst = arith.constant dense<0.000000e+00> : vector<8x512xf32>
    %14 = tpu.matmul %11, %13, %cst {dimension_numbers = #tpu.dot_dimension_numbers<[1], [0], [0], [1], [0, 0, 1, 1], [], []>} : vector<8x128xbf16>, vector<128x512xbf16>, vector<8x512xf32> -> vector<8x512xf32>
    %c0_10 = arith.constant 0 : index
    %c0_11 = arith.constant 0 : index
    %15 = vector.load %arg6[%c0_10, %c0_11] : memref<1x512xf32, #tpu.memory_space<vmem>>, vector<1x512xf32>
    %16 = vector.broadcast %15 : vector<1x512xf32> to vector<8x512xf32>
    %17 = arith.addf %14, %16 : vector<8x512xf32>
    %c0_12 = arith.constant 0 : index
    %c0_13 = arith.constant 0 : index
    %18 = vector.load %arg7[%c0_12, %c0_13] : memref<128x512xbf16, #tpu.memory_space<vmem>>, vector<128x512xbf16>
    %cst_14 = arith.constant dense<0.000000e+00> : vector<8x512xf32>
    %19 = tpu.matmul %12, %18, %cst_14 {dimension_numbers = #tpu.dot_dimension_numbers<[1], [0], [0], [1], [0, 0, 1, 1], [], []>} : vector<8x128xbf16>, vector<128x512xbf16>, vector<8x512xf32> -> vector<8x512xf32>
    %c0_15 = arith.constant 0 : index
    %c0_16 = arith.constant 0 : index
    %20 = vector.load %arg8[%c0_15, %c0_16] : memref<1x512xf32, #tpu.memory_space<vmem>>, vector<1x512xf32>
    %21 = vector.broadcast %20 : vector<1x512xf32> to vector<8x512xf32>
    %22 = arith.addf %19, %21 : vector<8x512xf32>
    %c0_17 = arith.constant 0 : index
    %c0_18 = arith.constant 0 : index
    %23 = vector.load %arg9[%c0_17, %c0_18] : memref<128x512xbf16, #tpu.memory_space<vmem>>, vector<128x512xbf16>
    %cst_19 = arith.constant dense<0.000000e+00> : vector<8x512xf32>
    %24 = tpu.matmul %12, %23, %cst_19 {dimension_numbers = #tpu.dot_dimension_numbers<[1], [0], [0], [1], [0, 0, 1, 1], [], []>} : vector<8x128xbf16>, vector<128x512xbf16>, vector<8x512xf32> -> vector<8x512xf32>
    %c0_20 = arith.constant 0 : index
    %c0_21 = arith.constant 0 : index
    %25 = vector.load %arg10[%c0_20, %c0_21] : memref<1x512xf32, #tpu.memory_space<vmem>>, vector<1x512xf32>
    %26 = vector.broadcast %25 : vector<1x512xf32> to vector<8x512xf32>
    %27 = arith.addf %24, %26 : vector<8x512xf32>
    %cst_22 = arith.constant 0.353553385 : f32
    %28 = vector.broadcast %cst_22 : f32 to vector<8x512xf32>
    %29 = arith.mulf %17, %28 : vector<8x512xf32>
    %30 = arith.truncf %29 : vector<8x512xf32> to vector<8x512xbf16>
    %31 = arith.truncf %22 : vector<8x512xf32> to vector<8x512xbf16>
    %32 = arith.truncf %27 : vector<8x512xf32> to vector<8x512xbf16>
    %cst_23 = arith.constant 1.000000e+00 : f32
    %33 = vector.broadcast %cst_23 : f32 to vector<1x8xf32>
    %34 = arith.subf %5, %33 : vector<1x8xf32>
    %cst_24 = arith.constant 1.000000e+30 : f32
    %35 = vector.broadcast %cst_24 : f32 to vector<1x8xf32>
    %36 = arith.mulf %34, %35 : vector<1x8xf32>
    %37 = vector.shape_cast %36 : vector<1x8xf32> to vector<1x8xf32>
    %38 = vector.broadcast %37 : vector<1x8xf32> to vector<8x8xf32>
    %cst_25 = arith.constant 0.000000e+00 : f32
    %39 = vector.broadcast %cst_25 : f32 to vector<8x128xf32>
    %40 = vector.extract_strided_slice %30 {offsets = [0, 0], sizes = [8, 128], strides = [1, 1]} : vector<8x512xbf16> to vector<8x128xbf16>
    %41 = vector.extract_strided_slice %31 {offsets = [0, 0], sizes = [8, 128], strides = [1, 1]} : vector<8x512xbf16> to vector<8x128xbf16>
    %cst_26 = arith.constant dense<0.000000e+00> : vector<8x8xf32>
    %42 = tpu.matmul %40, %41, %cst_26 {dimension_numbers = #tpu.dot_dimension_numbers<[1], [1], [0], [0], [0, 0, 1, 0], [], []>} : vector<8x128xbf16>, vector<8x128xbf16>, vector<8x8xf32> -> vector<8x8xf32>
    %43 = arith.addf %42, %38 : vector<8x8xf32>
    %cst_27 = arith.constant dense<0xFF800000> : vector<8xf32>
    %44 = vector.multi_reduction <maximumf>, %43, %cst_27 [1] : vector<8x8xf32> to vector<8xf32>
    %45 = vector.shape_cast %44 : vector<8xf32> to vector<8x1xf32>
    %46 = vector.broadcast %45 : vector<8x1xf32> to vector<8x8xf32>
    %47 = arith.subf %43, %46 : vector<8x8xf32>
    %48 = math.exp %47 : vector<8x8xf32>
    %cst_28 = arith.constant dense<0.000000e+00> : vector<8xf32>
    %49 = vector.multi_reduction <add>, %48, %cst_28 [1] : vector<8x8xf32> to vector<8xf32>
    %50 = vector.shape_cast %49 : vector<8xf32> to vector<8x1xf32>
    %51 = tpu.reciprocal %50 {approx = true} : vector<8x1xf32> -> vector<8x1xf32>
    %52 = vector.broadcast %51 : vector<8x1xf32> to vector<8x8xf32>
    %53 = arith.mulf %48, %52 : vector<8x8xf32>
    %54 = arith.truncf %53 : vector<8x8xf32> to vector<8x8xbf16>
    %55 = vector.extract_strided_slice %32 {offsets = [0, 0], sizes = [8, 128], strides = [1, 1]} : vector<8x512xbf16> to vector<8x128xbf16>
    %cst_29 = arith.constant dense<0.000000e+00> : vector<8x128xf32>
    %56 = tpu.matmul %54, %55, %cst_29 {dimension_numbers = #tpu.dot_dimension_numbers<[1], [0], [0], [1], [0, 0, 1, 1], [], []>} : vector<8x8xbf16>, vector<8x128xbf16>, vector<8x128xf32> -> vector<8x128xf32>
    %57 = arith.truncf %56 : vector<8x128xf32> to vector<8x128xbf16>
    %c0_30 = arith.constant 0 : index
    %c0_31 = arith.constant 0 : index
    %58 = vector.load %arg11[%c0_30, %c0_31] : memref<512x128xbf16, #tpu.memory_space<vmem>>, vector<128x128xbf16>
    %cst_32 = arith.constant dense<0.000000e+00> : vector<8x128xf32>
    %59 = tpu.matmul %57, %58, %cst_32 {dimension_numbers = #tpu.dot_dimension_numbers<[1], [0], [0], [1], [0, 0, 1, 1], [], []>} : vector<8x128xbf16>, vector<128x128xbf16>, vector<8x128xf32> -> vector<8x128xf32>
    %60 = arith.addf %39, %59 : vector<8x128xf32>
    %61 = vector.extract_strided_slice %30 {offsets = [0, 128], sizes = [8, 128], strides = [1, 1]} : vector<8x512xbf16> to vector<8x128xbf16>
    %62 = vector.extract_strided_slice %31 {offsets = [0, 128], sizes = [8, 128], strides = [1, 1]} : vector<8x512xbf16> to vector<8x128xbf16>
    %cst_33 = arith.constant dense<0.000000e+00> : vector<8x8xf32>
    %63 = tpu.matmul %61, %62, %cst_33 {dimension_numbers = #tpu.dot_dimension_numbers<[1], [1], [0], [0], [0, 0, 1, 0], [], []>} : vector<8x128xbf16>, vector<8x128xbf16>, vector<8x8xf32> -> vector<8x8xf32>
    %64 = arith.addf %63, %38 : vector<8x8xf32>
    %cst_34 = arith.constant dense<0xFF800000> : vector<8xf32>
    %65 = vector.multi_reduction <maximumf>, %64, %cst_34 [1] : vector<8x8xf32> to vector<8xf32>
    %66 = vector.shape_cast %65 : vector<8xf32> to vector<8x1xf32>
    %67 = vector.broadcast %66 : vector<8x1xf32> to vector<8x8xf32>
    %68 = arith.subf %64, %67 : vector<8x8xf32>
    %69 = math.exp %68 : vector<8x8xf32>
    %cst_35 = arith.constant dense<0.000000e+00> : vector<8xf32>
    %70 = vector.multi_reduction <add>, %69, %cst_35 [1] : vector<8x8xf32> to vector<8xf32>
    %71 = vector.shape_cast %70 : vector<8xf32> to vector<8x1xf32>
    %72 = tpu.reciprocal %71 {approx = true} : vector<8x1xf32> -> vector<8x1xf32>
    %73 = vector.broadcast %72 : vector<8x1xf32> to vector<8x8xf32>
    %74 = arith.mulf %69, %73 : vector<8x8xf32>
    %75 = arith.truncf %74 : vector<8x8xf32> to vector<8x8xbf16>
    %76 = vector.extract_strided_slice %32 {offsets = [0, 128], sizes = [8, 128], strides = [1, 1]} : vector<8x512xbf16> to vector<8x128xbf16>
    %cst_36 = arith.constant dense<0.000000e+00> : vector<8x128xf32>
    %77 = tpu.matmul %75, %76, %cst_36 {dimension_numbers = #tpu.dot_dimension_numbers<[1], [0], [0], [1], [0, 0, 1, 1], [], []>} : vector<8x8xbf16>, vector<8x128xbf16>, vector<8x128xf32> -> vector<8x128xf32>
    %78 = arith.truncf %77 : vector<8x128xf32> to vector<8x128xbf16>
    %c128 = arith.constant 128 : index
    %c0_37 = arith.constant 0 : index
    %79 = vector.load %arg11[%c128, %c0_37] : memref<512x128xbf16, #tpu.memory_space<vmem>>, vector<128x128xbf16>
    %cst_38 = arith.constant dense<0.000000e+00> : vector<8x128xf32>
    %80 = tpu.matmul %78, %79, %cst_38 {dimension_numbers = #tpu.dot_dimension_numbers<[1], [0], [0], [1], [0, 0, 1, 1], [], []>} : vector<8x128xbf16>, vector<128x128xbf16>, vector<8x128xf32> -> vector<8x128xf32>
    %81 = arith.addf %60, %80 : vector<8x128xf32>
    %82 = vector.extract_strided_slice %30 {offsets = [0, 256], sizes = [8, 128], strides = [1, 1]} : vector<8x512xbf16> to vector<8x128xbf16>
    %83 = vector.extract_strided_slice %31 {offsets = [0, 256], sizes = [8, 128], strides = [1, 1]} : vector<8x512xbf16> to vector<8x128xbf16>
    %cst_39 = arith.constant dense<0.000000e+00> : vector<8x8xf32>
    %84 = tpu.matmul %82, %83, %cst_39 {dimension_numbers = #tpu.dot_dimension_numbers<[1], [1], [0], [0], [0, 0, 1, 0], [], []>} : vector<8x128xbf16>, vector<8x128xbf16>, vector<8x8xf32> -> vector<8x8xf32>
    %85 = arith.addf %84, %38 : vector<8x8xf32>
    %cst_40 = arith.constant dense<0xFF800000> : vector<8xf32>
    %86 = vector.multi_reduction <maximumf>, %85, %cst_40 [1] : vector<8x8xf32> to vector<8xf32>
    %87 = vector.shape_cast %86 : vector<8xf32> to vector<8x1xf32>
    %88 = vector.broadcast %87 : vector<8x1xf32> to vector<8x8xf32>
    %89 = arith.subf %85, %88 : vector<8x8xf32>
    %90 = math.exp %89 : vector<8x8xf32>
    %cst_41 = arith.constant dense<0.000000e+00> : vector<8xf32>
    %91 = vector.multi_reduction <add>, %90, %cst_41 [1] : vector<8x8xf32> to vector<8xf32>
    %92 = vector.shape_cast %91 : vector<8xf32> to vector<8x1xf32>
    %93 = tpu.reciprocal %92 {approx = true} : vector<8x1xf32> -> vector<8x1xf32>
    %94 = vector.broadcast %93 : vector<8x1xf32> to vector<8x8xf32>
    %95 = arith.mulf %90, %94 : vector<8x8xf32>
    %96 = arith.truncf %95 : vector<8x8xf32> to vector<8x8xbf16>
    %97 = vector.extract_strided_slice %32 {offsets = [0, 256], sizes = [8, 128], strides = [1, 1]} : vector<8x512xbf16> to vector<8x128xbf16>
    %cst_42 = arith.constant dense<0.000000e+00> : vector<8x128xf32>
    %98 = tpu.matmul %96, %97, %cst_42 {dimension_numbers = #tpu.dot_dimension_numbers<[1], [0], [0], [1], [0, 0, 1, 1], [], []>} : vector<8x8xbf16>, vector<8x128xbf16>, vector<8x128xf32> -> vector<8x128xf32>
    %99 = arith.truncf %98 : vector<8x128xf32> to vector<8x128xbf16>
    %c256 = arith.constant 256 : index
    %c0_43 = arith.constant 0 : index
    %100 = vector.load %arg11[%c256, %c0_43] : memref<512x128xbf16, #tpu.memory_space<vmem>>, vector<128x128xbf16>
    %cst_44 = arith.constant dense<0.000000e+00> : vector<8x128xf32>
    %101 = tpu.matmul %99, %100, %cst_44 {dimension_numbers = #tpu.dot_dimension_numbers<[1], [0], [0], [1], [0, 0, 1, 1], [], []>} : vector<8x128xbf16>, vector<128x128xbf16>, vector<8x128xf32> -> vector<8x128xf32>
    %102 = arith.addf %81, %101 : vector<8x128xf32>
    %103 = vector.extract_strided_slice %30 {offsets = [0, 384], sizes = [8, 128], strides = [1, 1]} : vector<8x512xbf16> to vector<8x128xbf16>
    %104 = vector.extract_strided_slice %31 {offsets = [0, 384], sizes = [8, 128], strides = [1, 1]} : vector<8x512xbf16> to vector<8x128xbf16>
    %cst_45 = arith.constant dense<0.000000e+00> : vector<8x8xf32>
    %105 = tpu.matmul %103, %104, %cst_45 {dimension_numbers = #tpu.dot_dimension_numbers<[1], [1], [0], [0], [0, 0, 1, 0], [], []>} : vector<8x128xbf16>, vector<8x128xbf16>, vector<8x8xf32> -> vector<8x8xf32>
    %106 = arith.addf %105, %38 : vector<8x8xf32>
    %cst_46 = arith.constant dense<0xFF800000> : vector<8xf32>
    %107 = vector.multi_reduction <maximumf>, %106, %cst_46 [1] : vector<8x8xf32> to vector<8xf32>
    %108 = vector.shape_cast %107 : vector<8xf32> to vector<8x1xf32>
    %109 = vector.broadcast %108 : vector<8x1xf32> to vector<8x8xf32>
    %110 = arith.subf %106, %109 : vector<8x8xf32>
    %111 = math.exp %110 : vector<8x8xf32>
    %cst_47 = arith.constant dense<0.000000e+00> : vector<8xf32>
    %112 = vector.multi_reduction <add>, %111, %cst_47 [1] : vector<8x8xf32> to vector<8xf32>
    %113 = vector.shape_cast %112 : vector<8xf32> to vector<8x1xf32>
    %114 = tpu.reciprocal %113 {approx = true} : vector<8x1xf32> -> vector<8x1xf32>
    %115 = vector.broadcast %114 : vector<8x1xf32> to vector<8x8xf32>
    %116 = arith.mulf %111, %115 : vector<8x8xf32>
    %117 = arith.truncf %116 : vector<8x8xf32> to vector<8x8xbf16>
    %118 = vector.extract_strided_slice %32 {offsets = [0, 384], sizes = [8, 128], strides = [1, 1]} : vector<8x512xbf16> to vector<8x128xbf16>
    %cst_48 = arith.constant dense<0.000000e+00> : vector<8x128xf32>
    %119 = tpu.matmul %117, %118, %cst_48 {dimension_numbers = #tpu.dot_dimension_numbers<[1], [0], [0], [1], [0, 0, 1, 1], [], []>} : vector<8x8xbf16>, vector<8x128xbf16>, vector<8x128xf32> -> vector<8x128xf32>
    %120 = arith.truncf %119 : vector<8x128xf32> to vector<8x128xbf16>
    %c384 = arith.constant 384 : index
    %c0_49 = arith.constant 0 : index
    %121 = vector.load %arg11[%c384, %c0_49] : memref<512x128xbf16, #tpu.memory_space<vmem>>, vector<128x128xbf16>
    %cst_50 = arith.constant dense<0.000000e+00> : vector<8x128xf32>
    %122 = tpu.matmul %120, %121, %cst_50 {dimension_numbers = #tpu.dot_dimension_numbers<[1], [0], [0], [1], [0, 0, 1, 1], [], []>} : vector<8x128xbf16>, vector<128x128xbf16>, vector<8x128xf32> -> vector<8x128xf32>
    %123 = arith.addf %102, %122 : vector<8x128xf32>
    %c0_51 = arith.constant 0 : index
    %c0_52 = arith.constant 0 : index
    %124 = vector.load %arg12[%c0_51, %c0_52] : memref<1x128xf32, #tpu.memory_space<vmem>>, vector<1x128xf32>
    %125 = vector.broadcast %124 : vector<1x128xf32> to vector<8x128xf32>
    %126 = arith.addf %123, %125 : vector<8x128xf32>
    %127 = arith.addf %1, %126 : vector<8x128xf32>
    %c0_53 = arith.constant 0 : index
    %c0_54 = arith.constant 0 : index
    %128 = vector.load %arg17[%c0_53, %c0_54] : memref<1x128xf32, #tpu.memory_space<vmem>>, vector<1x128xf32>
    %c0_55 = arith.constant 0 : index
    %c0_56 = arith.constant 0 : index
    %129 = vector.load %arg18[%c0_55, %c0_56] : memref<1x128xf32, #tpu.memory_space<vmem>>, vector<1x128xf32>
    %cst_57 = arith.constant dense<0.000000e+00> : vector<8xf32>
    %130 = vector.multi_reduction <add>, %127, %cst_57 [1] : vector<8x128xf32> to vector<8xf32>
    %131 = vector.shape_cast %130 : vector<8xf32> to vector<8x1xf32>
    %cst_58 = arith.constant 3.125000e-02 : f32
    %132 = vector.broadcast %cst_58 : f32 to vector<8x1xf32>
    %133 = arith.mulf %131, %132 : vector<8x1xf32>
    %134 = vector.broadcast %133 : vector<8x1xf32> to vector<8x128xf32>
    %135 = arith.subf %127, %134 : vector<8x128xf32>
    %136 = vector.broadcast %10 : vector<1x128xf32> to vector<8x128xf32>
    %137 = arith.mulf %135, %136 : vector<8x128xf32>
    %138 = arith.mulf %137, %137 : vector<8x128xf32>
    %cst_59 = arith.constant dense<0.000000e+00> : vector<8xf32>
    %139 = vector.multi_reduction <add>, %138, %cst_59 [1] : vector<8x128xf32> to vector<8xf32>
    %140 = vector.shape_cast %139 : vector<8xf32> to vector<8x1xf32>
    %cst_60 = arith.constant 3.125000e-02 : f32
    %141 = vector.broadcast %cst_60 : f32 to vector<8x1xf32>
    %142 = arith.mulf %140, %141 : vector<8x1xf32>
    %cst_61 = arith.constant 9.99999974E-6 : f32
    %143 = vector.broadcast %cst_61 : f32 to vector<8x1xf32>
    %144 = arith.addf %142, %143 : vector<8x1xf32>
    %145 = math.rsqrt %144 : vector<8x1xf32>
    %146 = vector.broadcast %145 : vector<8x1xf32> to vector<8x128xf32>
    %147 = arith.mulf %137, %146 : vector<8x128xf32>
    %148 = vector.broadcast %128 : vector<1x128xf32> to vector<8x128xf32>
    %149 = arith.mulf %147, %148 : vector<8x128xf32>
    %150 = vector.broadcast %129 : vector<1x128xf32> to vector<8x128xf32>
    %151 = arith.addf %149, %150 : vector<8x128xf32>
    %152 = arith.truncf %151 : vector<8x128xf32> to vector<8x128xbf16>
    %c0_62 = arith.constant 0 : index
    %c0_63 = arith.constant 0 : index
    %153 = vector.load %arg13[%c0_62, %c0_63] : memref<128x128xbf16, #tpu.memory_space<vmem>>, vector<128x128xbf16>
    %cst_64 = arith.constant dense<0.000000e+00> : vector<8x128xf32>
    %154 = tpu.matmul %152, %153, %cst_64 {dimension_numbers = #tpu.dot_dimension_numbers<[1], [0], [0], [1], [0, 0, 1, 1], [], []>} : vector<8x128xbf16>, vector<128x128xbf16>, vector<8x128xf32> -> vector<8x128xf32>
    %c0_65 = arith.constant 0 : index
    %c0_66 = arith.constant 0 : index
    %155 = vector.load %arg14[%c0_65, %c0_66] : memref<1x128xf32, #tpu.memory_space<vmem>>, vector<1x128xf32>
    %156 = vector.broadcast %155 : vector<1x128xf32> to vector<8x128xf32>
    %157 = arith.addf %154, %156 : vector<8x128xf32>
    %cst_67 = arith.constant 0.000000e+00 : f32
    %158 = vector.broadcast %cst_67 : f32 to vector<8x128xf32>
    %159 = arith.maximumf %157, %158 : vector<8x128xf32>
    %160 = arith.truncf %159 : vector<8x128xf32> to vector<8x128xbf16>
    %c0_68 = arith.constant 0 : index
    %c0_69 = arith.constant 0 : index
    %161 = vector.load %arg15[%c0_68, %c0_69] : memref<128x128xbf16, #tpu.memory_space<vmem>>, vector<128x128xbf16>
    %cst_70 = arith.constant dense<0.000000e+00> : vector<8x128xf32>
    %162 = tpu.matmul %160, %161, %cst_70 {dimension_numbers = #tpu.dot_dimension_numbers<[1], [0], [0], [1], [0, 0, 1, 1], [], []>} : vector<8x128xbf16>, vector<128x128xbf16>, vector<8x128xf32> -> vector<8x128xf32>
    %c0_71 = arith.constant 0 : index
    %c0_72 = arith.constant 0 : index
    %163 = vector.load %arg16[%c0_71, %c0_72] : memref<1x128xf32, #tpu.memory_space<vmem>>, vector<1x128xf32>
    %164 = vector.broadcast %163 : vector<1x128xf32> to vector<8x128xf32>
    %165 = arith.addf %162, %164 : vector<8x128xf32>
    %166 = arith.addf %151, %165 : vector<8x128xf32>
    %c0_73 = arith.constant 0 : index
    %c0_74 = arith.constant 0 : index
    %167 = vector.load %arg19[%c0_73, %c0_74] : memref<1x128xf32, #tpu.memory_space<vmem>>, vector<1x128xf32>
    %c0_75 = arith.constant 0 : index
    %c0_76 = arith.constant 0 : index
    %168 = vector.load %arg20[%c0_75, %c0_76] : memref<1x128xf32, #tpu.memory_space<vmem>>, vector<1x128xf32>
    %cst_77 = arith.constant dense<0.000000e+00> : vector<8xf32>
    %169 = vector.multi_reduction <add>, %166, %cst_77 [1] : vector<8x128xf32> to vector<8xf32>
    %170 = vector.shape_cast %169 : vector<8xf32> to vector<8x1xf32>
    %cst_78 = arith.constant 3.125000e-02 : f32
    %171 = vector.broadcast %cst_78 : f32 to vector<8x1xf32>
    %172 = arith.mulf %170, %171 : vector<8x1xf32>
    %173 = vector.broadcast %172 : vector<8x1xf32> to vector<8x128xf32>
    %174 = arith.subf %166, %173 : vector<8x128xf32>
    %175 = vector.broadcast %10 : vector<1x128xf32> to vector<8x128xf32>
    %176 = arith.mulf %174, %175 : vector<8x128xf32>
    %177 = arith.mulf %176, %176 : vector<8x128xf32>
    %cst_79 = arith.constant dense<0.000000e+00> : vector<8xf32>
    %178 = vector.multi_reduction <add>, %177, %cst_79 [1] : vector<8x128xf32> to vector<8xf32>
    %179 = vector.shape_cast %178 : vector<8xf32> to vector<8x1xf32>
    %cst_80 = arith.constant 3.125000e-02 : f32
    %180 = vector.broadcast %cst_80 : f32 to vector<8x1xf32>
    %181 = arith.mulf %179, %180 : vector<8x1xf32>
    %cst_81 = arith.constant 9.99999974E-6 : f32
    %182 = vector.broadcast %cst_81 : f32 to vector<8x1xf32>
    %183 = arith.addf %181, %182 : vector<8x1xf32>
    %184 = math.rsqrt %183 : vector<8x1xf32>
    %185 = vector.broadcast %184 : vector<8x1xf32> to vector<8x128xf32>
    %186 = arith.mulf %176, %185 : vector<8x128xf32>
    %187 = vector.broadcast %167 : vector<1x128xf32> to vector<8x128xf32>
    %188 = arith.mulf %186, %187 : vector<8x128xf32>
    %189 = vector.broadcast %168 : vector<1x128xf32> to vector<8x128xf32>
    %190 = arith.addf %188, %189 : vector<8x128xf32>
    %c0_82 = arith.constant 0 : index
    %c0_83 = arith.constant 0 : index
    %c0_84 = arith.constant 0 : index
    %191 = vector.load %arg21[%c0_82, %c0_83, %c0_84] : memref<1x8x128xf32, #tpu.memory_space<vmem>>, vector<1x8x128xf32>
    %192 = vector.shape_cast %191 : vector<1x8x128xf32> to vector<8x128xf32>
    %193 = vector.shape_cast %190 : vector<8x128xf32> to vector<1x8x128xf32>
    tpu.vector_store %arg21[%c0_82, %c0_83, %c0_84], %193 {strides = array<i32>} : memref<1x8x128xf32, #tpu.memory_space<vmem>>, vector<1x8x128xf32>,
    return
  }
  func.func @transform_0(%arg0: i32, %arg1: i32) -> (i32, i32, i32) {
    %c0_i32 = arith.constant 0 : i32
    %c0_i32_0 = arith.constant 0 : i32
    return %arg0, %arg1, %c0_i32 : i32, i32, i32
  }
  func.func @transform_1(%arg0: i32, %arg1: i32) -> (i32, i32, i32) {
    %c0_i32 = arith.constant 0 : i32
    %c0_i32_0 = arith.constant 0 : i32
    %c0_i32_1 = arith.constant 0 : i32
    return %arg0, %c0_i32, %c0_i32_0 : i32, i32, i32
  }
  func.func @transform_2(%arg0: i32, %arg1: i32) -> (i32, i32, i32) {
    %c0_i32 = arith.constant 0 : i32
    %c0_i32_0 = arith.constant 0 : i32
    %c0_i32_1 = arith.constant 0 : i32
    return %arg0, %c0_i32, %c0_i32_0 : i32, i32, i32
  }
  func.func @transform_3(%arg0: i32, %arg1: i32) -> (i32, i32) {
    %c0_i32 = arith.constant 0 : i32
    %c0_i32_0 = arith.constant 0 : i32
    %c0_i32_1 = arith.constant 0 : i32
    return %c0_i32, %c0_i32_0 : i32, i32
  }
  func.func @transform_4(%arg0: i32, %arg1: i32) -> (i32, i32) {
    %c0_i32 = arith.constant 0 : i32
    %c0_i32_0 = arith.constant 0 : i32
    %c0_i32_1 = arith.constant 0 : i32
    return %c0_i32, %c0_i32_0 : i32, i32
  }
  func.func @transform_5(%arg0: i32, %arg1: i32) -> (i32, i32) {
    %c0_i32 = arith.constant 0 : i32
    %c0_i32_0 = arith.constant 0 : i32
    %c0_i32_1 = arith.constant 0 : i32
    return %c0_i32, %c0_i32_0 : i32, i32
  }
  func.func @transform_6(%arg0: i32, %arg1: i32) -> (i32, i32) {
    %c0_i32 = arith.constant 0 : i32
    %c0_i32_0 = arith.constant 0 : i32
    %c0_i32_1 = arith.constant 0 : i32
    return %c0_i32, %c0_i32_0 : i32, i32
  }
  func.func @transform_7(%arg0: i32, %arg1: i32) -> (i32, i32) {
    %c0_i32 = arith.constant 0 : i32
    %c0_i32_0 = arith.constant 0 : i32
    %c0_i32_1 = arith.constant 0 : i32
    return %c0_i32, %c0_i32_0 : i32, i32
  }
  func.func @transform_8(%arg0: i32, %arg1: i32) -> (i32, i32) {
    %c0_i32 = arith.constant 0 : i32
    %c0_i32_0 = arith.constant 0 : i32
    %c0_i32_1 = arith.constant 0 : i32
    return %c0_i32, %c0_i32_0 : i32, i32
  }
  func.func @transform_9(%arg0: i32, %arg1: i32) -> (i32, i32) {
    %c0_i32 = arith.constant 0 : i32
    %c0_i32_0 = arith.constant 0 : i32
    %c0_i32_1 = arith.constant 0 : i32
    return %c0_i32, %c0_i32_0 : i32, i32
  }
  func.func @transform_10(%arg0: i32, %arg1: i32) -> (i32, i32) {
    %c0_i32 = arith.constant 0 : i32
    %c0_i32_0 = arith.constant 0 : i32
    %c0_i32_1 = arith.constant 0 : i32
    return %c0_i32, %c0_i32_0 : i32, i32
  }
  func.func @transform_11(%arg0: i32, %arg1: i32) -> (i32, i32) {
    %c0_i32 = arith.constant 0 : i32
    %c0_i32_0 = arith.constant 0 : i32
    %c0_i32_1 = arith.constant 0 : i32
    return %c0_i32, %c0_i32_0 : i32, i32
  }
  func.func @transform_12(%arg0: i32, %arg1: i32) -> (i32, i32) {
    %c0_i32 = arith.constant 0 : i32
    %c0_i32_0 = arith.constant 0 : i32
    %c0_i32_1 = arith.constant 0 : i32
    return %c0_i32, %c0_i32_0 : i32, i32
  }
  func.func @transform_13(%arg0: i32, %arg1: i32) -> (i32, i32) {
    %c0_i32 = arith.constant 0 : i32
    %c0_i32_0 = arith.constant 0 : i32
    %c0_i32_1 = arith.constant 0 : i32
    return %c0_i32, %c0_i32_0 : i32, i32
  }
  func.func @transform_14(%arg0: i32, %arg1: i32) -> (i32, i32) {
    %c0_i32 = arith.constant 0 : i32
    %c0_i32_0 = arith.constant 0 : i32
    %c0_i32_1 = arith.constant 0 : i32
    return %c0_i32, %c0_i32_0 : i32, i32
  }
  func.func @transform_15(%arg0: i32, %arg1: i32) -> (i32, i32) {
    %c0_i32 = arith.constant 0 : i32
    %c0_i32_0 = arith.constant 0 : i32
    %c0_i32_1 = arith.constant 0 : i32
    return %c0_i32, %c0_i32_0 : i32, i32
  }
  func.func @transform_16(%arg0: i32, %arg1: i32) -> (i32, i32) {
    %c0_i32 = arith.constant 0 : i32
    %c0_i32_0 = arith.constant 0 : i32
    %c0_i32_1 = arith.constant 0 : i32
    return %c0_i32, %c0_i32_0 : i32, i32
  }
  func.func @transform_17(%arg0: i32, %arg1: i32) -> (i32, i32) {
    %c0_i32 = arith.constant 0 : i32
    %c0_i32_0 = arith.constant 0 : i32
    %c0_i32_1 = arith.constant 0 : i32
    return %c0_i32, %c0_i32_0 : i32, i32
  }
  func.func @transform_18(%arg0: i32, %arg1: i32) -> (i32, i32) {
    %c0_i32 = arith.constant 0 : i32
    %c0_i32_0 = arith.constant 0 : i32
    %c0_i32_1 = arith.constant 0 : i32
    return %c0_i32, %c0_i32_0 : i32, i32
  }
  func.func @transform_19(%arg0: i32, %arg1: i32) -> (i32, i32, i32) {
    %c0_i32 = arith.constant 0 : i32
    %c0_i32_0 = arith.constant 0 : i32
    return %arg0, %arg1, %c0_i32 : i32, i32, i32
  }
}

</mosaic_0001>

<llo_original>
// kernel: tpu_custom_call.1
$region0: #{tpu_custom_call.1}
  #allocation0 [shape = 'u32[]', space=smem, size = 0x4, offset = 0x4, fixed_abs, tag = 'smem constant byte address 0x4 - core index']
  #allocation1 [shape = 'u32[144,128]{1,0:T(1,128)}', space=vmem, size = 0x12000, scoped, tag = 'internal scratch']
  %s0 = inlined_call_operand.hbm [shape: f32[2,8,128], index: 0, kind: input, shape index: {}]
  %s1 = inlined_call_operand.hbm [shape: f32[2,8,128], index: 1, kind: input, shape index: {}]
  %s2 = inlined_call_operand.hbm [shape: f32[2,1,8], index: 2, kind: input, shape index: {}]
  %s3 = inlined_call_operand.hbm [shape: bf16[128,512], index: 3, kind: input, shape index: {}]
  %s4 = inlined_call_operand.vmem [shape: f32[1,512], index: 4, kind: input, shape index: {}]
  %s5 = inlined_call_operand.hbm [shape: bf16[128,512], index: 5, kind: input, shape index: {}]
  %s6 = inlined_call_operand.vmem [shape: f32[1,512], index: 6, kind: input, shape index: {}]
  %s7 = inlined_call_operand.hbm [shape: bf16[128,512], index: 7, kind: input, shape index: {}]
  %s8 = inlined_call_operand.vmem [shape: f32[1,512], index: 8, kind: input, shape index: {}]
  %s9 = inlined_call_operand.hbm [shape: bf16[512,128], index: 9, kind: input, shape index: {}]
  %s10 = inlined_call_operand.vmem [shape: f32[1,128], index: 10, kind: input, shape index: {}]
  %s11 = inlined_call_operand.hbm [shape: bf16[128,128], index: 11, kind: input, shape index: {}]
  %s12 = inlined_call_operand.vmem [shape: f32[1,128], index: 12, kind: input, shape index: {}]
  %s13 = inlined_call_operand.hbm [shape: bf16[128,128], index: 13, kind: input, shape index: {}]
  %s14 = inlined_call_operand.vmem [shape: f32[1,128], index: 14, kind: input, shape index: {}]
  %s15 = inlined_call_operand.vmem [shape: f32[1,128], index: 15, kind: input, shape index: {}]
  %s16 = inlined_call_operand.vmem [shape: f32[1,128], index: 16, kind: input, shape index: {}]
  %s17 = inlined_call_operand.vmem [shape: f32[1,128], index: 17, kind: input, shape index: {}]
  %s18 = inlined_call_operand.vmem [shape: f32[1,128], index: 18, kind: input, shape index: {}]
  %s19 = inlined_call_operand.hbm [shape: f32[2,8,128], index: 19, kind: output, shape index: {}]
  %s20 = sld [smem:[#allocation0]]
  $region145: #{tpu_custom_call.1} parent=0
    _
  %s22 = ssub.s32 1, %s20
  %s23 = scalar_select 0, %s22, %s20
  $region1: #{tpu_custom_call.1} parent=0
    #allocation2 [shape = 'u8[8192]{0}', space=vmem, size = 0x2000, scoped, tag = 'input window, operand 0']
    #allocation3 [shape = 's32[2]{0}', space=sflag, size = 0x8, scoped, tag = 'scoped memory for tpu_custom_call.1']
    #allocation4 [shape = 's32[2]{0}', space=sflag, size = 0x8, scoped, tag = 'scoped memory for tpu_custom_call.1']
    #allocation5 [shape = 'u8[8192]{0}', space=vmem, size = 0x2000, scoped, tag = 'input window, operand 1']
    #allocation6 [shape = 's32[2]{0}', space=sflag, size = 0x8, scoped, tag = 'scoped memory for tpu_custom_call.1']
    #allocation7 [shape = 'u8[1024]{0}', space=vmem, size = 0x400, scoped, tag = 'input window, operand 2']
    #allocation8 [shape = 'u8[131072]{0}', space=vmem, size = 0x20000, scoped, tag = 'input window, operand 3, single buffered']
    #allocation9 [shape = 's32[1]{0}', space=sflag, size = 0x4, scoped, tag = 'scoped memory for tpu_custom_call.1']
    #allocation10 [shape = 'u8[131072]{0}', space=vmem, size = 0x20000, scoped, tag = 'input window, operand 5, single buffered']
    #allocation11 [shape = 'u8[131072]{0}', space=vmem, size = 0x20000, scoped, tag = 'input window, operand 7, single buffered']
    #allocation12 [shape = 's32[1]{0}', space=sflag, size = 0x4, scoped, tag = 'scoped memory for tpu_custom_call.1']
    #allocation13 [shape = 'u8[131072]{0}', space=vmem, size = 0x20000, scoped, tag = 'input window, operand 9, single buffered']
    #allocation14 [shape = 'u8[32768]{0}', space=vmem, size = 0x8000, scoped, tag = 'input window, operand 11, single buffered']
    #allocation15 [shape = 's32[1]{0}', space=sflag, size = 0x4, scoped, tag = 'scoped memory for tpu_custom_call.1']
    #allocation16 [shape = 'u8[32768]{0}', space=vmem, size = 0x8000, scoped, tag = 'input window, operand 13, single buffered']
    #allocation17 [shape = 'u8[8192]{0}', space=vmem, size = 0x2000, scoped, tag = 'output window, operand 0']
    %24 = vsyncpa [#allocation3], 0
    %s25 = scalar_lea.sflag [#allocation3], 1
    %26 = vsyncpa %s25, 0
    %27 = vsyncpa [#allocation6], 0
    %s28 = scalar_lea.sflag [#allocation6], 1
    %29 = vsyncpa %s28, 0
    %30 = vsyncpa [#allocation9], 0
    %31 = vsyncpa [#allocation12], 0
    %32 = vsyncpa [#allocation15], 0
    %33 = vsyncpa [#allocation4], 0
    %s34 = scalar_lea.sflag [#allocation4], 1
    %35 = vsyncpa %s34, 0
    loop: start=0, step=1, limit=4
    $region2: #{tpu_custom_call.1} parent=1 // loop_pre_header
      _
    $region3: #{tpu_custom_call.1} parent=1 // loop_header
      %s37 = sphi 0, %s41
      %p38 = scmp.ge.s32.totalorder %s37, 4
      %s44 = sphi 0, %s56
      %s45 = sphi 0, %s52
      %s46 = sphi 0, %s44
      %s47 = sphi 0, %s45
      %s48 = sphi 0, %s46
      %s49 = sphi 0, %s47
      %s61 = sphi 0, %s63
      %s64 = sphi 0, %s61
      %s65 = sphi 0, %s64
      %s81 = sphi 0, %s65
      %s87 = sphi 0, %s89
      %s90 = sphi 0, %s87
      %s91 = sphi 0, %s90
      %s107 = sphi 0, %s91
      %s113 = sphi 0, %s115
      %s116 = sphi 0, %s113
      %s117 = sphi 0, %s116
      %s133 = sphi 0, %s117
      %s137 = sphi 0, %s137
      %s139 = sphi 0, %s137
      %s140 = sphi 0, %s139
      %s154 = sphi 0, %s140
      %s158 = sphi 0, %s158
      %s160 = sphi 0, %s158
      %s161 = sphi 0, %s160
      %s175 = sphi 0, %s161
      %s179 = sphi 0, %s179
      %s181 = sphi 0, %s179
      %s182 = sphi 0, %s181
      %s196 = sphi 0, %s182
      %s200 = sphi 0, %s200
      %s202 = sphi 0, %s200
      %s203 = sphi 0, %s202
      %s217 = sphi 0, %s203
      %s221 = sphi 0, %s221
      %s223 = sphi 0, %s221
      %s224 = sphi 0, %s223
      %s238 = sphi 0, %s224
      %s242 = sphi 0, %s242
      %s244 = sphi 0, %s242
      %s245 = sphi 0, %s244
      %s259 = sphi 0, %s245
      %s263 = sphi 0, %s263
      %s265 = sphi 0, %s263
      %s266 = sphi 0, %s265
      %s280 = sphi 0, %s266
      %s284 = sphi 0, %s284
      %s286 = sphi 0, %s284
      %s287 = sphi 0, %s286
      %s301 = sphi 0, %s287
      %s305 = sphi 0, %s305
      %s307 = sphi 0, %s305
      %s308 = sphi 0, %s307
      %s322 = sphi 0, %s308
      %s326 = sphi 0, %s326
      %s328 = sphi 0, %s326
      %s329 = sphi 0, %s328
      %s343 = sphi 0, %s329
      %s347 = sphi 0, %s347
      %s349 = sphi 0, %s347
      %s350 = sphi 0, %s349
      %s364 = sphi 0, %s350
      %s368 = sphi 0, %s368
      %s370 = sphi 0, %s368
      %s371 = sphi 0, %s370
      %s385 = sphi 0, %s371
      %s389 = sphi 0, %s389
      %s391 = sphi 0, %s389
      %s392 = sphi 0, %s391
      %s406 = sphi 0, %s392
      %s410 = sphi 0, %s410
      %s412 = sphi 0, %s410
      %s413 = sphi 0, %s412
      %s427 = sphi 0, %s413
      %s431 = sphi 0, %s431
      %s433 = sphi 0, %s431
      %s434 = sphi 0, %s433
      %s448 = sphi 0, %s434
      %s452 = sphi 0, %s452
      %s454 = sphi 0, %s452
      %s455 = sphi 0, %s454
      %s469 = sphi 0, %s455
      %s477 = sphi 0, %s479
      %s480 = sphi 0, %s477
      %s481 = sphi 0, %s480
      %s497 = sphi 0, %s481
    $region4: #{tpu_custom_call.1} parent=1 // loop_header_branch
      %40 = sbr.rel (%p38) target = $region8
    $region5: #{tpu_custom_call.1} parent=1 // loop_body
      %s42 = ssub.s32 %s37, 1
      %s43 = ssub.s32 %s37, 2
      %s50 = sadd.s32 1, %s45
      %p51 = scmp.ge.s32.totalorder %s50, 1
      %s52 = scalar_select %p51, 0, %s50
      %s53 = sadd.s32 1, %s44
      %s54 = scalar_select %p51, %s53, %s44
      %p55 = scmp.ge.s32.totalorder %s54, 2
      %s56 = scalar_select %p55, 0, %s54
      %s57 = ssub.s32 %s44, %s56
      %s58 = ssub.s32 %s45, %s52
      %s59 = sor.u32 %s57, %s58
      %p60 = scmp.eq.s32.totalorder %s59, 0
      %s62 = sadd.s32 %s61, 1
      %s63 = scalar_select %p60, %s61, %s62
      %p66 = pneg %p60
      %p67 = scmp.eq.s32.totalorder %s37, 1
      %p68 = por %p66, %p67
      %p69 = scmp.ne.s32.totalorder %s61, %s64
      %p70 = scmp.eq.s32.totalorder %s37, 0
      %p71 = por %p69, %p70
      %p72 = scmp.ne.s32.totalorder %s61, %s64
      %p73 = scmp.eq.s32.totalorder %s42, 1
      %p74 = por %p72, %p73
      %p75 = scmp.ne.s32.totalorder %s64, %s65
      %p76 = scmp.eq.s32.totalorder %s42, 0
      %p77 = por %p75, %p76
      %p78 = scmp.ne.s32.totalorder %s64, %s65
      %p79 = scmp.eq.s32.totalorder %s43, 1
      %p80 = por %p78, %p79
      %p82 = scmp.ne.s32.totalorder %s65, %s81
      %p83 = scmp.eq.s32.totalorder %s43, 0
      %p84 = por %p82, %p83
      %s85 = ssub.s32 %s44, %s56
      %p86 = scmp.eq.s32.totalorder %s85, 0
      %s88 = sadd.s32 %s87, 1
      %s89 = scalar_select %p86, %s87, %s88
      %p92 = pneg %p86
      %p93 = scmp.eq.s32.totalorder %s37, 1
      %p94 = por %p92, %p93
      %p95 = scmp.ne.s32.totalorder %s87, %s90
      %p96 = scmp.eq.s32.totalorder %s37, 0
      %p97 = por %p95, %p96
      %p98 = scmp.ne.s32.totalorder %s87, %s90
      %p99 = scmp.eq.s32.totalorder %s42, 1
      %p100 = por %p98, %p99
      %p101 = scmp.ne.s32.totalorder %s90, %s91
      %p102 = scmp.eq.s32.totalorder %s42, 0
      %p103 = por %p101, %p102
      %p104 = scmp.ne.s32.totalorder %s90, %s91
      %p105 = scmp.eq.s32.totalorder %s43, 1
      %p106 = por %p104, %p105
      %p108 = scmp.ne.s32.totalorder %s91, %s107
      %p109 = scmp.eq.s32.totalorder %s43, 0
      %p110 = por %p108, %p109
      %s111 = ssub.s32 %s44, %s56
      %p112 = scmp.eq.s32.totalorder %s111, 0
      %s114 = sadd.s32 %s113, 1
      %s115 = scalar_select %p112, %s113, %s114
      %p118 = pneg %p112
      %p119 = scmp.eq.s32.totalorder %s37, 1
      %p120 = por %p118, %p119
      %p121 = scmp.ne.s32.totalorder %s113, %s116
      %p122 = scmp.eq.s32.totalorder %s37, 0
      %p123 = por %p121, %p122
      %p124 = scmp.ne.s32.totalorder %s113, %s116
      %p125 = scmp.eq.s32.totalorder %s42, 1
      %p126 = por %p124, %p125
      %p127 = scmp.ne.s32.totalorder %s116, %s117
      %p128 = scmp.eq.s32.totalorder %s42, 0
      %p129 = por %p127, %p128
      %p130 = scmp.ne.s32.totalorder %s116, %s117
      %p131 = scmp.eq.s32.totalorder %s43, 1
      %p132 = por %p130, %p131
      %p134 = scmp.ne.s32.totalorder %s117, %s133
      %p135 = scmp.eq.s32.totalorder %s43, 0
      %p136 = por %p134, %p135
      %s138 = sadd.s32 %s137, 1
      %p141 = scmp.eq.s32.totalorder %s37, 1
      %p142 = scmp.ne.s32.totalorder %s137, %s139
      %p143 = scmp.eq.s32.totalorder %s37, 0
      %p144 = por %p142, %p143
      %p145 = scmp.ne.s32.totalorder %s137, %s139
      %p146 = scmp.eq.s32.totalorder %s42, 1
      %p147 = por %p145, %p146
      %p148 = scmp.ne.s32.totalorder %s139, %s140
      %p149 = scmp.eq.s32.totalorder %s42, 0
      %p150 = por %p148, %p149
      %p151 = scmp.ne.s32.totalorder %s139, %s140
      %p152 = scmp.eq.s32.totalorder %s43, 1
      %p153 = por %p151, %p152
      %p155 = scmp.ne.s32.totalorder %s140, %s154
      %p156 = scmp.eq.s32.totalorder %s43, 0
      %p157 = por %p155, %p156
      %s159 = sadd.s32 %s158, 1
      %p162 = scmp.eq.s32.totalorder %s37, 1
      %p163 = scmp.ne.s32.totalorder %s158, %s160
      %p164 = scmp.eq.s32.totalorder %s37, 0
      %p165 = por %p163, %p164
      %p166 = scmp.ne.s32.totalorder %s158, %s160
      %p167 = scmp.eq.s32.totalorder %s42, 1
      %p168 = por %p166, %p167
      %p169 = scmp.ne.s32.totalorder %s160, %s161
      %p170 = scmp.eq.s32.totalorder %s42, 0
      %p171 = por %p169, %p170
      %p172 = scmp.ne.s32.totalorder %s160, %s161
      %p173 = scmp.eq.s32.totalorder %s43, 1
      %p174 = por %p172, %p173
      %p176 = scmp.ne.s32.totalorder %s161, %s175
      %p177 = scmp.eq.s32.totalorder %s43, 0
      %p178 = por %p176, %p177
      %s180 = sadd.s32 %s179, 1
      %p183 = scmp.eq.s32.totalorder %s37, 1
      %p184 = scmp.ne.s32.totalorder %s179, %s181
      %p185 = scmp.eq.s32.totalorder %s37, 0
      %p186 = por %p184, %p185
      %p187 = scmp.ne.s32.totalorder %s179, %s181
      %p188 = scmp.eq.s32.totalorder %s42, 1
      %p189 = por %p187, %p188
      %p190 = scmp.ne.s32.totalorder %s181, %s182
      %p191 = scmp.eq.s32.totalorder %s42, 0
      %p192 = por %p190, %p191
      %p193 = scmp.ne.s32.totalorder %s181, %s182
      %p194 = scmp.eq.s32.totalorder %s43, 1
      %p195 = por %p193, %p194
      %p197 = scmp.ne.s32.totalorder %s182, %s196
      %p198 = scmp.eq.s32.totalorder %s43, 0
      %p199 = por %p197, %p198
      %s201 = sadd.s32 %s200, 1
      %p204 = scmp.eq.s32.totalorder %s37, 1
      %p205 = scmp.ne.s32.totalorder %s200, %s202
      %p206 = scmp.eq.s32.totalorder %s37, 0
      %p207 = por %p205, %p206
      %p208 = scmp.ne.s32.totalorder %s200, %s202
      %p209 = scmp.eq.s32.totalorder %s42, 1
      %p210 = por %p208, %p209
      %p211 = scmp.ne.s32.totalorder %s202, %s203
      %p212 = scmp.eq.s32.totalorder %s42, 0
      %p213 = por %p211, %p212
      %p214 = scmp.ne.s32.totalorder %s202, %s203
      %p215 = scmp.eq.s32.totalorder %s43, 1
      %p216 = por %p214, %p215
      %p218 = scmp.ne.s32.totalorder %s203, %s217
      %p219 = scmp.eq.s32.totalorder %s43, 0
      %p220 = por %p218, %p219
      %s222 = sadd.s32 %s221, 1
      %p225 = scmp.eq.s32.totalorder %s37, 1
      %p226 = scmp.ne.s32.totalorder %s221, %s223
      %p227 = scmp.eq.s32.totalorder %s37, 0
      %p228 = por %p226, %p227
      %p229 = scmp.ne.s32.totalorder %s221, %s223
      %p230 = scmp.eq.s32.totalorder %s42, 1
      %p231 = por %p229, %p230
      %p232 = scmp.ne.s32.totalorder %s223, %s224
      %p233 = scmp.eq.s32.totalorder %s42, 0
      %p234 = por %p232, %p233
      %p235 = scmp.ne.s32.totalorder %s223, %s224
      %p236 = scmp.eq.s32.totalorder %s43, 1
      %p237 = por %p235, %p236
      %p239 = scmp.ne.s32.totalorder %s224, %s238
      %p240 = scmp.eq.s32.totalorder %s43, 0
      %p241 = por %p239, %p240
      %s243 = sadd.s32 %s242, 1
      %p246 = scmp.eq.s32.totalorder %s37, 1
      %p247 = scmp.ne.s32.totalorder %s242, %s244
      %p248 = scmp.eq.s32.totalorder %s37, 0
      %p249 = por %p247, %p248
      %p250 = scmp.ne.s32.totalorder %s242, %s244
      %p251 = scmp.eq.s32.totalorder %s42, 1
      %p252 = por %p250, %p251
      %p253 = scmp.ne.s32.totalorder %s244, %s245
      %p254 = scmp.eq.s32.totalorder %s42, 0
      %p255 = por %p253, %p254
      %p256 = scmp.ne.s32.totalorder %s244, %s245
      %p257 = scmp.eq.s32.totalorder %s43, 1
      %p258 = por %p256, %p257
      %p260 = scmp.ne.s32.totalorder %s245, %s259
      %p261 = scmp.eq.s32.totalorder %s43, 0
      %p262 = por %p260, %p261
      %s264 = sadd.s32 %s263, 1
      %p267 = scmp.eq.s32.totalorder %s37, 1
      %p268 = scmp.ne.s32.totalorder %s263, %s265
      %p269 = scmp.eq.s32.totalorder %s37, 0
      %p270 = por %p268, %p269
      %p271 = scmp.ne.s32.totalorder %s263, %s265
      %p272 = scmp.eq.s32.totalorder %s42, 1
      %p273 = por %p271, %p272
      %p274 = scmp.ne.s32.totalorder %s265, %s266
      %p275 = scmp.eq.s32.totalorder %s42, 0
      %p276 = por %p274, %p275
      %p277 = scmp.ne.s32.totalorder %s265, %s266
      %p278 = scmp.eq.s32.totalorder %s43, 1
      %p279 = por %p277, %p278
      %p281 = scmp.ne.s32.totalorder %s266, %s280
      %p282 = scmp.eq.s32.totalorder %s43, 0
      %p283 = por %p281, %p282
      %s285 = sadd.s32 %s284, 1
      %p288 = scmp.eq.s32.totalorder %s37, 1
      %p289 = scmp.ne.s32.totalorder %s284, %s286
      %p290 = scmp.eq.s32.totalorder %s37, 0
      %p291 = por %p289, %p290
      %p292 = scmp.ne.s32.totalorder %s284, %s286
      %p293 = scmp.eq.s32.totalorder %s42, 1
      %p294 = por %p292, %p293
      %p295 = scmp.ne.s32.totalorder %s286, %s287
      %p296 = scmp.eq.s32.totalorder %s42, 0
      %p297 = por %p295, %p296
      %p298 = scmp.ne.s32.totalorder %s286, %s287
      %p299 = scmp.eq.s32.totalorder %s43, 1
      %p300 = por %p298, %p299
      %p302 = scmp.ne.s32.totalorder %s287, %s301
      %p303 = scmp.eq.s32.totalorder %s43, 0
      %p304 = por %p302, %p303
      %s306 = sadd.s32 %s305, 1
      %p309 = scmp.eq.s32.totalorder %s37, 1
      %p310 = scmp.ne.s32.totalorder %s305, %s307
      %p311 = scmp.eq.s32.totalorder %s37, 0
      %p312 = por %p310, %p311
      %p313 = scmp.ne.s32.totalorder %s305, %s307
      %p314 = scmp.eq.s32.totalorder %s42, 1
      %p315 = por %p313, %p314
      %p316 = scmp.ne.s32.totalorder %s307, %s308
      %p317 = scmp.eq.s32.totalorder %s42, 0
      %p318 = por %p316, %p317
      %p319 = scmp.ne.s32.totalorder %s307, %s308
      %p320 = scmp.eq.s32.totalorder %s43, 1
      %p321 = por %p319, %p320
      %p323 = scmp.ne.s32.totalorder %s308, %s322
      %p324 = scmp.eq.s32.totalorder %s43, 0
      %p325 = por %p323, %p324
      %s327 = sadd.s32 %s326, 1
      %p330 = scmp.eq.s32.totalorder %s37, 1
      %p331 = scmp.ne.s32.totalorder %s326, %s328
      %p332 = scmp.eq.s32.totalorder %s37, 0
      %p333 = por %p331, %p332
      %p334 = scmp.ne.s32.totalorder %s326, %s328
      %p335 = scmp.eq.s32.totalorder %s42, 1
      %p336 = por %p334, %p335
      %p337 = scmp.ne.s32.totalorder %s328, %s329
      %p338 = scmp.eq.s32.totalorder %s42, 0
      %p339 = por %p337, %p338
      %p340 = scmp.ne.s32.totalorder %s328, %s329
      %p341 = scmp.eq.s32.totalorder %s43, 1
      %p342 = por %p340, %p341
      %p344 = scmp.ne.s32.totalorder %s329, %s343
      %p345 = scmp.eq.s32.totalorder %s43, 0
      %p346 = por %p344, %p345
      %s348 = sadd.s32 %s347, 1
      %p351 = scmp.eq.s32.totalorder %s37, 1
      %p352 = scmp.ne.s32.totalorder %s347, %s349
      %p353 = scmp.eq.s32.totalorder %s37, 0
      %p354 = por %p352, %p353
      %p355 = scmp.ne.s32.totalorder %s347, %s349
      %p356 = scmp.eq.s32.totalorder %s42, 1
      %p357 = por %p355, %p356
      %p358 = scmp.ne.s32.totalorder %s349, %s350
      %p359 = scmp.eq.s32.totalorder %s42, 0
      %p360 = por %p358, %p359
      %p361 = scmp.ne.s32.totalorder %s349, %s350
      %p362 = scmp.eq.s32.totalorder %s43, 1
      %p363 = por %p361, %p362
      %p365 = scmp.ne.s32.totalorder %s350, %s364
      %p366 = scmp.eq.s32.totalorder %s43, 0
      %p367 = por %p365, %p366
      %s369 = sadd.s32 %s368, 1
      %p372 = scmp.eq.s32.totalorder %s37, 1
      %p373 = scmp.ne.s32.totalorder %s368, %s370
      %p374 = scmp.eq.s32.totalorder %s37, 0
      %p375 = por %p373, %p374
      %p376 = scmp.ne.s32.totalorder %s368, %s370
      %p377 = scmp.eq.s32.totalorder %s42, 1
      %p378 = por %p376, %p377
      %p379 = scmp.ne.s32.totalorder %s370, %s371
      %p380 = scmp.eq.s32.totalorder %s42, 0
      %p381 = por %p379, %p380
      %p382 = scmp.ne.s32.totalorder %s370, %s371
      %p383 = scmp.eq.s32.totalorder %s43, 1
      %p384 = por %p382, %p383
      %p386 = scmp.ne.s32.totalorder %s371, %s385
      %p387 = scmp.eq.s32.totalorder %s43, 0
      %p388 = por %p386, %p387
      %s390 = sadd.s32 %s389, 1
      %p393 = scmp.eq.s32.totalorder %s37, 1
      %p394 = scmp.ne.s32.totalorder %s389, %s391
      %p395 = scmp.eq.s32.totalorder %s37, 0
      %p396 = por %p394, %p395
      %p397 = scmp.ne.s32.totalorder %s389, %s391
      %p398 = scmp.eq.s32.totalorder %s42, 1
      %p399 = por %p397, %p398
      %p400 = scmp.ne.s32.totalorder %s391, %s392
      %p401 = scmp.eq.s32.totalorder %s42, 0
      %p402 = por %p400, %p401
      %p403 = scmp.ne.s32.totalorder %s391, %s392
      %p404 = scmp.eq.s32.totalorder %s43, 1
      %p405 = por %p403, %p404
      %p407 = scmp.ne.s32.totalorder %s392, %s406
      %p408 = scmp.eq.s32.totalorder %s43, 0
      %p409 = por %p407, %p408
      %s411 = sadd.s32 %s410, 1
      %p414 = scmp.eq.s32.totalorder %s37, 1
      %p415 = scmp.ne.s32.totalorder %s410, %s412
      %p416 = scmp.eq.s32.totalorder %s37, 0
      %p417 = por %p415, %p416
      %p418 = scmp.ne.s32.totalorder %s410, %s412
      %p419 = scmp.eq.s32.totalorder %s42, 1
      %p420 = por %p418, %p419
      %p421 = scmp.ne.s32.totalorder %s412, %s413
      %p422 = scmp.eq.s32.totalorder %s42, 0
      %p423 = por %p421, %p422
      %p424 = scmp.ne.s32.totalorder %s412, %s413
      %p425 = scmp.eq.s32.totalorder %s43, 1
      %p426 = por %p424, %p425
      %p428 = scmp.ne.s32.totalorder %s413, %s427
      %p429 = scmp.eq.s32.totalorder %s43, 0
      %p430 = por %p428, %p429
      %s432 = sadd.s32 %s431, 1
      %p435 = scmp.eq.s32.totalorder %s37, 1
      %p436 = scmp.ne.s32.totalorder %s431, %s433
      %p437 = scmp.eq.s32.totalorder %s37, 0
      %p438 = por %p436, %p437
      %p439 = scmp.ne.s32.totalorder %s431, %s433
      %p440 = scmp.eq.s32.totalorder %s42, 1
      %p441 = por %p439, %p440
      %p442 = scmp.ne.s32.totalorder %s433, %s434
      %p443 = scmp.eq.s32.totalorder %s42, 0
      %p444 = por %p442, %p443
      %p445 = scmp.ne.s32.totalorder %s433, %s434
      %p446 = scmp.eq.s32.totalorder %s43, 1
      %p447 = por %p445, %p446
      %p449 = scmp.ne.s32.totalorder %s434, %s448
      %p450 = scmp.eq.s32.totalorder %s43, 0
      %p451 = por %p449, %p450
      %s453 = sadd.s32 %s452, 1
      %p456 = scmp.eq.s32.totalorder %s37, 1
      %p457 = scmp.ne.s32.totalorder %s452, %s454
      %p458 = scmp.eq.s32.totalorder %s37, 0
      %p459 = por %p457, %p458
      %p460 = scmp.ne.s32.totalorder %s452, %s454
      %p461 = scmp.eq.s32.totalorder %s42, 1
      %p462 = por %p460, %p461
      %p463 = scmp.ne.s32.totalorder %s454, %s455
      %p464 = scmp.eq.s32.totalorder %s42, 0
      %p465 = por %p463, %p464
      %p466 = scmp.ne.s32.totalorder %s454, %s455
      %p467 = scmp.eq.s32.totalorder %s43, 1
      %p468 = por %p466, %p467
      %p470 = scmp.ne.s32.totalorder %s455, %s469
      %p471 = scmp.eq.s32.totalorder %s43, 0
      %p472 = por %p470, %p471
      %s473 = ssub.s32 %s44, %s56
      %s474 = ssub.s32 %s45, %s52
      %s475 = sor.u32 %s473, %s474
      %p476 = scmp.eq.s32.totalorder %s475, 0
      %s478 = sadd.s32 %s477, 1
      %s479 = scalar_select %p476, %s477, %s478
      %p482 = pneg %p476
      %p483 = scmp.eq.s32.totalorder %s37, 1
      %p484 = por %p482, %p483
      %p485 = scmp.ne.s32.totalorder %s477, %s480
      %p486 = scmp.eq.s32.totalorder %s37, 0
      %p487 = por %p485, %p486
      %p488 = scmp.ne.s32.totalorder %s477, %s480
      %p489 = scmp.eq.s32.totalorder %s42, 1
      %p490 = por %p488, %p489
      %p491 = scmp.ne.s32.totalorder %s480, %s481
      %p492 = scmp.eq.s32.totalorder %s42, 0
      %p493 = por %p491, %p492
      %p494 = scmp.ne.s32.totalorder %s480, %s481
      %p495 = scmp.eq.s32.totalorder %s43, 1
      %p496 = por %p494, %p495
      %p498 = scmp.ne.s32.totalorder %s481, %s497
      %p499 = scmp.eq.s32.totalorder %s43, 0
      %p500 = por %p498, %p499
      %p501 = scmp.le.s32.totalorder 1, %s37
      %p502 = scmp.lt.s32.totalorder %s37, 3
      %p503 = pnand %p501, %p502
      %p504 = pneg %p503
      // Predicated region
      $region9: #{tpu_custom_call.1} parent=5 // pred_check
        _
      $region10: #{tpu_custom_call.1} parent=5 // pred_check_branch
        %506 = sbr.rel (%p503) target = $region12
      $region11: #{tpu_custom_call.1} parent=5 // pred_region
        %s507 = ssub.s32 %s37, 1
        // Predicated region
        $region13: #{tpu_custom_call.1} parent=11 // pred_check
          %p508 = pneg %p150
        $region14: #{tpu_custom_call.1} parent=11 // pred_check_branch
          %510 = sbr.rel (%p508) target = $region16
        $region15: #{tpu_custom_call.1} parent=11 // pred_region
          %s512 = ssub.s32 4096, 4096
          %513 = vsyncadd [#allocation9], %s512
          %s514 = sshll.u32 [#allocation8], 4
          %s515 = int_to_ptr.vmem [resolvable:$true] %s514
          %520 = dma.hbm_to_vmem [thread:$0]  %s3, 4096, %s515, [#allocation9], 256, 256, 16
        $region16: #{tpu_custom_call.1} parent=11 // pred_fallthru
          _
        // Predicated region
        $region17: #{tpu_custom_call.1} parent=11 // pred_check
          %p521 = pneg %p171
        $region18: #{tpu_custom_call.1} parent=11 // pred_check_branch
          %523 = sbr.rel (%p521) target = $region20
        $region19: #{tpu_custom_call.1} parent=11 // pred_region
          _
        $region20: #{tpu_custom_call.1} parent=11 // pred_fallthru
          _
        // Predicated region
        $region21: #{tpu_custom_call.1} parent=11 // pred_check
          %p524 = pneg %p192
        $region22: #{tpu_custom_call.1} parent=11 // pred_check_branch
          %526 = sbr.rel (%p524) target = $region24
        $region23: #{tpu_custom_call.1} parent=11 // pred_region
          %s528 = ssub.s32 4096, 4096
          %529 = vsyncadd [#allocation9], %s528
          %s530 = sshll.u32 [#allocation10], 4
          %s531 = int_to_ptr.vmem [resolvable:$true] %s530
          %536 = dma.hbm_to_vmem [thread:$0]  %s5, 4096, %s531, [#allocation9], 256, 256, 16
        $region24: #{tpu_custom_call.1} parent=11 // pred_fallthru
          _
        // Predicated region
        $region25: #{tpu_custom_call.1} parent=11 // pred_check
          %p537 = pneg %p213
        $region26: #{tpu_custom_call.1} parent=11 // pred_check_branch
          %539 = sbr.rel (%p537) target = $region28
        $region27: #{tpu_custom_call.1} parent=11 // pred_region
          _
        $region28: #{tpu_custom_call.1} parent=11 // pred_fallthru
          _
        // Predicated region
        $region29: #{tpu_custom_call.1} parent=11 // pred_check
          %p540 = pneg %p234
        $region30: #{tpu_custom_call.1} parent=11 // pred_check_branch
          %542 = sbr.rel (%p540) target = $region32
        $region31: #{tpu_custom_call.1} parent=11 // pred_region
          %s544 = ssub.s32 4096, 4096
          %545 = vsyncadd [#allocation12], %s544
          %s546 = sshll.u32 [#allocation11], 4
          %s547 = int_to_ptr.vmem [resolvable:$true] %s546
          %552 = dma.hbm_to_vmem [thread:$0]  %s7, 4096, %s547, [#allocation12], 256, 256, 16
        $region32: #{tpu_custom_call.1} parent=11 // pred_fallthru
          _
        // Predicated region
        $region33: #{tpu_custom_call.1} parent=11 // pred_check
          %p553 = pneg %p255
        $region34: #{tpu_custom_call.1} parent=11 // pred_check_branch
          %555 = sbr.rel (%p553) target = $region36
        $region35: #{tpu_custom_call.1} parent=11 // pred_region
          _
        $region36: #{tpu_custom_call.1} parent=11 // pred_fallthru
          _
        // Predicated region
        $region37: #{tpu_custom_call.1} parent=11 // pred_check
          %p556 = pneg %p276
        $region38: #{tpu_custom_call.1} parent=11 // pred_check_branch
          %558 = sbr.rel (%p556) target = $region40
        $region39: #{tpu_custom_call.1} parent=11 // pred_region
          %s560 = ssub.s32 4096, 4096
          %561 = vsyncadd [#allocation12], %s560
          %s562 = sshll.u32 [#allocation13], 4
          %s563 = int_to_ptr.vmem [resolvable:$true] %s562
          %568 = dma.hbm_to_vmem [thread:$0]  %s9, 4096, %s563, [#allocation12], 64, 64, 4
        $region40: #{tpu_custom_call.1} parent=11 // pred_fallthru
          _
        // Predicated region
        $region41: #{tpu_custom_call.1} parent=11 // pred_check
          %p569 = pneg %p297
        $region42: #{tpu_custom_call.1} parent=11 // pred_check_branch
          %571 = sbr.rel (%p569) target = $region44
        $region43: #{tpu_custom_call.1} parent=11 // pred_region
          _
        $region44: #{tpu_custom_call.1} parent=11 // pred_fallthru
          _
        // Predicated region
        $region45: #{tpu_custom_call.1} parent=11 // pred_check
          %p572 = pneg %p318
        $region46: #{tpu_custom_call.1} parent=11 // pred_check_branch
          %574 = sbr.rel (%p572) target = $region48
        $region47: #{tpu_custom_call.1} parent=11 // pred_region
          %s576 = ssub.s32 1024, 1024
          %577 = vsyncadd [#allocation15], %s576
          %s578 = sshll.u32 [#allocation14], 4
          %s579 = int_to_ptr.vmem [resolvable:$true] %s578
          %584 = dma.hbm_to_vmem [thread:$0]  %s11, 1024, %s579, [#allocation15], 64, 64, 4
        $region48: #{tpu_custom_call.1} parent=11 // pred_fallthru
          _
        // Predicated region
        $region49: #{tpu_custom_call.1} parent=11 // pred_check
          %p585 = pneg %p339
        $region50: #{tpu_custom_call.1} parent=11 // pred_check_branch
          %587 = sbr.rel (%p585) target = $region52
        $region51: #{tpu_custom_call.1} parent=11 // pred_region
          _
        $region52: #{tpu_custom_call.1} parent=11 // pred_fallthru
          _
        // Predicated region
        $region53: #{tpu_custom_call.1} parent=11 // pred_check
          %p588 = pneg %p360
        $region54: #{tpu_custom_call.1} parent=11 // pred_check_branch
          %590 = sbr.rel (%p588) target = $region56
        $region55: #{tpu_custom_call.1} parent=11 // pred_region
          %s592 = ssub.s32 1024, 1024
          %593 = vsyncadd [#allocation15], %s592
          %s594 = sshll.u32 [#allocation16], 4
          %s595 = int_to_ptr.vmem [resolvable:$true] %s594
          %600 = dma.hbm_to_vmem [thread:$0]  %s13, 1024, %s595, [#allocation15], 64, 64, 4
        $region56: #{tpu_custom_call.1} parent=11 // pred_fallthru
          _
        // Predicated region
        $region57: #{tpu_custom_call.1} parent=11 // pred_check
          %p601 = pneg %p381
        $region58: #{tpu_custom_call.1} parent=11 // pred_check_branch
          %603 = sbr.rel (%p601) target = $region60
        $region59: #{tpu_custom_call.1} parent=11 // pred_region
          _
        $region60: #{tpu_custom_call.1} parent=11 // pred_fallthru
          _
        // Predicated region
        $region61: #{tpu_custom_call.1} parent=11 // pred_check
          %p604 = pneg %p402
        $region62: #{tpu_custom_call.1} parent=11 // pred_check_branch
          %606 = sbr.rel (%p604) target = $region64
        $region63: #{tpu_custom_call.1} parent=11 // pred_region
          _
        $region64: #{tpu_custom_call.1} parent=11 // pred_fallthru
          _
        // Predicated region
        $region65: #{tpu_custom_call.1} parent=11 // pred_check
          %p607 = pneg %p423
        $region66: #{tpu_custom_call.1} parent=11 // pred_check_branch
          %609 = sbr.rel (%p607) target = $region68
        $region67: #{tpu_custom_call.1} parent=11 // pred_region
          _
        $region68: #{tpu_custom_call.1} parent=11 // pred_fallthru
          _
        // Predicated region
        $region69: #{tpu_custom_call.1} parent=11 // pred_check
          %p610 = pneg %p444
        $region70: #{tpu_custom_call.1} parent=11 // pred_check_branch
          %612 = sbr.rel (%p610) target = $region72
        $region71: #{tpu_custom_call.1} parent=11 // pred_region
          _
        $region72: #{tpu_custom_call.1} parent=11 // pred_fallthru
          _
        // Predicated region
        $region73: #{tpu_custom_call.1} parent=11 // pred_check
          %p613 = pneg %p465
        $region74: #{tpu_custom_call.1} parent=11 // pred_check_branch
          %615 = sbr.rel (%p613) target = $region76
        $region75: #{tpu_custom_call.1} parent=11 // pred_region
          _
        $region76: #{tpu_custom_call.1} parent=11 // pred_fallthru
          _
      $region12: #{tpu_custom_call.1} parent=5 // pred_fallthru
        _
      %p616 = scmp.lt.s32.totalorder %s37, 2
      // Predicated region
      $region77: #{tpu_custom_call.1} parent=5 // pred_check
        %p617 = pneg %p616
      $region78: #{tpu_custom_call.1} parent=5 // pred_check_branch
        %619 = sbr.rel (%p617) target = $region80
      $region79: #{tpu_custom_call.1} parent=5 // pred_region
        // Predicated region
        $region81: #{tpu_custom_call.1} parent=79 // pred_check
          %p620 = pneg %p71
        $region82: #{tpu_custom_call.1} parent=79 // pred_check_branch
          %622 = sbr.rel (%p620) target = $region84
        $region83: #{tpu_custom_call.1} parent=79 // pred_region
          %s623 = sand.u32 %s61, 1
          %s624 = scalar_lea.sflag [#allocation3], %s623
          %s625 = sand.u32 %s61, 1
          %s626 = smul.addr %s625, 8
          %s627 = scalar_lea.vmem [#allocation2], %s626
          %s629 = ssub.s32 128, 128
          %630 = vsyncadd %s624, %s629
          %s631 = sadd.s32 %s45, %s44
          %s632 = smul.addr %s631, 128
          %s633 = scalar_lea.hbm %s0, %s632
          %s635 = sshll.u32 %s627, 4
          %s636 = int_to_ptr.vmem [resolvable:$true] %s635
          %638 = dma.hbm_to_vmem [thread:$0]  %s633, 128, %s636, %s624
        $region84: #{tpu_custom_call.1} parent=79 // pred_fallthru
          _
        // Predicated region
        $region85: #{tpu_custom_call.1} parent=79 // pred_check
          %p639 = pneg %p97
        $region86: #{tpu_custom_call.1} parent=79 // pred_check_branch
          %641 = sbr.rel (%p639) target = $region88
        $region87: #{tpu_custom_call.1} parent=79 // pred_region
          %s642 = sand.u32 %s37, 1
          %s643 = scalar_lea.sflag [#allocation6], %s642
          %s644 = sand.u32 %s87, 1
          %s645 = smul.addr %s644, 8
          %s646 = scalar_lea.vmem [#allocation5], %s645
          %s648 = ssub.s32 128, 128
          %649 = vsyncadd %s643, %s648
          %s650 = smul.addr %s44, 128
          %s651 = scalar_lea.hbm %s1, %s650
          %s653 = sshll.u32 %s646, 4
          %s654 = int_to_ptr.vmem [resolvable:$true] %s653
          %656 = dma.hbm_to_vmem [thread:$0]  %s651, 128, %s654, %s643
        $region88: #{tpu_custom_call.1} parent=79 // pred_fallthru
          _
        // Predicated region
        $region89: #{tpu_custom_call.1} parent=79 // pred_check
          %p657 = pneg %p123
        $region90: #{tpu_custom_call.1} parent=79 // pred_check_branch
          %659 = sbr.rel (%p657) target = $region92
        $region91: #{tpu_custom_call.1} parent=79 // pred_region
          %s660 = sand.u32 %s37, 1
          %s661 = scalar_lea.sflag [#allocation6], %s660
          %s662 = sand.u32 %s113, 1
          %s663 = scalar_lea.vmem [#allocation7], %s662
          %s665 = ssub.s32 16, 16
          %666 = vsyncadd %s661, %s665
          %s667 = smul.addr %s44, 16
          %s668 = scalar_lea.hbm %s2, %s667
          %s670 = sshll.u32 %s663, 4
          %s671 = int_to_ptr.vmem [resolvable:$true] %s670
          %673 = dma.hbm_to_vmem [thread:$0]  %s668, 16, %s671, %s661
        $region92: #{tpu_custom_call.1} parent=79 // pred_fallthru
          _
      $region80: #{tpu_custom_call.1} parent=5 // pred_fallthru
        _
      %p674 = scmp.le.s32.totalorder 1, %s37
      %p675 = scmp.lt.s32.totalorder %s37, 3
      %p676 = pnand %p674, %p675
      %p677 = pneg %p676
      // Predicated region
      $region93: #{tpu_custom_call.1} parent=5 // pred_check
        _
      $region94: #{tpu_custom_call.1} parent=5 // pred_check_branch
        %679 = sbr.rel (%p676) target = $region96
      $region95: #{tpu_custom_call.1} parent=5 // pred_region
        %s680 = ssub.s32 %s37, 1
        %s681 = sand.u32 %s64, 1
        %s682 = scalar_lea.sflag [#allocation3], %s681
        %s683 = sand.u32 %s64, 1
        %s684 = smul.addr %s683, 8
        %s685 = scalar_lea.vmem [#allocation2], %s684
        // Predicated region
        $region97: #{tpu_custom_call.1} parent=95 // pred_check
          %p686 = pneg %p77
        $region98: #{tpu_custom_call.1} parent=95 // pred_check_branch
          %688 = sbr.rel (%p686) target = $region100
        $region99: #{tpu_custom_call.1} parent=95 // pred_region
          %689 = dma.done %s682, 128
        $region100: #{tpu_custom_call.1} parent=95 // pred_fallthru
          _
        %s690 = sand.u32 %s42, 1
        %s691 = scalar_lea.sflag [#allocation6], %s690
        %s692 = sand.u32 %s90, 1
        %s693 = smul.addr %s692, 8
        %s694 = scalar_lea.vmem [#allocation5], %s693
        // Predicated region
        $region101: #{tpu_custom_call.1} parent=95 // pred_check
          %p695 = pneg %p103
        $region102: #{tpu_custom_call.1} parent=95 // pred_check_branch
          %697 = sbr.rel (%p695) target = $region104
        $region103: #{tpu_custom_call.1} parent=95 // pred_region
          %698 = dma.done %s691, 128
        $region104: #{tpu_custom_call.1} parent=95 // pred_fallthru
          _
        %s699 = sand.u32 %s42, 1
        %s700 = scalar_lea.sflag [#allocation6], %s699
        %s701 = sand.u32 %s116, 1
        %s702 = scalar_lea.vmem [#allocation7], %s701
        // Predicated region
        $region105: #{tpu_custom_call.1} parent=95 // pred_check
          %p703 = pneg %p129
        $region106: #{tpu_custom_call.1} parent=95 // pred_check_branch
          %705 = sbr.rel (%p703) target = $region108
        $region107: #{tpu_custom_call.1} parent=95 // pred_region
          %706 = dma.done %s700, 16
        $region108: #{tpu_custom_call.1} parent=95 // pred_fallthru
          _
        // Predicated region
        $region109: #{tpu_custom_call.1} parent=95 // pred_check
          %p707 = pneg %p150
        $region110: #{tpu_custom_call.1} parent=95 // pred_check_branch
          %709 = sbr.rel (%p707) target = $region112
        $region111: #{tpu_custom_call.1} parent=95 // pred_region
          %710 = dma.done [#allocation9], 4096
        $region112: #{tpu_custom_call.1} parent=95 // pred_fallthru
          _
        // Predicated region
        $region113: #{tpu_custom_call.1} parent=95 // pred_check
          %p711 = pneg %p192
        $region114: #{tpu_custom_call.1} parent=95 // pred_check_branch
          %713 = sbr.rel (%p711) target = $region116
        $region115: #{tpu_custom_call.1} parent=95 // pred_region
          %714 = dma.done [#allocation9], 4096
        $region116: #{tpu_custom_call.1} parent=95 // pred_fallthru
          _
        // Predicated region
        $region117: #{tpu_custom_call.1} parent=95 // pred_check
          %p715 = pneg %p234
        $region118: #{tpu_custom_call.1} parent=95 // pred_check_branch
          %717 = sbr.rel (%p715) target = $region120
        $region119: #{tpu_custom_call.1} parent=95 // pred_region
          %718 = dma.done [#allocation12], 4096
        $region120: #{tpu_custom_call.1} parent=95 // pred_fallthru
          _
        // Predicated region
        $region121: #{tpu_custom_call.1} parent=95 // pred_check
          %p719 = pneg %p276
        $region122: #{tpu_custom_call.1} parent=95 // pred_check_branch
          %721 = sbr.rel (%p719) target = $region124
        $region123: #{tpu_custom_call.1} parent=95 // pred_region
          %722 = dma.done [#allocation12], 4096
        $region124: #{tpu_custom_call.1} parent=95 // pred_fallthru
          _
        // Predicated region
        $region125: #{tpu_custom_call.1} parent=95 // pred_check
          %p723 = pneg %p318
        $region126: #{tpu_custom_call.1} parent=95 // pred_check_branch
          %725 = sbr.rel (%p723) target = $region128
        $region127: #{tpu_custom_call.1} parent=95 // pred_region
          %726 = dma.done [#allocation15], 1024
        $region128: #{tpu_custom_call.1} parent=95 // pred_fallthru
          _
        // Predicated region
        $region129: #{tpu_custom_call.1} parent=95 // pred_check
          %p727 = pneg %p360
        $region130: #{tpu_custom_call.1} parent=95 // pred_check_branch
          %729 = sbr.rel (%p727) target = $region132
        $region131: #{tpu_custom_call.1} parent=95 // pred_region
          %730 = dma.done [#allocation15], 1024
        $region132: #{tpu_custom_call.1} parent=95 // pred_fallthru
          _
        %s731 = sand.u32 %s64, 1
        %s732 = scalar_lea.sflag [#allocation3], %s731
        %s733 = sand.u32 %s64, 1
        %s734 = smul.addr %s733, 8
        %s735 = scalar_lea.vmem [#allocation2], %s734
        %p736 = pneg %p77
        %p737 = pneg %p74
        %s738 = sand.u32 %s42, 1
        %s739 = scalar_lea.sflag [#allocation6], %s738
        %s740 = sand.u32 %s90, 1
        %s741 = smul.addr %s740, 8
        %s742 = scalar_lea.vmem [#allocation5], %s741
        %p743 = pneg %p103
        %p744 = pneg %p100
        %s745 = sand.u32 %s42, 1
        %s746 = scalar_lea.sflag [#allocation6], %s745
        %s747 = sand.u32 %s116, 1
        %s748 = scalar_lea.vmem [#allocation7], %s747
        %p749 = pneg %p129
        %p750 = pneg %p126
        %p751 = pneg %p150
        %p752 = pneg %p147
        %p753 = pneg %p171
        %p754 = pneg %p168
        %p755 = pneg %p192
        %p756 = pneg %p189
        %p757 = pneg %p213
        %p758 = pneg %p210
        %p759 = pneg %p234
        %p760 = pneg %p231
        %p761 = pneg %p255
        %p762 = pneg %p252
        %p763 = pneg %p276
        %p764 = pneg %p273
        %p765 = pneg %p297
        %p766 = pneg %p294
        %p767 = pneg %p318
        %p768 = pneg %p315
        %p769 = pneg %p339
        %p770 = pneg %p336
        %p771 = pneg %p360
        %p772 = pneg %p357
        %p773 = pneg %p381
        %p774 = pneg %p378
        %p775 = pneg %p402
        %p776 = pneg %p399
        %p777 = pneg %p423
        %p778 = pneg %p420
        %p779 = pneg %p444
        %p780 = pneg %p441
        %p781 = pneg %p465
        %p782 = pneg %p462
        %p783 = pneg %p493
        %p784 = pneg %p490
        %s785 = sand.u32 %s480, 1
        %s786 = scalar_lea.sflag [#allocation4], %s785
        %s787 = sand.u32 %s480, 1
        %s788 = smul.addr %s787, 8
        %s789 = scalar_lea.vmem [#allocation17], %s788
        %v791 = vld [vmem:[%s685] sm:$0xff]
        %v792 = vld [vmem:[%s694] sm:$0xff]
        %v793 = vld [vmem:[%s702] sm:$0x1]
        %v794 = vlaneseq
        %v795 = vand.u32 %v794, 127
        %vm796 = vcmp.lt.s32.totalorder %v795, 32
        %v797 = vsel %vm796, 1, 0
        %v798 = vcvt.s32.f32 %v797
        %v799 = vpack.c.bf16 %v791, %v791
        %v800 = vpack.c.bf16 %v792, %v792
        %v801 = vld [vmem:[#allocation8] sm:$0xff]
        %v802 = vld [vmem:[#allocation8 + $0x8] sm:$0xff]
        %v803 = vld [vmem:[#allocation8 + $0x10] sm:$0xff]
        %v804 = vld [vmem:[#allocation8 + $0x18] sm:$0xff]
        %v805 = vld [vmem:[#allocation8 + $0x20] sm:$0xff]
        %v806 = vld [vmem:[#allocation8 + $0x28] sm:$0xff]
        %v807 = vld [vmem:[#allocation8 + $0x30] sm:$0xff]
        %v808 = vld [vmem:[#allocation8 + $0x38] sm:$0xff]
        %v809 = vld [vmem:[#allocation8 + $0x40] sm:$0xff]
        %v810 = vld [vmem:[#allocation8 + $0x48] sm:$0xff]
        %v811 = vld [vmem:[#allocation8 + $0x50] sm:$0xff]
        %v812 = vld [vmem:[#allocation8 + $0x58] sm:$0xff]
        %v813 = vld [vmem:[#allocation8 + $0x60] sm:$0xff]
        %v814 = vld [vmem:[#allocation8 + $0x68] sm:$0xff]
        %v815 = vld [vmem:[#allocation8 + $0x70] sm:$0xff]
        %v816 = vld [vmem:[#allocation8 + $0x78] sm:$0xff]
        %v817 = vld [vmem:[#allocation8 + $0x80] sm:$0xff]
        %v818 = vld [vmem:[#allocation8 + $0x88] sm:$0xff]
        %v819 = vld [vmem:[#allocation8 + $0x90] sm:$0xff]
        %v820 = vld [vmem:[#allocation8 + $0x98] sm:$0xff]
        %v821 = vld [vmem:[#allocation8 + $0xa0] sm:$0xff]
        %v822 = vld [vmem:[#allocation8 + $0xa8] sm:$0xff]
        %v823 = vld [vmem:[#allocation8 + $0xb0] sm:$0xff]
        %v824 = vld [vmem:[#allocation8 + $0xb8] sm:$0xff]
        %v825 = vld [vmem:[#allocation8 + $0xc0] sm:$0xff]
        %v826 = vld [vmem:[#allocation8 + $0xc8] sm:$0xff]
        %v827 = vld [vmem:[#allocation8 + $0xd0] sm:$0xff]
        %v828 = vld [vmem:[#allocation8 + $0xd8] sm:$0xff]
        %v829 = vld [vmem:[#allocation8 + $0xe0] sm:$0xff]
        %v830 = vld [vmem:[#allocation8 + $0xe8] sm:$0xff]
        %v831 = vld [vmem:[#allocation8 + $0xf0] sm:$0xff]
        %v832 = vld [vmem:[#allocation8 + $0xf8] sm:$0xff]
        %v833 = vld [vmem:[%s4] sm:$0xf]
        %v835 = vlaneseq
        %v836 = vshrl.u32 %v835, 7
        %v837 = vsub.s32 0, %v836
        %v838 = vrot.slane %v833, %v837
        %v839 = vlaneseq
        %v840 = vshrl.u32 %v839, 7
        %v841 = vsub.s32 1, %v840
        %v842 = vrot.slane %v833, %v841
        %v843 = vlaneseq
        %v844 = vshrl.u32 %v843, 7
        %v845 = vsub.s32 2, %v844
        %v846 = vrot.slane %v833, %v845
        %v847 = vlaneseq
        %v848 = vshrl.u32 %v847, 7
        %v849 = vsub.s32 3, %v848
        %v850 = vrot.slane %v833, %v849
        %v887 = vunpack.c.l.b16 %v801
        %v888 = vunpack.c.h.b16 %v801
        %v889 = vunpack.c.l.b16 %v802
        %v890 = vunpack.c.h.b16 %v802
        %v891 = vunpack.c.l.b16 %v803
        %v892 = vunpack.c.h.b16 %v803
        %v893 = vunpack.c.l.b16 %v804
        %v894 = vunpack.c.h.b16 %v804
        %v895 = vunpack.c.l.b16 %v805
        %v896 = vunpack.c.h.b16 %v805
        %v897 = vunpack.c.l.b16 %v806
        %v898 = vunpack.c.h.b16 %v806
        %v899 = vunpack.c.l.b16 %v807
        %v900 = vunpack.c.h.b16 %v807
        %v901 = vunpack.c.l.b16 %v808
        %v902 = vunpack.c.h.b16 %v808
        %v903 = vunpack.c.l.b16 %v809
        %v904 = vunpack.c.h.b16 %v809
        %v905 = vunpack.c.l.b16 %v810
        %v906 = vunpack.c.h.b16 %v810
        %v907 = vunpack.c.l.b16 %v811
        %v908 = vunpack.c.h.b16 %v811
        %v909 = vunpack.c.l.b16 %v812
        %v910 = vunpack.c.h.b16 %v812
        %v911 = vunpack.c.l.b16 %v813
        %v912 = vunpack.c.h.b16 %v813
        %v913 = vunpack.c.l.b16 %v814
        %v914 = vunpack.c.h.b16 %v814
        %v915 = vunpack.c.l.b16 %v815
        %v916 = vunpack.c.h.b16 %v815
        %v917 = vunpack.c.l.b16 %v816
        %v918 = vunpack.c.h.b16 %v816
        %v919 = vunpack.c.l.b16 %v817
        %v920 = vunpack.c.h.b16 %v817
        %v921 = vunpack.c.l.b16 %v818
        %v922 = vunpack.c.h.b16 %v818
        %v923 = vunpack.c.l.b16 %v819
        %v924 = vunpack.c.h.b16 %v819
        %v925 = vunpack.c.l.b16 %v820
        %v926 = vunpack.c.h.b16 %v820
        %v927 = vunpack.c.l.b16 %v821
        %v928 = vunpack.c.h.b16 %v821
        %v929 = vunpack.c.l.b16 %v822
        %v930 = vunpack.c.h.b16 %v822
        %v931 = vunpack.c.l.b16 %v823
        %v932 = vunpack.c.h.b16 %v823
        %v933 = vunpack.c.l.b16 %v824
        %v934 = vunpack.c.h.b16 %v824
        %v935 = vunpack.c.l.b16 %v825
        %v936 = vunpack.c.h.b16 %v825
        %v937 = vunpack.c.l.b16 %v826
        %v938 = vunpack.c.h.b16 %v826
        %v939 = vunpack.c.l.b16 %v827
        %v940 = vunpack.c.h.b16 %v827
        %v941 = vunpack.c.l.b16 %v828
        %v942 = vunpack.c.h.b16 %v828
        %v943 = vunpack.c.l.b16 %v829
        %v944 = vunpack.c.h.b16 %v829
        %v945 = vunpack.c.l.b16 %v830
        %v946 = vunpack.c.h.b16 %v830
        %v947 = vunpack.c.l.b16 %v831
        %v948 = vunpack.c.h.b16 %v831
        %v949 = vunpack.c.l.b16 %v832
        %v950 = vunpack.c.h.b16 %v832
        %v951 = vpack.c.b16 %v891, %v887
        %v952 = vpack.c.b16 %v892, %v888
        %v953 = vpack.c.b16 %v893, %v889
        %v954 = vpack.c.b16 %v894, %v890
        %v955 = vpack.c.b16 %v899, %v895
        %v956 = vpack.c.b16 %v900, %v896
        %v957 = vpack.c.b16 %v901, %v897
        %v958 = vpack.c.b16 %v902, %v898
        %v959 = vpack.c.b16 %v907, %v903
        %v960 = vpack.c.b16 %v908, %v904
        %v961 = vpack.c.b16 %v909, %v905
        %v962 = vpack.c.b16 %v910, %v906
        %v963 = vpack.c.b16 %v915, %v911
        %v964 = vpack.c.b16 %v916, %v912
        %v965 = vpack.c.b16 %v917, %v913
        %v966 = vpack.c.b16 %v918, %v914
        %v967 = vpack.c.b16 %v923, %v919
        %v968 = vpack.c.b16 %v924, %v920
        %v969 = vpack.c.b16 %v925, %v921
        %v970 = vpack.c.b16 %v926, %v922
        %v971 = vpack.c.b16 %v931, %v927
        %v972 = vpack.c.b16 %v932, %v928
        %v973 = vpack.c.b16 %v933, %v929
        %v974 = vpack.c.b16 %v934, %v930
        %v975 = vpack.c.b16 %v939, %v935
        %v976 = vpack.c.b16 %v940, %v936
        %v977 = vpack.c.b16 %v941, %v937
        %v978 = vpack.c.b16 %v942, %v938
        %v979 = vpack.c.b16 %v947, %v943
        %v980 = vpack.c.b16 %v948, %v944
        %v981 = vpack.c.b16 %v949, %v945
        %v982 = vpack.c.b16 %v950, %v946
        %1015 = vmatprep.subr.bf16.mxu0 %v980
        %1016 = vmatpush1.bf16.msra.mxu0 %v979
        %1017 = vmatprep.subr.bf16.mxu0 %v976
        %1018 = vmatpush1.bf16.msra.mxu0 %v975
        %1019 = vmatprep.subr.bf16.mxu0 %v972
        %1020 = vmatpush1.bf16.msra.mxu0 %v971
        %1021 = vmatprep.subr.bf16.mxu0 %v968
        %1022 = vmatpush1.bf16.msra.mxu0 %v967
        %1023 = vmatprep.subr.bf16.mxu0 %v964
        %1024 = vmatpush1.bf16.msra.mxu0 %v963
        %1025 = vmatprep.subr.bf16.mxu0 %v960
        %1026 = vmatpush1.bf16.msra.mxu0 %v959
        %1027 = vmatprep.subr.bf16.mxu0 %v956
        %1028 = vmatpush1.bf16.msra.mxu0 %v955
        %1029 = vmatprep.subr.bf16.mxu0 %v952
        %1030 = vmatpush1.bf16.msra.mxu0 %v951
        %1031 = vmatprep.subr.bf16.mxu0 0
        %1032 = vmatpush2.bf16.msra.mxu0 0
        %1033 = vmatprep.subr.bf16.mxu0 0
        %1034 = vmatpush2.bf16.msra.mxu0 0
        %1035 = vmatprep.subr.bf16.mxu0 0
        %1036 = vmatpush2.bf16.msra.mxu0 0
        %1037 = vmatprep.subr.bf16.mxu0 0
        %1038 = vmatpush2.bf16.msra.mxu0 0
        %1039 = vmatprep.subr.bf16.mxu0 0
        %1040 = vmatpush2.bf16.msra.mxu0 0
        %1041 = vmatprep.subr.bf16.mxu0 0
        %1042 = vmatpush2.bf16.msra.mxu0 0
        %1043 = vmatprep.subr.bf16.mxu0 0
        %1044 = vmatpush2.bf16.msra.mxu0 0
        %1045 = vmatprep.subr.bf16.mxu0 0
        %1046 = vmatpush2.bf16.msra.mxu0 0
        %1047 = vmatprep.mubr.bf16.mxu0 0
        %1048 = vmatmul.mubr.bf16.gmra.mxu0 %v799
        %v1049 = vpop.f32.mrf.mxu0
        %v1050 = vadd.f32 %v838, %v1049
        %v1051 = vpop.f32.mrf.mxu0
        %v1052 = vadd.f32 %v842, %v1051
        %v1053 = vpop.f32.mrf.mxu0
        %v1054 = vpop.f32.mrf.mxu0
        %1055 = vdwg.mxu0
        %1056 = vmatprep.subr.bf16.mxu0 %v982
        %1057 = vmatpush1.bf16.msra.mxu0 %v981
        %1058 = vmatprep.subr.bf16.mxu0 %v978
        %1059 = vmatpush1.bf16.msra.mxu0 %v977
        %1060 = vmatprep.subr.bf16.mxu0 %v974
        %1061 = vmatpush1.bf16.msra.mxu0 %v973
        %1062 = vmatprep.subr.bf16.mxu0 %v970
        %1063 = vmatpush1.bf16.msra.mxu0 %v969
        %1064 = vmatprep.subr.bf16.mxu0 %v966
        %1065 = vmatpush1.bf16.msra.mxu0 %v965
        %1066 = vmatprep.subr.bf16.mxu0 %v962
        %1067 = vmatpush1.bf16.msra.mxu0 %v961
        %1068 = vmatprep.subr.bf16.mxu0 %v958
        %1069 = vmatpush1.bf16.msra.mxu0 %v957
        %1070 = vmatprep.subr.bf16.mxu0 %v954
        %1071 = vmatpush1.bf16.msra.mxu0 %v953
        %1072 = vmatprep.subr.bf16.mxu0 0
        %1073 = vmatpush2.bf16.msra.mxu0 0
        %1074 = vmatprep.subr.bf16.mxu0 0
        %1075 = vmatpush2.bf16.msra.mxu0 0
        %1076 = vmatprep.subr.bf16.mxu0 0
        %1077 = vmatpush2.bf16.msra.mxu0 0
        %1078 = vmatprep.subr.bf16.mxu0 0
        %1079 = vmatpush2.bf16.msra.mxu0 0
        %1080 = vmatprep.subr.bf16.mxu0 0
        %1081 = vmatpush2.bf16.msra.mxu0 0
        %1082 = vmatprep.subr.bf16.mxu0 0
        %1083 = vmatpush2.bf16.msra.mxu0 0
        %1084 = vmatprep.subr.bf16.mxu0 0
        %1085 = vmatpush2.bf16.msra.mxu0 0
        %1086 = vmatprep.subr.bf16.mxu0 0
        %1087 = vmatpush2.bf16.msra.mxu0 0
        %1088 = vmatprep.mubr.bf16.mxu0 0
        %1089 = vmatmul.mubr.bf16.gmra.mxu0 %v799
        %v1090 = vpop.f32.mrf.mxu0
        %v1091 = vadd.f32 %v846, %v1090
        %v1092 = vpop.f32.mrf.mxu0
        %v1093 = vadd.f32 %v850, %v1092
        %v1094 = vpop.f32.mrf.mxu0
        %v1095 = vpop.f32.mrf.mxu0
        %1096 = vdwg.mxu0
        %v1097 = vld [vmem:[#allocation10] sm:$0xff]
        %v1098 = vld [vmem:[#allocation10 + $0x8] sm:$0xff]
        %v1099 = vld [vmem:[#allocation10 + $0x10] sm:$0xff]
        %v1100 = vld [vmem:[#allocation10 + $0x18] sm:$0xff]
        %v1101 = vld [vmem:[#allocation10 + $0x20] sm:$0xff]
        %v1102 = vld [vmem:[#allocation10 + $0x28] sm:$0xff]
        %v1103 = vld [vmem:[#allocation10 + $0x30] sm:$0xff]
        %v1104 = vld [vmem:[#allocation10 + $0x38] sm:$0xff]
        %v1105 = vld [vmem:[#allocation10 + $0x40] sm:$0xff]
        %v1106 = vld [vmem:[#allocation10 + $0x48] sm:$0xff]
        %v1107 = vld [vmem:[#allocation10 + $0x50] sm:$0xff]
        %v1108 = vld [vmem:[#allocation10 + $0x58] sm:$0xff]
        %v1109 = vld [vmem:[#allocation10 + $0x60] sm:$0xff]
        %v1110 = vld [vmem:[#allocation10 + $0x68] sm:$0xff]
        %v1111 = vld [vmem:[#allocation10 + $0x70] sm:$0xff]
        %v1112 = vld [vmem:[#allocation10 + $0x78] sm:$0xff]
        %v1113 = vld [vmem:[#allocation10 + $0x80] sm:$0xff]
        %v1114 = vld [vmem:[#allocation10 + $0x88] sm:$0xff]
        %v1115 = vld [vmem:[#allocation10 + $0x90] sm:$0xff]
        %v1116 = vld [vmem:[#allocation10 + $0x98] sm:$0xff]
        %v1117 = vld [vmem:[#allocation10 + $0xa0] sm:$0xff]
        %v1118 = vld [vmem:[#allocation10 + $0xa8] sm:$0xff]
        %v1119 = vld [vmem:[#allocation10 + $0xb0] sm:$0xff]
        %v1120 = vld [vmem:[#allocation10 + $0xb8] sm:$0xff]
        %v1121 = vld [vmem:[#allocation10 + $0xc0] sm:$0xff]
        %v1122 = vld [vmem:[#allocation10 + $0xc8] sm:$0xff]
        %v1123 = vld [vmem:[#allocation10 + $0xd0] sm:$0xff]
        %v1124 = vld [vmem:[#allocation10 + $0xd8] sm:$0xff]
        %v1125 = vld [vmem:[#allocation10 + $0xe0] sm:$0xff]
        %v1126 = vld [vmem:[#allocation10 + $0xe8] sm:$0xff]
        %v1127 = vld [vmem:[#allocation10 + $0xf0] sm:$0xff]
        %v1128 = vld [vmem:[#allocation10 + $0xf8] sm:$0xff]
        %v1129 = vld [vmem:[%s6] sm:$0xf]
        %v1131 = vlaneseq
        %v1132 = vshrl.u32 %v1131, 7
        %v1133 = vsub.s32 0, %v1132
        %v1134 = vrot.slane %v1129, %v1133
        %v1135 = vlaneseq
        %v1136 = vshrl.u32 %v1135, 7
        %v1137 = vsub.s32 1, %v1136
        %v1138 = vrot.slane %v1129, %v1137
        %v1139 = vlaneseq
        %v1140 = vshrl.u32 %v1139, 7
        %v1141 = vsub.s32 2, %v1140
        %v1142 = vrot.slane %v1129, %v1141
        %v1143 = vlaneseq
        %v1144 = vshrl.u32 %v1143, 7
        %v1145 = vsub.s32 3, %v1144
        %v1146 = vrot.slane %v1129, %v1145
        %v1183 = vunpack.c.l.b16 %v1097
        %v1184 = vunpack.c.h.b16 %v1097
        %v1185 = vunpack.c.l.b16 %v1098
        %v1186 = vunpack.c.h.b16 %v1098
        %v1187 = vunpack.c.l.b16 %v1099
        %v1188 = vunpack.c.h.b16 %v1099
        %v1189 = vunpack.c.l.b16 %v1100
        %v1190 = vunpack.c.h.b16 %v1100
        %v1191 = vunpack.c.l.b16 %v1101
        %v1192 = vunpack.c.h.b16 %v1101
        %v1193 = vunpack.c.l.b16 %v1102
        %v1194 = vunpack.c.h.b16 %v1102
        %v1195 = vunpack.c.l.b16 %v1103
        %v1196 = vunpack.c.h.b16 %v1103
        %v1197 = vunpack.c.l.b16 %v1104
        %v1198 = vunpack.c.h.b16 %v1104
        %v1199 = vunpack.c.l.b16 %v1105
        %v1200 = vunpack.c.h.b16 %v1105
        %v1201 = vunpack.c.l.b16 %v1106
        %v1202 = vunpack.c.h.b16 %v1106
        %v1203 = vunpack.c.l.b16 %v1107
        %v1204 = vunpack.c.h.b16 %v1107
        %v1205 = vunpack.c.l.b16 %v1108
        %v1206 = vunpack.c.h.b16 %v1108
        %v1207 = vunpack.c.l.b16 %v1109
        %v1208 = vunpack.c.h.b16 %v1109
        %v1209 = vunpack.c.l.b16 %v1110
        %v1210 = vunpack.c.h.b16 %v1110
        %v1211 = vunpack.c.l.b16 %v1111
        %v1212 = vunpack.c.h.b16 %v1111
        %v1213 = vunpack.c.l.b16 %v1112
        %v1214 = vunpack.c.h.b16 %v1112
        %v1215 = vunpack.c.l.b16 %v1113
        %v1216 = vunpack.c.h.b16 %v1113
        %v1217 = vunpack.c.l.b16 %v1114
        %v1218 = vunpack.c.h.b16 %v1114
        %v1219 = vunpack.c.l.b16 %v1115
        %v1220 = vunpack.c.h.b16 %v1115
        %v1221 = vunpack.c.l.b16 %v1116
        %v1222 = vunpack.c.h.b16 %v1116
        %v1223 = vunpack.c.l.b16 %v1117
        %v1224 = vunpack.c.h.b16 %v1117
        %v1225 = vunpack.c.l.b16 %v1118
        %v1226 = vunpack.c.h.b16 %v1118
        %v1227 = vunpack.c.l.b16 %v1119
        %v1228 = vunpack.c.h.b16 %v1119
        %v1229 = vunpack.c.l.b16 %v1120
        %v1230 = vunpack.c.h.b16 %v1120
        %v1231 = vunpack.c.l.b16 %v1121
        %v1232 = vunpack.c.h.b16 %v1121
        %v1233 = vunpack.c.l.b16 %v1122
        %v1234 = vunpack.c.h.b16 %v1122
        %v1235 = vunpack.c.l.b16 %v1123
        %v1236 = vunpack.c.h.b16 %v1123
        %v1237 = vunpack.c.l.b16 %v1124
        %v1238 = vunpack.c.h.b16 %v1124
        %v1239 = vunpack.c.l.b16 %v1125
        %v1240 = vunpack.c.h.b16 %v1125
        %v1241 = vunpack.c.l.b16 %v1126
        %v1242 = vunpack.c.h.b16 %v1126
        %v1243 = vunpack.c.l.b16 %v1127
        %v1244 = vunpack.c.h.b16 %v1127
        %v1245 = vunpack.c.l.b16 %v1128
        %v1246 = vunpack.c.h.b16 %v1128
        %v1247 = vpack.c.b16 %v1187, %v1183
        %v1248 = vpack.c.b16 %v1188, %v1184
        %v1249 = vpack.c.b16 %v1189, %v1185
        %v1250 = vpack.c.b16 %v1190, %v1186
        %v1251 = vpack.c.b16 %v1195, %v1191
        %v1252 = vpack.c.b16 %v1196, %v1192
        %v1253 = vpack.c.b16 %v1197, %v1193
        %v1254 = vpack.c.b16 %v1198, %v1194
        %v1255 = vpack.c.b16 %v1203, %v1199
        %v1256 = vpack.c.b16 %v1204, %v1200
        %v1257 = vpack.c.b16 %v1205, %v1201
        %v1258 = vpack.c.b16 %v1206, %v1202
        %v1259 = vpack.c.b16 %v1211, %v1207
        %v1260 = vpack.c.b16 %v1212, %v1208
        %v1261 = vpack.c.b16 %v1213, %v1209
        %v1262 = vpack.c.b16 %v1214, %v1210
        %v1263 = vpack.c.b16 %v1219, %v1215
        %v1264 = vpack.c.b16 %v1220, %v1216
        %v1265 = vpack.c.b16 %v1221, %v1217
        %v1266 = vpack.c.b16 %v1222, %v1218
        %v1267 = vpack.c.b16 %v1227, %v1223
        %v1268 = vpack.c.b16 %v1228, %v1224
        %v1269 = vpack.c.b16 %v1229, %v1225
        %v1270 = vpack.c.b16 %v1230, %v1226
        %v1271 = vpack.c.b16 %v1235, %v1231
        %v1272 = vpack.c.b16 %v1236, %v1232
        %v1273 = vpack.c.b16 %v1237, %v1233
        %v1274 = vpack.c.b16 %v1238, %v1234
        %v1275 = vpack.c.b16 %v1243, %v1239
        %v1276 = vpack.c.b16 %v1244, %v1240
        %v1277 = vpack.c.b16 %v1245, %v1241
        %v1278 = vpack.c.b16 %v1246, %v1242
        %1311 = vmatprep.subr.bf16.mxu0 %v1276
        %1312 = vmatpush1.bf16.msra.mxu0 %v1275
        %1313 = vmatprep.subr.bf16.mxu0 %v1272
        %1314 = vmatpush1.bf16.msra.mxu0 %v1271
        %1315 = vmatprep.subr.bf16.mxu0 %v1268
        %1316 = vmatpush1.bf16.msra.mxu0 %v1267
        %1317 = vmatprep.subr.bf16.mxu0 %v1264
        %1318 = vmatpush1.bf16.msra.mxu0 %v1263
        %1319 = vmatprep.subr.bf16.mxu0 %v1260
        %1320 = vmatpush1.bf16.msra.mxu0 %v1259
        %1321 = vmatprep.subr.bf16.mxu0 %v1256
        %1322 = vmatpush1.bf16.msra.mxu0 %v1255
        %1323 = vmatprep.subr.bf16.mxu0 %v1252
        %1324 = vmatpush1.bf16.msra.mxu0 %v1251
        %1325 = vmatprep.subr.bf16.mxu0 %v1248
        %1326 = vmatpush1.bf16.msra.mxu0 %v1247
        %1327 = vmatprep.subr.bf16.mxu0 0
        %1328 = vmatpush2.bf16.msra.mxu0 0
        %1329 = vmatprep.subr.bf16.mxu0 0
        %1330 = vmatpush2.bf16.msra.mxu0 0
        %1331 = vmatprep.subr.bf16.mxu0 0
        %1332 = vmatpush2.bf16.msra.mxu0 0
        %1333 = vmatprep.subr.bf16.mxu0 0
        %1334 = vmatpush2.bf16.msra.mxu0 0
        %1335 = vmatprep.subr.bf16.mxu0 0
        %1336 = vmatpush2.bf16.msra.mxu0 0
        %1337 = vmatprep.subr.bf16.mxu0 0
        %1338 = vmatpush2.bf16.msra.mxu0 0
        %1339 = vmatprep.subr.bf16.mxu0 0
        %1340 = vmatpush2.bf16.msra.mxu0 0
        %1341 = vmatprep.subr.bf16.mxu0 0
        %1342 = vmatpush2.bf16.msra.mxu0 0
        %1343 = vmatprep.mubr.bf16.mxu0 0
        %1344 = vmatmul.mubr.bf16.gmra.mxu0 %v800
        %v1345 = vpop.f32.mrf.mxu0
        %v1346 = vadd.f32 %v1134, %v1345
        %v1347 = vpop.f32.mrf.mxu0
        %v1348 = vadd.f32 %v1138, %v1347
        %v1349 = vpop.f32.mrf.mxu0
        %v1350 = vpop.f32.mrf.mxu0
        %1351 = vdwg.mxu0
        %1352 = vmatprep.subr.bf16.mxu0 %v1278
        %1353 = vmatpush1.bf16.msra.mxu0 %v1277
        %1354 = vmatprep.subr.bf16.mxu0 %v1274
        %1355 = vmatpush1.bf16.msra.mxu0 %v1273
        %1356 = vmatprep.subr.bf16.mxu0 %v1270
        %1357 = vmatpush1.bf16.msra.mxu0 %v1269
        %1358 = vmatprep.subr.bf16.mxu0 %v1266
        %1359 = vmatpush1.bf16.msra.mxu0 %v1265
        %1360 = vmatprep.subr.bf16.mxu0 %v1262
        %1361 = vmatpush1.bf16.msra.mxu0 %v1261
        %1362 = vmatprep.subr.bf16.mxu0 %v1258
        %1363 = vmatpush1.bf16.msra.mxu0 %v1257
        %1364 = vmatprep.subr.bf16.mxu0 %v1254
        %1365 = vmatpush1.bf16.msra.mxu0 %v1253
        %1366 = vmatprep.subr.bf16.mxu0 %v1250
        %1367 = vmatpush1.bf16.msra.mxu0 %v1249
        %1368 = vmatprep.subr.bf16.mxu0 0
        %1369 = vmatpush2.bf16.msra.mxu0 0
        %1370 = vmatprep.subr.bf16.mxu0 0
        %1371 = vmatpush2.bf16.msra.mxu0 0
        %1372 = vmatprep.subr.bf16.mxu0 0
        %1373 = vmatpush2.bf16.msra.mxu0 0
        %1374 = vmatprep.subr.bf16.mxu0 0
        %1375 = vmatpush2.bf16.msra.mxu0 0
        %1376 = vmatprep.subr.bf16.mxu0 0
        %1377 = vmatpush2.bf16.msra.mxu0 0
        %1378 = vmatprep.subr.bf16.mxu0 0
        %1379 = vmatpush2.bf16.msra.mxu0 0
        %1380 = vmatprep.subr.bf16.mxu0 0
        %1381 = vmatpush2.bf16.msra.mxu0 0
        %1382 = vmatprep.subr.bf16.mxu0 0
        %1383 = vmatpush2.bf16.msra.mxu0 0
        %1384 = vmatprep.mubr.bf16.mxu0 0
        %1385 = vmatmul.mubr.bf16.gmra.mxu0 %v800
        %v1386 = vpop.f32.mrf.mxu0
        %v1387 = vadd.f32 %v1142, %v1386
        %v1388 = vpop.f32.mrf.mxu0
        %v1389 = vadd.f32 %v1146, %v1388
        %v1390 = vpop.f32.mrf.mxu0
        %v1391 = vpop.f32.mrf.mxu0
        %1392 = vdwg.mxu0
        %v1393 = vld [vmem:[#allocation11] sm:$0xff]
        %v1394 = vld [vmem:[#allocation11 + $0x8] sm:$0xff]
        %v1395 = vld [vmem:[#allocation11 + $0x10] sm:$0xff]
        %v1396 = vld [vmem:[#allocation11 + $0x18] sm:$0xff]
        %v1397 = vld [vmem:[#allocation11 + $0x20] sm:$0xff]
        %v1398 = vld [vmem:[#allocation11 + $0x28] sm:$0xff]
        %v1399 = vld [vmem:[#allocation11 + $0x30] sm:$0xff]
        %v1400 = vld [vmem:[#allocation11 + $0x38] sm:$0xff]
        %v1401 = vld [vmem:[#allocation11 + $0x40] sm:$0xff]
        %v1402 = vld [vmem:[#allocation11 + $0x48] sm:$0xff]
        %v1403 = vld [vmem:[#allocation11 + $0x50] sm:$0xff]
        %v1404 = vld [vmem:[#allocation11 + $0x58] sm:$0xff]
        %v1405 = vld [vmem:[#allocation11 + $0x60] sm:$0xff]
        %v1406 = vld [vmem:[#allocation11 + $0x68] sm:$0xff]
        %v1407 = vld [vmem:[#allocation11 + $0x70] sm:$0xff]
        %v1408 = vld [vmem:[#allocation11 + $0x78] sm:$0xff]
        %v1409 = vld [vmem:[#allocation11 + $0x80] sm:$0xff]
        %v1410 = vld [vmem:[#allocation11 + $0x88] sm:$0xff]
        %v1411 = vld [vmem:[#allocation11 + $0x90] sm:$0xff]
        %v1412 = vld [vmem:[#allocation11 + $0x98] sm:$0xff]
        %v1413 = vld [vmem:[#allocation11 + $0xa0] sm:$0xff]
        %v1414 = vld [vmem:[#allocation11 + $0xa8] sm:$0xff]
        %v1415 = vld [vmem:[#allocation11 + $0xb0] sm:$0xff]
        %v1416 = vld [vmem:[#allocation11 + $0xb8] sm:$0xff]
        %v1417 = vld [vmem:[#allocation11 + $0xc0] sm:$0xff]
        %v1418 = vld [vmem:[#allocation11 + $0xc8] sm:$0xff]
        %v1419 = vld [vmem:[#allocation11 + $0xd0] sm:$0xff]
        %v1420 = vld [vmem:[#allocation11 + $0xd8] sm:$0xff]
        %v1421 = vld [vmem:[#allocation11 + $0xe0] sm:$0xff]
        %v1422 = vld [vmem:[#allocation11 + $0xe8] sm:$0xff]
        %v1423 = vld [vmem:[#allocation11 + $0xf0] sm:$0xff]
        %v1424 = vld [vmem:[#allocation11 + $0xf8] sm:$0xff]
        %v1425 = vld [vmem:[%s8] sm:$0xf]
        %v1427 = vlaneseq
        %v1428 = vshrl.u32 %v1427, 7
        %v1429 = vsub.s32 0, %v1428
        %v1430 = vrot.slane %v1425, %v1429
        %v1431 = vlaneseq
        %v1432 = vshrl.u32 %v1431, 7
        %v1433 = vsub.s32 1, %v1432
        %v1434 = vrot.slane %v1425, %v1433
        %v1435 = vlaneseq
        %v1436 = vshrl.u32 %v1435, 7
        %v1437 = vsub.s32 2, %v1436
        %v1438 = vrot.slane %v1425, %v1437
        %v1439 = vlaneseq
        %v1440 = vshrl.u32 %v1439, 7
        %v1441 = vsub.s32 3, %v1440
        %v1442 = vrot.slane %v1425, %v1441
        %v1479 = vunpack.c.l.b16 %v1393
        %v1480 = vunpack.c.h.b16 %v1393
        %v1481 = vunpack.c.l.b16 %v1394
        %v1482 = vunpack.c.h.b16 %v1394
        %v1483 = vunpack.c.l.b16 %v1395
        %v1484 = vunpack.c.h.b16 %v1395
        %v1485 = vunpack.c.l.b16 %v1396
        %v1486 = vunpack.c.h.b16 %v1396
        %v1487 = vunpack.c.l.b16 %v1397
        %v1488 = vunpack.c.h.b16 %v1397
        %v1489 = vunpack.c.l.b16 %v1398
        %v1490 = vunpack.c.h.b16 %v1398
        %v1491 = vunpack.c.l.b16 %v1399
        %v1492 = vunpack.c.h.b16 %v1399
        %v1493 = vunpack.c.l.b16 %v1400
        %v1494 = vunpack.c.h.b16 %v1400
        %v1495 = vunpack.c.l.b16 %v1401
        %v1496 = vunpack.c.h.b16 %v1401
        %v1497 = vunpack.c.l.b16 %v1402
        %v1498 = vunpack.c.h.b16 %v1402
        %v1499 = vunpack.c.l.b16 %v1403
        %v1500 = vunpack.c.h.b16 %v1403
        %v1501 = vunpack.c.l.b16 %v1404
        %v1502 = vunpack.c.h.b16 %v1404
        %v1503 = vunpack.c.l.b16 %v1405
        %v1504 = vunpack.c.h.b16 %v1405
        %v1505 = vunpack.c.l.b16 %v1406
        %v1506 = vunpack.c.h.b16 %v1406
        %v1507 = vunpack.c.l.b16 %v1407
        %v1508 = vunpack.c.h.b16 %v1407
        %v1509 = vunpack.c.l.b16 %v1408
        %v1510 = vunpack.c.h.b16 %v1408
        %v1511 = vunpack.c.l.b16 %v1409
        %v1512 = vunpack.c.h.b16 %v1409
        %v1513 = vunpack.c.l.b16 %v1410
        %v1514 = vunpack.c.h.b16 %v1410
        %v1515 = vunpack.c.l.b16 %v1411
        %v1516 = vunpack.c.h.b16 %v1411
        %v1517 = vunpack.c.l.b16 %v1412
        %v1518 = vunpack.c.h.b16 %v1412
        %v1519 = vunpack.c.l.b16 %v1413
        %v1520 = vunpack.c.h.b16 %v1413
        %v1521 = vunpack.c.l.b16 %v1414
        %v1522 = vunpack.c.h.b16 %v1414
        %v1523 = vunpack.c.l.b16 %v1415
        %v1524 = vunpack.c.h.b16 %v1415
        %v1525 = vunpack.c.l.b16 %v1416
        %v1526 = vunpack.c.h.b16 %v1416
        %v1527 = vunpack.c.l.b16 %v1417
        %v1528 = vunpack.c.h.b16 %v1417
        %v1529 = vunpack.c.l.b16 %v1418
        %v1530 = vunpack.c.h.b16 %v1418
        %v1531 = vunpack.c.l.b16 %v1419
        %v1532 = vunpack.c.h.b16 %v1419
        %v1533 = vunpack.c.l.b16 %v1420
        %v1534 = vunpack.c.h.b16 %v1420
        %v1535 = vunpack.c.l.b16 %v1421
        %v1536 = vunpack.c.h.b16 %v1421
        %v1537 = vunpack.c.l.b16 %v1422
        %v1538 = vunpack.c.h.b16 %v1422
        %v1539 = vunpack.c.l.b16 %v1423
        %v1540 = vunpack.c.h.b16 %v1423
        %v1541 = vunpack.c.l.b16 %v1424
        %v1542 = vunpack.c.h.b16 %v1424
        %v1543 = vpack.c.b16 %v1483, %v1479
        %v1544 = vpack.c.b16 %v1484, %v1480
        %v1545 = vpack.c.b16 %v1485, %v1481
        %v1546 = vpack.c.b16 %v1486, %v1482
        %v1547 = vpack.c.b16 %v1491, %v1487
        %v1548 = vpack.c.b16 %v1492, %v1488
        %v1549 = vpack.c.b16 %v1493, %v1489
        %v1550 = vpack.c.b16 %v1494, %v1490
        %v1551 = vpack.c.b16 %v1499, %v1495
        %v1552 = vpack.c.b16 %v1500, %v1496
        %v1553 = vpack.c.b16 %v1501, %v1497
        %v1554 = vpack.c.b16 %v1502, %v1498
        %v1555 = vpack.c.b16 %v1507, %v1503
        %v1556 = vpack.c.b16 %v1508, %v1504
        %v1557 = vpack.c.b16 %v1509, %v1505
        %v1558 = vpack.c.b16 %v1510, %v1506
        %v1559 = vpack.c.b16 %v1515, %v1511
        %v1560 = vpack.c.b16 %v1516, %v1512
        %v1561 = vpack.c.b16 %v1517, %v1513
        %v1562 = vpack.c.b16 %v1518, %v1514
        %v1563 = vpack.c.b16 %v1523, %v1519
        %v1564 = vpack.c.b16 %v1524, %v1520
        %v1565 = vpack.c.b16 %v1525, %v1521
        %v1566 = vpack.c.b16 %v1526, %v1522
        %v1567 = vpack.c.b16 %v1531, %v1527
        %v1568 = vpack.c.b16 %v1532, %v1528
        %v1569 = vpack.c.b16 %v1533, %v1529
        %v1570 = vpack.c.b16 %v1534, %v1530
        %v1571 = vpack.c.b16 %v1539, %v1535
        %v1572 = vpack.c.b16 %v1540, %v1536
        %v1573 = vpack.c.b16 %v1541, %v1537
        %v1574 = vpack.c.b16 %v1542, %v1538
        %1607 = vmatprep.subr.bf16.mxu0 %v1572
        %1608 = vmatpush1.bf16.msra.mxu0 %v1571
        %1609 = vmatprep.subr.bf16.mxu0 %v1568
        %1610 = vmatpush1.bf16.msra.mxu0 %v1567
        %1611 = vmatprep.subr.bf16.mxu0 %v1564
        %1612 = vmatpush1.bf16.msra.mxu0 %v1563
        %1613 = vmatprep.subr.bf16.mxu0 %v1560
        %1614 = vmatpush1.bf16.msra.mxu0 %v1559
        %1615 = vmatprep.subr.bf16.mxu0 %v1556
        %1616 = vmatpush1.bf16.msra.mxu0 %v1555
        %1617 = vmatprep.subr.bf16.mxu0 %v1552
        %1618 = vmatpush1.bf16.msra.mxu0 %v1551
        %1619 = vmatprep.subr.bf16.mxu0 %v1548
        %1620 = vmatpush1.bf16.msra.mxu0 %v1547
        %1621 = vmatprep.subr.bf16.mxu0 %v1544
        %1622 = vmatpush1.bf16.msra.mxu0 %v1543
        %1623 = vmatprep.subr.bf16.mxu0 0
        %1624 = vmatpush2.bf16.msra.mxu0 0
        %1625 = vmatprep.subr.bf16.mxu0 0
        %1626 = vmatpush2.bf16.msra.mxu0 0
        %1627 = vmatprep.subr.bf16.mxu0 0
        %1628 = vmatpush2.bf16.msra.mxu0 0
        %1629 = vmatprep.subr.bf16.mxu0 0
        %1630 = vmatpush2.bf16.msra.mxu0 0
        %1631 = vmatprep.subr.bf16.mxu0 0
        %1632 = vmatpush2.bf16.msra.mxu0 0
        %1633 = vmatprep.subr.bf16.mxu0 0
        %1634 = vmatpush2.bf16.msra.mxu0 0
        %1635 = vmatprep.subr.bf16.mxu0 0
        %1636 = vmatpush2.bf16.msra.mxu0 0
        %1637 = vmatprep.subr.bf16.mxu0 0
        %1638 = vmatpush2.bf16.msra.mxu0 0
        %1639 = vmatprep.mubr.bf16.mxu0 0
        %1640 = vmatmul.mubr.bf16.gmra.mxu0 %v800
        %v1641 = vpop.f32.mrf.mxu0
        %v1642 = vadd.f32 %v1430, %v1641
        %v1643 = vpop.f32.mrf.mxu0
        %v1644 = vadd.f32 %v1434, %v1643
        %v1645 = vpop.f32.mrf.mxu0
        %v1646 = vpop.f32.mrf.mxu0
        %1647 = vdwg.mxu0
        %1648 = vmatprep.subr.bf16.mxu0 %v1574
        %1649 = vmatpush1.bf16.msra.mxu0 %v1573
        %1650 = vmatprep.subr.bf16.mxu0 %v1570
        %1651 = vmatpush1.bf16.msra.mxu0 %v1569
        %1652 = vmatprep.subr.bf16.mxu0 %v1566
        %1653 = vmatpush1.bf16.msra.mxu0 %v1565
        %1654 = vmatprep.subr.bf16.mxu0 %v1562
        %1655 = vmatpush1.bf16.msra.mxu0 %v1561
        %1656 = vmatprep.subr.bf16.mxu0 %v1558
        %1657 = vmatpush1.bf16.msra.mxu0 %v1557
        %1658 = vmatprep.subr.bf16.mxu0 %v1554
        %1659 = vmatpush1.bf16.msra.mxu0 %v1553
        %1660 = vmatprep.subr.bf16.mxu0 %v1550
        %1661 = vmatpush1.bf16.msra.mxu0 %v1549
        %1662 = vmatprep.subr.bf16.mxu0 %v1546
        %1663 = vmatpush1.bf16.msra.mxu0 %v1545
        %1664 = vmatprep.subr.bf16.mxu0 0
        %1665 = vmatpush2.bf16.msra.mxu0 0
        %1666 = vmatprep.subr.bf16.mxu0 0
        %1667 = vmatpush2.bf16.msra.mxu0 0
        %1668 = vmatprep.subr.bf16.mxu0 0
        %1669 = vmatpush2.bf16.msra.mxu0 0
        %1670 = vmatprep.subr.bf16.mxu0 0
        %1671 = vmatpush2.bf16.msra.mxu0 0
        %1672 = vmatprep.subr.bf16.mxu0 0
        %1673 = vmatpush2.bf16.msra.mxu0 0
        %1674 = vmatprep.subr.bf16.mxu0 0
        %1675 = vmatpush2.bf16.msra.mxu0 0
        %1676 = vmatprep.subr.bf16.mxu0 0
        %1677 = vmatpush2.bf16.msra.mxu0 0
        %1678 = vmatprep.subr.bf16.mxu0 0
        %1679 = vmatpush2.bf16.msra.mxu0 0
        %1680 = vmatprep.mubr.bf16.mxu0 0
        %1681 = vmatmul.mubr.bf16.gmra.mxu0 %v800
        %v1682 = vpop.f32.mrf.mxu0
        %v1683 = vadd.f32 %v1438, %v1682
        %v1684 = vpop.f32.mrf.mxu0
        %v1685 = vadd.f32 %v1442, %v1684
        %v1686 = vpop.f32.mrf.mxu0
        %v1687 = vpop.f32.mrf.mxu0
        %1688 = vdwg.mxu0
        %v1689 = vmul.f32 %v1050, 0.35355338
        %v1690 = vmul.f32 %v1052, 0.35355338
        %v1691 = vmul.f32 %v1091, 0.35355338
        %v1692 = vmul.f32 %v1093, 0.35355338
        %v1693 = vpack.c.bf16 %v1689, %v1689
        %v1694 = vpack.c.bf16 %v1690, %v1690
        %v1695 = vpack.c.bf16 %v1691, %v1691
        %v1696 = vpack.c.bf16 %v1692, %v1692
        %v1697 = vpack.c.bf16 %v1346, %v1346
        %v1698 = vpack.c.bf16 %v1348, %v1348
        %v1699 = vpack.c.bf16 %v1387, %v1387
        %v1700 = vpack.c.bf16 %v1389, %v1389
        %v1701 = vpack.c.bf16 %v1642, %v1642
        %v1702 = vpack.c.bf16 %v1644, %v1644
        %v1703 = vpack.c.bf16 %v1683, %v1683
        %v1704 = vpack.c.bf16 %v1685, %v1685
        %v1705 = vsub.f32 %v793, 1.0
        %v1706 = vmul.f32 %v1705, 1e+30
        %v1708 = vlaneseq
        %v1709 = vshrl.u32 %v1708, 7
        %v1710 = vsub.s32 0, %v1709
        %v1711 = vrot.slane %v1706, %v1710
        %1713 = vmatprep.subr.bf16.mxu0 0
        %1714 = vmatpush1.bf16.xpose.msra.mxu0 0
        %1715 = vmatprep.subr.bf16.mxu0 0
        %1716 = vmatpush1.bf16.xpose.msra.mxu0 0
        %1717 = vmatprep.subr.bf16.mxu0 0
        %1718 = vmatpush1.bf16.xpose.msra.mxu0 0
        %1719 = vmatprep.subr.bf16.mxu0 0
        %1720 = vmatpush1.bf16.xpose.msra.mxu0 0
        %1721 = vmatprep.subr.bf16.mxu0 0
        %1722 = vmatpush1.bf16.xpose.msra.mxu0 0
        %1723 = vmatprep.subr.bf16.mxu0 0
        %1724 = vmatpush1.bf16.xpose.msra.mxu0 0
        %1725 = vmatprep.subr.bf16.mxu0 0
        %1726 = vmatpush1.bf16.xpose.msra.mxu0 0
        %1727 = vmatprep.subr.bf16.mxu0 0
        %1728 = vmatpush1.bf16.xpose.msra.mxu0 %v1697
        %1729 = vmatprep.subr.bf16.mxu0 0
        %1730 = vmatpush2.bf16.xpose.msra.mxu0 0
        %1731 = vmatprep.subr.bf16.mxu0 0
        %1732 = vmatpush2.bf16.xpose.msra.mxu0 0
        %1733 = vmatprep.subr.bf16.mxu0 0
        %1734 = vmatpush2.bf16.xpose.msra.mxu0 0
        %1735 = vmatprep.subr.bf16.mxu0 0
        %1736 = vmatpush2.bf16.xpose.msra.mxu0 0
        %1737 = vmatprep.subr.bf16.mxu0 0
        %1738 = vmatpush2.bf16.xpose.msra.mxu0 0
        %1739 = vmatprep.subr.bf16.mxu0 0
        %1740 = vmatpush2.bf16.xpose.msra.mxu0 0
        %1741 = vmatprep.subr.bf16.mxu0 0
        %1742 = vmatpush2.bf16.xpose.msra.mxu0 0
        %1743 = vmatprep.subr.bf16.mxu0 0
        %1744 = vmatpush2.bf16.xpose.msra.mxu0 0
        %1745 = vmatprep.mubr.bf16.mxu0 0
        %1746 = vmatmul.mubr.bf16.gmra.mxu0 %v1693
        %v1747 = vpop.f32.mrf.mxu0
        %v1748 = vadd.f32 %v1711, %v1747
        %v1749 = vpop.f32.mrf.mxu0
        %v1750 = vpop.f32.mrf.mxu0
        %v1751 = vpop.f32.mrf.mxu0
        %1752 = vdwg.mxu0
        %vm1753 = vcmask 64512
        %v1754 = vsel %vm1753, %v1748, -inf
        %1755 = vmax.xlane.f32.xlu0 %v1754
        %v1756 = vpop.xlane.xlu0 %1755
        %v1757 = vsub.f32 %v1748, %v1756
        %v1758 = vmul.f32 %v1757, 1.442695
        %v1759 = vpow.pop %v1758
        %v1760 = vsel %vm1753, %v1759, 0.0
        %1761 = vadd.xlane.f32.xlu0 %v1760
        %v1762 = vpop.xlane.xlu0 %1761
        %v1763 = vrcp.pop %v1762
        %v1764 = vmul.f32 %v1759, %v1763
        %v1765 = vpack.c.bf16 %v1764, %v1764
        %v1767 = vsel %vm1753, %v1765, 0
        %vm1769 = vcmask 1043456
        %v1771 = vsel %vm1769, %v1701, 0
        %1773 = vmatprep.subr.bf16.mxu0 0
        %1774 = vmatpush1.bf16.msra.mxu0 0
        %1775 = vmatprep.subr.bf16.mxu0 0
        %1776 = vmatpush1.bf16.msra.mxu0 0
        %1777 = vmatprep.subr.bf16.mxu0 0
        %1778 = vmatpush1.bf16.msra.mxu0 0
        %1779 = vmatprep.subr.bf16.mxu0 0
        %1780 = vmatpush1.bf16.msra.mxu0 0
        %1781 = vmatprep.subr.bf16.mxu0 0
        %1782 = vmatpush1.bf16.msra.mxu0 0
        %1783 = vmatprep.subr.bf16.mxu0 0
        %1784 = vmatpush1.bf16.msra.mxu0 0
        %1785 = vmatprep.subr.bf16.mxu0 0
        %1786 = vmatpush1.bf16.msra.mxu0 0
        %1787 = vmatprep.subr.bf16.mxu0 0
        %1788 = vmatpush1.bf16.msra.mxu0 %v1771
        %1789 = vmatprep.subr.bf16.mxu0 0
        %1790 = vmatpush2.bf16.msra.mxu0 0
        %1791 = vmatprep.subr.bf16.mxu0 0
        %1792 = vmatpush2.bf16.msra.mxu0 0
        %1793 = vmatprep.subr.bf16.mxu0 0
        %1794 = vmatpush2.bf16.msra.mxu0 0
        %1795 = vmatprep.subr.bf16.mxu0 0
        %1796 = vmatpush2.bf16.msra.mxu0 0
        %1797 = vmatprep.subr.bf16.mxu0 0
        %1798 = vmatpush2.bf16.msra.mxu0 0
        %1799 = vmatprep.subr.bf16.mxu0 0
        %1800 = vmatpush2.bf16.msra.mxu0 0
        %1801 = vmatprep.subr.bf16.mxu0 0
        %1802 = vmatpush2.bf16.msra.mxu0 0
        %1803 = vmatprep.subr.bf16.mxu0 0
        %1804 = vmatpush2.bf16.msra.mxu0 0
        %1805 = vmatprep.mubr.bf16.mxu0 0
        %1806 = vmatmul.mubr.bf16.gmra.mxu0 %v1767
        %v1807 = vpop.f32.mrf.mxu0
        %v1808 = vadd.f32 0.0, %v1807
        %v1809 = vpop.f32.mrf.mxu0
        %v1810 = vpop.f32.mrf.mxu0
        %v1811 = vpop.f32.mrf.mxu0
        %1812 = vdwg.mxu0
        %v1813 = vpack.c.bf16 %v1808, %v1808
        %v1814 = vld [vmem:[#allocation13] sm:$0xf]
        %v1815 = vld [vmem:[#allocation13 + $0x4] sm:$0xf]
        %v1816 = vld [vmem:[#allocation13 + $0x8] sm:$0xf]
        %v1817 = vld [vmem:[#allocation13 + $0xc] sm:$0xf]
        %v1818 = vld [vmem:[#allocation13 + $0x10] sm:$0xf]
        %v1819 = vld [vmem:[#allocation13 + $0x14] sm:$0xf]
        %v1820 = vld [vmem:[#allocation13 + $0x18] sm:$0xf]
        %v1821 = vld [vmem:[#allocation13 + $0x1c] sm:$0xf]
        %v1822 = vld [vmem:[#allocation13 + $0x20] sm:$0xf]
        %v1823 = vld [vmem:[#allocation13 + $0x24] sm:$0xf]
        %v1824 = vld [vmem:[#allocation13 + $0x28] sm:$0xf]
        %v1825 = vld [vmem:[#allocation13 + $0x2c] sm:$0xf]
        %v1826 = vld [vmem:[#allocation13 + $0x30] sm:$0xf]
        %v1827 = vld [vmem:[#allocation13 + $0x34] sm:$0xf]
        %v1828 = vld [vmem:[#allocation13 + $0x38] sm:$0xf]
        %v1829 = vld [vmem:[#allocation13 + $0x3c] sm:$0xf]
        %1830 = vmatprep.subr.bf16.mxu0 0
        %1831 = vmatpush1.bf16.xpose.msra.mxu0 0
        %1832 = vmatprep.subr.bf16.mxu0 0
        %1833 = vmatpush1.bf16.xpose.msra.mxu0 0
        %1834 = vmatprep.subr.bf16.mxu0 0
        %1835 = vmatpush1.bf16.xpose.msra.mxu0 0
        %1836 = vmatprep.subr.bf16.mxu0 0
        %1837 = vmatpush1.bf16.xpose.msra.mxu0 0
        %1838 = vmatprep.subr.bf16.mxu0 0
        %1839 = vmatpush1.bf16.xpose.msra.mxu0 0
        %1840 = vmatprep.subr.bf16.mxu0 0
        %1841 = vmatpush1.bf16.xpose.msra.mxu0 0
        %1842 = vmatprep.subr.bf16.mxu0 0
        %1843 = vmatpush1.bf16.xpose.msra.mxu0 0
        %1844 = vmatprep.subr.bf16.mxu0 0
        %1845 = vmatpush1.bf16.xpose.msra.mxu0 %v1698
        %1846 = vmatprep.subr.bf16.mxu0 0
        %1847 = vmatpush2.bf16.xpose.msra.mxu0 0
        %1848 = vmatprep.subr.bf16.mxu0 0
        %1849 = vmatpush2.bf16.xpose.msra.mxu0 0
        %1850 = vmatprep.subr.bf16.mxu0 0
        %1851 = vmatpush2.bf16.xpose.msra.mxu0 0
        %1852 = vmatprep.subr.bf16.mxu0 0
        %1853 = vmatpush2.bf16.xpose.msra.mxu0 0
        %1854 = vmatprep.subr.bf16.mxu0 0
        %1855 = vmatpush2.bf16.xpose.msra.mxu0 0
        %1856 = vmatprep.subr.bf16.mxu0 0
        %1857 = vmatpush2.bf16.xpose.msra.mxu0 0
        %1858 = vmatprep.subr.bf16.mxu0 0
        %1859 = vmatpush2.bf16.xpose.msra.mxu0 0
        %1860 = vmatprep.subr.bf16.mxu0 0
        %1861 = vmatpush2.bf16.xpose.msra.mxu0 0
        %1862 = vmatprep.mubr.bf16.mxu0 0
        %1863 = vmatmul.mubr.bf16.gmra.mxu0 %v1694
        %v1864 = vpop.f32.mrf.mxu0
        %v1865 = vadd.f32 %v1711, %v1864
        %v1866 = vpop.f32.mrf.mxu0
        %v1867 = vpop.f32.mrf.mxu0
        %v1868 = vpop.f32.mrf.mxu0
        %1869 = vdwg.mxu0
        %v1870 = vsel %vm1753, %v1865, -inf
        %1871 = vmax.xlane.f32.xlu0 %v1870
        %v1872 = vpop.xlane.xlu0 %1871
        %v1873 = vsub.f32 %v1865, %v1872
        %v1874 = vmul.f32 %v1873, 1.442695
        %v1875 = vpow.pop %v1874
        %v1876 = vsel %vm1753, %v1875, 0.0
        %1877 = vadd.xlane.f32.xlu0 %v1876
        %v1878 = vpop.xlane.xlu0 %1877
        %v1879 = vrcp.pop %v1878
        %v1880 = vmul.f32 %v1875, %v1879
        %v1881 = vpack.c.bf16 %v1880, %v1880
        %v1883 = vsel %vm1753, %v1881, 0
        %v1886 = vsel %vm1769, %v1702, 0
        %1888 = vmatprep.subr.bf16.mxu0 0
        %1889 = vmatpush1.bf16.msra.mxu0 0
        %1890 = vmatprep.subr.bf16.mxu0 0
        %1891 = vmatpush1.bf16.msra.mxu0 0
        %1892 = vmatprep.subr.bf16.mxu0 0
        %1893 = vmatpush1.bf16.msra.mxu0 0
        %1894 = vmatprep.subr.bf16.mxu0 0
        %1895 = vmatpush1.bf16.msra.mxu0 0
        %1896 = vmatprep.subr.bf16.mxu0 0
        %1897 = vmatpush1.bf16.msra.mxu0 0
        %1898 = vmatprep.subr.bf16.mxu0 0
        %1899 = vmatpush1.bf16.msra.mxu0 0
        %1900 = vmatprep.subr.bf16.mxu0 0
        %1901 = vmatpush1.bf16.msra.mxu0 0
        %1902 = vmatprep.subr.bf16.mxu0 0
        %1903 = vmatpush1.bf16.msra.mxu0 %v1886
        %1904 = vmatprep.subr.bf16.mxu0 0
        %1905 = vmatpush2.bf16.msra.mxu0 0
        %1906 = vmatprep.subr.bf16.mxu0 0
        %1907 = vmatpush2.bf16.msra.mxu0 0
        %1908 = vmatprep.subr.bf16.mxu0 0
        %1909 = vmatpush2.bf16.msra.mxu0 0
        %1910 = vmatprep.subr.bf16.mxu0 0
        %1911 = vmatpush2.bf16.msra.mxu0 0
        %1912 = vmatprep.subr.bf16.mxu0 0
        %1913 = vmatpush2.bf16.msra.mxu0 0
        %1914 = vmatprep.subr.bf16.mxu0 0
        %1915 = vmatpush2.bf16.msra.mxu0 0
        %1916 = vmatprep.subr.bf16.mxu0 0
        %1917 = vmatpush2.bf16.msra.mxu0 0
        %1918 = vmatprep.subr.bf16.mxu0 0
        %1919 = vmatpush2.bf16.msra.mxu0 0
        %1920 = vmatprep.mubr.bf16.mxu0 0
        %1921 = vmatmul.mubr.bf16.gmra.mxu0 %v1883
        %v1922 = vpop.f32.mrf.mxu0
        %v1923 = vadd.f32 0.0, %v1922
        %v1924 = vpop.f32.mrf.mxu0
        %v1925 = vpop.f32.mrf.mxu0
        %v1926 = vpop.f32.mrf.mxu0
        %1927 = vdwg.mxu0
        %v1928 = vpack.c.bf16 %v1923, %v1923
        %v1929 = vld [vmem:[#allocation13 + $0x40] sm:$0xf]
        %v1930 = vld [vmem:[#allocation13 + $0x44] sm:$0xf]
        %v1931 = vld [vmem:[#allocation13 + $0x48] sm:$0xf]
        %v1932 = vld [vmem:[#allocation13 + $0x4c] sm:$0xf]
        %v1933 = vld [vmem:[#allocation13 + $0x50] sm:$0xf]
        %v1934 = vld [vmem:[#allocation13 + $0x54] sm:$0xf]
        %v1935 = vld [vmem:[#allocation13 + $0x58] sm:$0xf]
        %v1936 = vld [vmem:[#allocation13 + $0x5c] sm:$0xf]
        %v1937 = vld [vmem:[#allocation13 + $0x60] sm:$0xf]
        %v1938 = vld [vmem:[#allocation13 + $0x64] sm:$0xf]
        %v1939 = vld [vmem:[#allocation13 + $0x68] sm:$0xf]
        %v1940 = vld [vmem:[#allocation13 + $0x6c] sm:$0xf]
        %v1941 = vld [vmem:[#allocation13 + $0x70] sm:$0xf]
        %v1942 = vld [vmem:[#allocation13 + $0x74] sm:$0xf]
        %v1943 = vld [vmem:[#allocation13 + $0x78] sm:$0xf]
        %v1944 = vld [vmem:[#allocation13 + $0x7c] sm:$0xf]
        %v1961 = vunpack.c.l.b16 %v1929
        %v1962 = vunpack.c.l.b16 %v1930
        %v1963 = vunpack.c.l.b16 %v1931
        %v1964 = vunpack.c.l.b16 %v1932
        %v1965 = vunpack.c.l.b16 %v1933
        %v1966 = vunpack.c.l.b16 %v1934
        %v1967 = vunpack.c.l.b16 %v1935
        %v1968 = vunpack.c.l.b16 %v1936
        %v1969 = vunpack.c.l.b16 %v1937
        %v1970 = vunpack.c.l.b16 %v1938
        %v1971 = vunpack.c.l.b16 %v1939
        %v1972 = vunpack.c.l.b16 %v1940
        %v1973 = vunpack.c.l.b16 %v1941
        %v1974 = vunpack.c.l.b16 %v1942
        %v1975 = vunpack.c.l.b16 %v1943
        %v1976 = vunpack.c.l.b16 %v1944
        %v1977 = vpack.c.b16 %v1962, %v1961
        %v1978 = vpack.c.b16 %v1964, %v1963
        %v1979 = vpack.c.b16 %v1966, %v1965
        %v1980 = vpack.c.b16 %v1968, %v1967
        %v1981 = vpack.c.b16 %v1970, %v1969
        %v1982 = vpack.c.b16 %v1972, %v1971
        %v1983 = vpack.c.b16 %v1974, %v1973
        %v1984 = vpack.c.b16 %v1976, %v1975
        %1993 = vmatprep.subr.bf16.mxu0 0
        %1994 = vmatpush1.bf16.msra.mxu0 %v1984
        %1995 = vmatprep.subr.bf16.mxu0 0
        %1996 = vmatpush1.bf16.msra.mxu0 %v1983
        %1997 = vmatprep.subr.bf16.mxu0 0
        %1998 = vmatpush1.bf16.msra.mxu0 %v1982
        %1999 = vmatprep.subr.bf16.mxu0 0
        %2000 = vmatpush1.bf16.msra.mxu0 %v1981
        %2001 = vmatprep.subr.bf16.mxu0 0
        %2002 = vmatpush1.bf16.msra.mxu0 %v1980
        %2003 = vmatprep.subr.bf16.mxu0 0
        %2004 = vmatpush1.bf16.msra.mxu0 %v1979
        %2005 = vmatprep.subr.bf16.mxu0 0
        %2006 = vmatpush1.bf16.msra.mxu0 %v1978
        %2007 = vmatprep.subr.bf16.mxu0 0
        %2008 = vmatpush1.bf16.msra.mxu0 %v1977
        %2009 = vmatprep.subr.bf16.mxu0 0
        %2010 = vmatpush2.bf16.msra.mxu0 0
        %2011 = vmatprep.subr.bf16.mxu0 0
        %2012 = vmatpush2.bf16.msra.mxu0 0
        %2013 = vmatprep.subr.bf16.mxu0 0
        %2014 = vmatpush2.bf16.msra.mxu0 0
        %2015 = vmatprep.subr.bf16.mxu0 0
        %2016 = vmatpush2.bf16.msra.mxu0 0
        %2017 = vmatprep.subr.bf16.mxu0 0
        %2018 = vmatpush2.bf16.msra.mxu0 0
        %2019 = vmatprep.subr.bf16.mxu0 0
        %2020 = vmatpush2.bf16.msra.mxu0 0
        %2021 = vmatprep.subr.bf16.mxu0 0
        %2022 = vmatpush2.bf16.msra.mxu0 0
        %2023 = vmatprep.subr.bf16.mxu0 0
        %2024 = vmatpush2.bf16.msra.mxu0 0
        %2025 = vmatprep.mubr.bf16.mxu0 0
        %2026 = vmatmul.mubr.bf16.gmra.mxu0 %v1928
        %v2027 = vpop.f32.mrf.mxu0
        %v2028 = vadd.f32 0.0, %v2027
        %v2029 = vpop.f32.mrf.mxu0
        %v2030 = vpop.f32.mrf.mxu0
        %v2031 = vpop.f32.mrf.mxu0
        %2032 = vdwg.mxu0
        %v2049 = vunpack.c.l.b16 %v1814
        %v2050 = vunpack.c.l.b16 %v1815
        %v2051 = vunpack.c.l.b16 %v1816
        %v2052 = vunpack.c.l.b16 %v1817
        %v2053 = vunpack.c.l.b16 %v1818
        %v2054 = vunpack.c.l.b16 %v1819
        %v2055 = vunpack.c.l.b16 %v1820
        %v2056 = vunpack.c.l.b16 %v1821
        %v2057 = vunpack.c.l.b16 %v1822
        %v2058 = vunpack.c.l.b16 %v1823
        %v2059 = vunpack.c.l.b16 %v1824
        %v2060 = vunpack.c.l.b16 %v1825
        %v2061 = vunpack.c.l.b16 %v1826
        %v2062 = vunpack.c.l.b16 %v1827
        %v2063 = vunpack.c.l.b16 %v1828
        %v2064 = vunpack.c.l.b16 %v1829
        %v2065 = vpack.c.b16 %v2050, %v2049
        %v2066 = vpack.c.b16 %v2052, %v2051
        %v2067 = vpack.c.b16 %v2054, %v2053
        %v2068 = vpack.c.b16 %v2056, %v2055
        %v2069 = vpack.c.b16 %v2058, %v2057
        %v2070 = vpack.c.b16 %v2060, %v2059
        %v2071 = vpack.c.b16 %v2062, %v2061
        %v2072 = vpack.c.b16 %v2064, %v2063
        %2081 = vmatprep.subr.bf16.mxu0 0
        %2082 = vmatpush1.bf16.msra.mxu0 %v2072
        %2083 = vmatprep.subr.bf16.mxu0 0
        %2084 = vmatpush1.bf16.msra.mxu0 %v2071
        %2085 = vmatprep.subr.bf16.mxu0 0
        %2086 = vmatpush1.bf16.msra.mxu0 %v2070
        %2087 = vmatprep.subr.bf16.mxu0 0
        %2088 = vmatpush1.bf16.msra.mxu0 %v2069
        %2089 = vmatprep.subr.bf16.mxu0 0
        %2090 = vmatpush1.bf16.msra.mxu0 %v2068
        %2091 = vmatprep.subr.bf16.mxu0 0
        %2092 = vmatpush1.bf16.msra.mxu0 %v2067
        %2093 = vmatprep.subr.bf16.mxu0 0
        %2094 = vmatpush1.bf16.msra.mxu0 %v2066
        %2095 = vmatprep.subr.bf16.mxu0 0
        %2096 = vmatpush1.bf16.msra.mxu0 %v2065
        %2097 = vmatprep.subr.bf16.mxu0 0
        %2098 = vmatpush2.bf16.msra.mxu0 0
        %2099 = vmatprep.subr.bf16.mxu0 0
        %2100 = vmatpush2.bf16.msra.mxu0 0
        %2101 = vmatprep.subr.bf16.mxu0 0
        %2102 = vmatpush2.bf16.msra.mxu0 0
        %2103 = vmatprep.subr.bf16.mxu0 0
        %2104 = vmatpush2.bf16.msra.mxu0 0
        %2105 = vmatprep.subr.bf16.mxu0 0
        %2106 = vmatpush2.bf16.msra.mxu0 0
        %2107 = vmatprep.subr.bf16.mxu0 0
        %2108 = vmatpush2.bf16.msra.mxu0 0
        %2109 = vmatprep.subr.bf16.mxu0 0
        %2110 = vmatpush2.bf16.msra.mxu0 0
        %2111 = vmatprep.subr.bf16.mxu0 0
        %2112 = vmatpush2.bf16.msra.mxu0 0
        %2113 = vmatprep.mubr.bf16.mxu0 0
        %2114 = vmatmul.mubr.bf16.gmra.mxu0 %v1813
        %v2115 = vpop.f32.mrf.mxu0
        %v2116 = vadd.f32 %v2028, %v2115
        %v2117 = vpop.f32.mrf.mxu0
        %v2118 = vpop.f32.mrf.mxu0
        %v2119 = vpop.f32.mrf.mxu0
        %2120 = vdwg.mxu0
        %2121 = vmatprep.subr.bf16.mxu0 0
        %2122 = vmatpush1.bf16.xpose.msra.mxu0 0
        %2123 = vmatprep.subr.bf16.mxu0 0
        %2124 = vmatpush1.bf16.xpose.msra.mxu0 0
        %2125 = vmatprep.subr.bf16.mxu0 0
        %2126 = vmatpush1.bf16.xpose.msra.mxu0 0
        %2127 = vmatprep.subr.bf16.mxu0 0
        %2128 = vmatpush1.bf16.xpose.msra.mxu0 0
        %2129 = vmatprep.subr.bf16.mxu0 0
        %2130 = vmatpush1.bf16.xpose.msra.mxu0 0
        %2131 = vmatprep.subr.bf16.mxu0 0
        %2132 = vmatpush1.bf16.xpose.msra.mxu0 0
        %2133 = vmatprep.subr.bf16.mxu0 0
        %2134 = vmatpush1.bf16.xpose.msra.mxu0 0
        %2135 = vmatprep.subr.bf16.mxu0 0
        %2136 = vmatpush1.bf16.xpose.msra.mxu0 %v1699
        %2137 = vmatprep.subr.bf16.mxu0 0
        %2138 = vmatpush2.bf16.xpose.msra.mxu0 0
        %2139 = vmatprep.subr.bf16.mxu0 0
        %2140 = vmatpush2.bf16.xpose.msra.mxu0 0
        %2141 = vmatprep.subr.bf16.mxu0 0
        %2142 = vmatpush2.bf16.xpose.msra.mxu0 0
        %2143 = vmatprep.subr.bf16.mxu0 0
        %2144 = vmatpush2.bf16.xpose.msra.mxu0 0
        %2145 = vmatprep.subr.bf16.mxu0 0
        %2146 = vmatpush2.bf16.xpose.msra.mxu0 0
        %2147 = vmatprep.subr.bf16.mxu0 0
        %2148 = vmatpush2.bf16.xpose.msra.mxu0 0
        %2149 = vmatprep.subr.bf16.mxu0 0
        %2150 = vmatpush2.bf16.xpose.msra.mxu0 0
        %2151 = vmatprep.subr.bf16.mxu0 0
        %2152 = vmatpush2.bf16.xpose.msra.mxu0 0
        %2153 = vmatprep.mubr.bf16.mxu0 0
        %2154 = vmatmul.mubr.bf16.gmra.mxu0 %v1695
        %v2155 = vpop.f32.mrf.mxu0
        %v2156 = vadd.f32 %v1711, %v2155
        %v2157 = vpop.f32.mrf.mxu0
        %v2158 = vpop.f32.mrf.mxu0
        %v2159 = vpop.f32.mrf.mxu0
        %2160 = vdwg.mxu0
        %v2161 = vsel %vm1753, %v2156, -inf
        %2162 = vmax.xlane.f32.xlu0 %v2161
        %v2163 = vpop.xlane.xlu0 %2162
        %v2164 = vsub.f32 %v2156, %v2163
        %v2165 = vmul.f32 %v2164, 1.442695
        %v2166 = vpow.pop %v2165
        %v2167 = vsel %vm1753, %v2166, 0.0
        %2168 = vadd.xlane.f32.xlu0 %v2167
        %v2169 = vpop.xlane.xlu0 %2168
        %v2170 = vrcp.pop %v2169
        %v2171 = vmul.f32 %v2166, %v2170
        %v2172 = vpack.c.bf16 %v2171, %v2171
        %v2174 = vsel %vm1753, %v2172, 0
        %v2177 = vsel %vm1769, %v1703, 0
        %2179 = vmatprep.subr.bf16.mxu0 0
        %2180 = vmatpush1.bf16.msra.mxu0 0
        %2181 = vmatprep.subr.bf16.mxu0 0
        %2182 = vmatpush1.bf16.msra.mxu0 0
        %2183 = vmatprep.subr.bf16.mxu0 0
        %2184 = vmatpush1.bf16.msra.mxu0 0
        %2185 = vmatprep.subr.bf16.mxu0 0
        %2186 = vmatpush1.bf16.msra.mxu0 0
        %2187 = vmatprep.subr.bf16.mxu0 0
        %2188 = vmatpush1.bf16.msra.mxu0 0
        %2189 = vmatprep.subr.bf16.mxu0 0
        %2190 = vmatpush1.bf16.msra.mxu0 0
        %2191 = vmatprep.subr.bf16.mxu0 0
        %2192 = vmatpush1.bf16.msra.mxu0 0
        %2193 = vmatprep.subr.bf16.mxu0 0
        %2194 = vmatpush1.bf16.msra.mxu0 %v2177
        %2195 = vmatprep.subr.bf16.mxu0 0
        %2196 = vmatpush2.bf16.msra.mxu0 0
        %2197 = vmatprep.subr.bf16.mxu0 0
        %2198 = vmatpush2.bf16.msra.mxu0 0
        %2199 = vmatprep.subr.bf16.mxu0 0
        %2200 = vmatpush2.bf16.msra.mxu0 0
        %2201 = vmatprep.subr.bf16.mxu0 0
        %2202 = vmatpush2.bf16.msra.mxu0 0
        %2203 = vmatprep.subr.bf16.mxu0 0
        %2204 = vmatpush2.bf16.msra.mxu0 0
        %2205 = vmatprep.subr.bf16.mxu0 0
        %2206 = vmatpush2.bf16.msra.mxu0 0
        %2207 = vmatprep.subr.bf16.mxu0 0
        %2208 = vmatpush2.bf16.msra.mxu0 0
        %2209 = vmatprep.subr.bf16.mxu0 0
        %2210 = vmatpush2.bf16.msra.mxu0 0
        %2211 = vmatprep.mubr.bf16.mxu0 0
        %2212 = vmatmul.mubr.bf16.gmra.mxu0 %v2174
        %v2213 = vpop.f32.mrf.mxu0
        %v2214 = vadd.f32 0.0, %v2213
        %v2215 = vpop.f32.mrf.mxu0
        %v2216 = vpop.f32.mrf.mxu0
        %v2217 = vpop.f32.mrf.mxu0
        %2218 = vdwg.mxu0
        %v2219 = vpack.c.bf16 %v2214, %v2214
        %v2220 = vld [vmem:[#allocation13 + $0x80] sm:$0xf]
        %v2221 = vld [vmem:[#allocation13 + $0x84] sm:$0xf]
        %v2222 = vld [vmem:[#allocation13 + $0x88] sm:$0xf]
        %v2223 = vld [vmem:[#allocation13 + $0x8c] sm:$0xf]
        %v2224 = vld [vmem:[#allocation13 + $0x90] sm:$0xf]
        %v2225 = vld [vmem:[#allocation13 + $0x94] sm:$0xf]
        %v2226 = vld [vmem:[#allocation13 + $0x98] sm:$0xf]
        %v2227 = vld [vmem:[#allocation13 + $0x9c] sm:$0xf]
        %v2228 = vld [vmem:[#allocation13 + $0xa0] sm:$0xf]
        %v2229 = vld [vmem:[#allocation13 + $0xa4] sm:$0xf]
        %v2230 = vld [vmem:[#allocation13 + $0xa8] sm:$0xf]
        %v2231 = vld [vmem:[#allocation13 + $0xac] sm:$0xf]
        %v2232 = vld [vmem:[#allocation13 + $0xb0] sm:$0xf]
        %v2233 = vld [vmem:[#allocation13 + $0xb4] sm:$0xf]
        %v2234 = vld [vmem:[#allocation13 + $0xb8] sm:$0xf]
        %v2235 = vld [vmem:[#allocation13 + $0xbc] sm:$0xf]
        %v2252 = vunpack.c.l.b16 %v2220
        %v2253 = vunpack.c.l.b16 %v2221
        %v2254 = vunpack.c.l.b16 %v2222
        %v2255 = vunpack.c.l.b16 %v2223
        %v2256 = vunpack.c.l.b16 %v2224
        %v2257 = vunpack.c.l.b16 %v2225
        %v2258 = vunpack.c.l.b16 %v2226
        %v2259 = vunpack.c.l.b16 %v2227
        %v2260 = vunpack.c.l.b16 %v2228
        %v2261 = vunpack.c.l.b16 %v2229
        %v2262 = vunpack.c.l.b16 %v2230
        %v2263 = vunpack.c.l.b16 %v2231
        %v2264 = vunpack.c.l.b16 %v2232
        %v2265 = vunpack.c.l.b16 %v2233
        %v2266 = vunpack.c.l.b16 %v2234
        %v2267 = vunpack.c.l.b16 %v2235
        %v2268 = vpack.c.b16 %v2253, %v2252
        %v2269 = vpack.c.b16 %v2255, %v2254
        %v2270 = vpack.c.b16 %v2257, %v2256
        %v2271 = vpack.c.b16 %v2259, %v2258
        %v2272 = vpack.c.b16 %v2261, %v2260
        %v2273 = vpack.c.b16 %v2263, %v2262
        %v2274 = vpack.c.b16 %v2265, %v2264
        %v2275 = vpack.c.b16 %v2267, %v2266
        %2284 = vmatprep.subr.bf16.mxu0 0
        %2285 = vmatpush1.bf16.msra.mxu0 %v2275
        %2286 = vmatprep.subr.bf16.mxu0 0
        %2287 = vmatpush1.bf16.msra.mxu0 %v2274
        %2288 = vmatprep.subr.bf16.mxu0 0
        %2289 = vmatpush1.bf16.msra.mxu0 %v2273
        %2290 = vmatprep.subr.bf16.mxu0 0
        %2291 = vmatpush1.bf16.msra.mxu0 %v2272
        %2292 = vmatprep.subr.bf16.mxu0 0
        %2293 = vmatpush1.bf16.msra.mxu0 %v2271
        %2294 = vmatprep.subr.bf16.mxu0 0
        %2295 = vmatpush1.bf16.msra.mxu0 %v2270
        %2296 = vmatprep.subr.bf16.mxu0 0
        %2297 = vmatpush1.bf16.msra.mxu0 %v2269
        %2298 = vmatprep.subr.bf16.mxu0 0
        %2299 = vmatpush1.bf16.msra.mxu0 %v2268
        %2300 = vmatprep.subr.bf16.mxu0 0
        %2301 = vmatpush2.bf16.msra.mxu0 0
        %2302 = vmatprep.subr.bf16.mxu0 0
        %2303 = vmatpush2.bf16.msra.mxu0 0
        %2304 = vmatprep.subr.bf16.mxu0 0
        %2305 = vmatpush2.bf16.msra.mxu0 0
        %2306 = vmatprep.subr.bf16.mxu0 0
        %2307 = vmatpush2.bf16.msra.mxu0 0
        %2308 = vmatprep.subr.bf16.mxu0 0
        %2309 = vmatpush2.bf16.msra.mxu0 0
        %2310 = vmatprep.subr.bf16.mxu0 0
        %2311 = vmatpush2.bf16.msra.mxu0 0
        %2312 = vmatprep.subr.bf16.mxu0 0
        %2313 = vmatpush2.bf16.msra.mxu0 0
        %2314 = vmatprep.subr.bf16.mxu0 0
        %2315 = vmatpush2.bf16.msra.mxu0 0
        %2316 = vmatprep.mubr.bf16.mxu0 0
        %2317 = vmatmul.mubr.bf16.gmra.mxu0 %v2219
        %v2318 = vpop.f32.mrf.mxu0
        %v2319 = vadd.f32 0.0, %v2318
        %v2320 = vpop.f32.mrf.mxu0
        %v2321 = vpop.f32.mrf.mxu0
        %v2322 = vpop.f32.mrf.mxu0
        %2323 = vdwg.mxu0
        %v2324 = vadd.f32 %v2116, %v2319
        %2325 = vmatprep.subr.bf16.mxu0 0
        %2326 = vmatpush1.bf16.xpose.msra.mxu0 0
        %2327 = vmatprep.subr.bf16.mxu0 0
        %2328 = vmatpush1.bf16.xpose.msra.mxu0 0
        %2329 = vmatprep.subr.bf16.mxu0 0
        %2330 = vmatpush1.bf16.xpose.msra.mxu0 0
        %2331 = vmatprep.subr.bf16.mxu0 0
        %2332 = vmatpush1.bf16.xpose.msra.mxu0 0
        %2333 = vmatprep.subr.bf16.mxu0 0
        %2334 = vmatpush1.bf16.xpose.msra.mxu0 0
        %2335 = vmatprep.subr.bf16.mxu0 0
        %2336 = vmatpush1.bf16.xpose.msra.mxu0 0
        %2337 = vmatprep.subr.bf16.mxu0 0
        %2338 = vmatpush1.bf16.xpose.msra.mxu0 0
        %2339 = vmatprep.subr.bf16.mxu0 0
        %2340 = vmatpush1.bf16.xpose.msra.mxu0 %v1700
        %2341 = vmatprep.subr.bf16.mxu0 0
        %2342 = vmatpush2.bf16.xpose.msra.mxu0 0
        %2343 = vmatprep.subr.bf16.mxu0 0
        %2344 = vmatpush2.bf16.xpose.msra.mxu0 0
        %2345 = vmatprep.subr.bf16.mxu0 0
        %2346 = vmatpush2.bf16.xpose.msra.mxu0 0
        %2347 = vmatprep.subr.bf16.mxu0 0
        %2348 = vmatpush2.bf16.xpose.msra.mxu0 0
        %2349 = vmatprep.subr.bf16.mxu0 0
        %2350 = vmatpush2.bf16.xpose.msra.mxu0 0
        %2351 = vmatprep.subr.bf16.mxu0 0
        %2352 = vmatpush2.bf16.xpose.msra.mxu0 0
        %2353 = vmatprep.subr.bf16.mxu0 0
        %2354 = vmatpush2.bf16.xpose.msra.mxu0 0
        %2355 = vmatprep.subr.bf16.mxu0 0
        %2356 = vmatpush2.bf16.xpose.msra.mxu0 0
        %2357 = vmatprep.mubr.bf16.mxu0 0
        %2358 = vmatmul.mubr.bf16.gmra.mxu0 %v1696
        %v2359 = vpop.f32.mrf.mxu0
        %v2360 = vadd.f32 %v1711, %v2359
        %v2361 = vpop.f32.mrf.mxu0
        %v2362 = vpop.f32.mrf.mxu0
        %v2363 = vpop.f32.mrf.mxu0
        %2364 = vdwg.mxu0
        %v2365 = vsel %vm1753, %v2360, -inf
        %2366 = vmax.xlane.f32.xlu0 %v2365
        %v2367 = vpop.xlane.xlu0 %2366
        %v2368 = vsub.f32 %v2360, %v2367
        %v2369 = vmul.f32 %v2368, 1.442695
        %v2370 = vpow.pop %v2369
        %v2371 = vsel %vm1753, %v2370, 0.0
        %2372 = vadd.xlane.f32.xlu0 %v2371
        %v2373 = vpop.xlane.xlu0 %2372
        %v2374 = vrcp.pop %v2373
        %v2375 = vmul.f32 %v2370, %v2374
        %v2376 = vpack.c.bf16 %v2375, %v2375
        %v2378 = vsel %vm1753, %v2376, 0
        %v2381 = vsel %vm1769, %v1704, 0
        %2383 = vmatprep.subr.bf16.mxu0 0
        %2384 = vmatpush1.bf16.msra.mxu0 0
        %2385 = vmatprep.subr.bf16.mxu0 0
        %2386 = vmatpush1.bf16.msra.mxu0 0
        %2387 = vmatprep.subr.bf16.mxu0 0
        %2388 = vmatpush1.bf16.msra.mxu0 0
        %2389 = vmatprep.subr.bf16.mxu0 0
        %2390 = vmatpush1.bf16.msra.mxu0 0
        %2391 = vmatprep.subr.bf16.mxu0 0
        %2392 = vmatpush1.bf16.msra.mxu0 0
        %2393 = vmatprep.subr.bf16.mxu0 0
        %2394 = vmatpush1.bf16.msra.mxu0 0
        %2395 = vmatprep.subr.bf16.mxu0 0
        %2396 = vmatpush1.bf16.msra.mxu0 0
        %2397 = vmatprep.subr.bf16.mxu0 0
        %2398 = vmatpush1.bf16.msra.mxu0 %v2381
        %2399 = vmatprep.subr.bf16.mxu0 0
        %2400 = vmatpush2.bf16.msra.mxu0 0
        %2401 = vmatprep.subr.bf16.mxu0 0
        %2402 = vmatpush2.bf16.msra.mxu0 0
        %2403 = vmatprep.subr.bf16.mxu0 0
        %2404 = vmatpush2.bf16.msra.mxu0 0
        %2405 = vmatprep.subr.bf16.mxu0 0
        %2406 = vmatpush2.bf16.msra.mxu0 0
        %2407 = vmatprep.subr.bf16.mxu0 0
        %2408 = vmatpush2.bf16.msra.mxu0 0
        %2409 = vmatprep.subr.bf16.mxu0 0
        %2410 = vmatpush2.bf16.msra.mxu0 0
        %2411 = vmatprep.subr.bf16.mxu0 0
        %2412 = vmatpush2.bf16.msra.mxu0 0
        %2413 = vmatprep.subr.bf16.mxu0 0
        %2414 = vmatpush2.bf16.msra.mxu0 0
        %2415 = vmatprep.mubr.bf16.mxu0 0
        %2416 = vmatmul.mubr.bf16.gmra.mxu0 %v2378
        %v2417 = vpop.f32.mrf.mxu0
        %v2418 = vadd.f32 0.0, %v2417
        %v2419 = vpop.f32.mrf.mxu0
        %v2420 = vpop.f32.mrf.mxu0
        %v2421 = vpop.f32.mrf.mxu0
        %2422 = vdwg.mxu0
        %v2423 = vpack.c.bf16 %v2418, %v2418
        %v2424 = vld [vmem:[#allocation13 + $0xc0] sm:$0xf]
        %v2425 = vld [vmem:[#allocation13 + $0xc4] sm:$0xf]
        %v2426 = vld [vmem:[#allocation13 + $0xc8] sm:$0xf]
        %v2427 = vld [vmem:[#allocation13 + $0xcc] sm:$0xf]
        %v2428 = vld [vmem:[#allocation13 + $0xd0] sm:$0xf]
        %v2429 = vld [vmem:[#allocation13 + $0xd4] sm:$0xf]
        %v2430 = vld [vmem:[#allocation13 + $0xd8] sm:$0xf]
        %v2431 = vld [vmem:[#allocation13 + $0xdc] sm:$0xf]
        %v2432 = vld [vmem:[#allocation13 + $0xe0] sm:$0xf]
        %v2433 = vld [vmem:[#allocation13 + $0xe4] sm:$0xf]
        %v2434 = vld [vmem:[#allocation13 + $0xe8] sm:$0xf]
        %v2435 = vld [vmem:[#allocation13 + $0xec] sm:$0xf]
        %v2436 = vld [vmem:[#allocation13 + $0xf0] sm:$0xf]
        %v2437 = vld [vmem:[#allocation13 + $0xf4] sm:$0xf]
        %v2438 = vld [vmem:[#allocation13 + $0xf8] sm:$0xf]
        %v2439 = vld [vmem:[#allocation13 + $0xfc] sm:$0xf]
        %v2456 = vunpack.c.l.b16 %v2424
        %v2457 = vunpack.c.l.b16 %v2425
        %v2458 = vunpack.c.l.b16 %v2426
        %v2459 = vunpack.c.l.b16 %v2427
        %v2460 = vunpack.c.l.b16 %v2428
        %v2461 = vunpack.c.l.b16 %v2429
        %v2462 = vunpack.c.l.b16 %v2430
        %v2463 = vunpack.c.l.b16 %v2431
        %v2464 = vunpack.c.l.b16 %v2432
        %v2465 = vunpack.c.l.b16 %v2433
        %v2466 = vunpack.c.l.b16 %v2434
        %v2467 = vunpack.c.l.b16 %v2435
        %v2468 = vunpack.c.l.b16 %v2436
        %v2469 = vunpack.c.l.b16 %v2437
        %v2470 = vunpack.c.l.b16 %v2438
        %v2471 = vunpack.c.l.b16 %v2439
        %v2472 = vpack.c.b16 %v2457, %v2456
        %v2473 = vpack.c.b16 %v2459, %v2458
        %v2474 = vpack.c.b16 %v2461, %v2460
        %v2475 = vpack.c.b16 %v2463, %v2462
        %v2476 = vpack.c.b16 %v2465, %v2464
        %v2477 = vpack.c.b16 %v2467, %v2466
        %v2478 = vpack.c.b16 %v2469, %v2468
        %v2479 = vpack.c.b16 %v2471, %v2470
        %2488 = vmatprep.subr.bf16.mxu0 0
        %2489 = vmatpush1.bf16.msra.mxu0 %v2479
        %2490 = vmatprep.subr.bf16.mxu0 0
        %2491 = vmatpush1.bf16.msra.mxu0 %v2478
        %2492 = vmatprep.subr.bf16.mxu0 0
        %2493 = vmatpush1.bf16.msra.mxu0 %v2477
        %2494 = vmatprep.subr.bf16.mxu0 0
        %2495 = vmatpush1.bf16.msra.mxu0 %v2476
        %2496 = vmatprep.subr.bf16.mxu0 0
        %2497 = vmatpush1.bf16.msra.mxu0 %v2475
        %2498 = vmatprep.subr.bf16.mxu0 0
        %2499 = vmatpush1.bf16.msra.mxu0 %v2474
        %2500 = vmatprep.subr.bf16.mxu0 0
        %2501 = vmatpush1.bf16.msra.mxu0 %v2473
        %2502 = vmatprep.subr.bf16.mxu0 0
        %2503 = vmatpush1.bf16.msra.mxu0 %v2472
        %2504 = vmatprep.subr.bf16.mxu0 0
        %2505 = vmatpush2.bf16.msra.mxu0 0
        %2506 = vmatprep.subr.bf16.mxu0 0
        %2507 = vmatpush2.bf16.msra.mxu0 0
        %2508 = vmatprep.subr.bf16.mxu0 0
        %2509 = vmatpush2.bf16.msra.mxu0 0
        %2510 = vmatprep.subr.bf16.mxu0 0
        %2511 = vmatpush2.bf16.msra.mxu0 0
        %2512 = vmatprep.subr.bf16.mxu0 0
        %2513 = vmatpush2.bf16.msra.mxu0 0
        %2514 = vmatprep.subr.bf16.mxu0 0
        %2515 = vmatpush2.bf16.msra.mxu0 0
        %2516 = vmatprep.subr.bf16.mxu0 0
        %2517 = vmatpush2.bf16.msra.mxu0 0
        %2518 = vmatprep.subr.bf16.mxu0 0
        %2519 = vmatpush2.bf16.msra.mxu0 0
        %2520 = vmatprep.mubr.bf16.mxu0 0
        %2521 = vmatmul.mubr.bf16.gmra.mxu0 %v2423
        %v2522 = vpop.f32.mrf.mxu0
        %v2523 = vadd.f32 0.0, %v2522
        %v2524 = vpop.f32.mrf.mxu0
        %v2525 = vpop.f32.mrf.mxu0
        %v2526 = vpop.f32.mrf.mxu0
        %2527 = vdwg.mxu0
        %v2528 = vadd.f32 %v2324, %v2523
        %v2529 = vld [vmem:[%s10] sm:$0x1]
        %v2531 = vlaneseq
        %v2532 = vshrl.u32 %v2531, 7
        %v2533 = vsub.s32 0, %v2532
        %v2534 = vrot.slane %v2529, %v2533
        %v2536 = vadd.f32 %v2528, %v2534
        %v2537 = vadd.f32 %v791, %v2536
        %v2538 = vld [vmem:[%s15] sm:$0x1]
        %v2539 = vld [vmem:[%s16] sm:$0x1]
        %2540 = vadd.xlane.f32.xlu0 %v2537
        %v2541 = vpop.xlane.xlu0 %2540
        %v2542 = vmul.f32 %v2541, 0.03125
        %v2543 = vsub.f32 %v2537, %v2542
        %v2544 = vmul.f32 %v2543, %v798
        %v2545 = vmul.f32 %v2544, %v2544
        %2546 = vadd.xlane.f32.xlu0 %v2545
        %v2547 = vpop.xlane.xlu0 %2546
        %v2548 = vmul.f32 %v2547, 0.03125
        %v2549 = vadd.f32 %v2548, 1e-05
        %v2550 = vrsqrt.pop %v2549
        %v2551 = vmul.f32 %v2544, %v2550
        %v2553 = vlaneseq
        %v2554 = vshrl.u32 %v2553, 7
        %v2555 = vsub.s32 0, %v2554
        %v2556 = vrot.slane %v2538, %v2555
        %v2558 = vmul.f32 %v2551, %v2556
        %v2560 = vlaneseq
        %v2561 = vshrl.u32 %v2560, 7
        %v2562 = vsub.s32 0, %v2561
        %v2563 = vrot.slane %v2539, %v2562
        %v2565 = vadd.f32 %v2558, %v2563
        %v2566 = vpack.c.bf16 %v2565, %v2565
        %v2567 = vld [vmem:[#allocation14] sm:$0xf]
        %v2568 = vld [vmem:[#allocation14 + $0x4] sm:$0xf]
        %v2569 = vld [vmem:[#allocation14 + $0x8] sm:$0xf]
        %v2570 = vld [vmem:[#allocation14 + $0xc] sm:$0xf]
        %v2571 = vld [vmem:[#allocation14 + $0x10] sm:$0xf]
        %v2572 = vld [vmem:[#allocation14 + $0x14] sm:$0xf]
        %v2573 = vld [vmem:[#allocation14 + $0x18] sm:$0xf]
        %v2574 = vld [vmem:[#allocation14 + $0x1c] sm:$0xf]
        %v2575 = vld [vmem:[#allocation14 + $0x20] sm:$0xf]
        %v2576 = vld [vmem:[#allocation14 + $0x24] sm:$0xf]
        %v2577 = vld [vmem:[#allocation14 + $0x28] sm:$0xf]
        %v2578 = vld [vmem:[#allocation14 + $0x2c] sm:$0xf]
        %v2579 = vld [vmem:[#allocation14 + $0x30] sm:$0xf]
        %v2580 = vld [vmem:[#allocation14 + $0x34] sm:$0xf]
        %v2581 = vld [vmem:[#allocation14 + $0x38] sm:$0xf]
        %v2582 = vld [vmem:[#allocation14 + $0x3c] sm:$0xf]
        %v2583 = vld [vmem:[%s12] sm:$0x1]
        %v2585 = vlaneseq
        %v2586 = vshrl.u32 %v2585, 7
        %v2587 = vsub.s32 0, %v2586
        %v2588 = vrot.slane %v2583, %v2587
        %v2606 = vunpack.c.l.b16 %v2567
        %v2607 = vunpack.c.l.b16 %v2568
        %v2608 = vunpack.c.l.b16 %v2569
        %v2609 = vunpack.c.l.b16 %v2570
        %v2610 = vunpack.c.l.b16 %v2571
        %v2611 = vunpack.c.l.b16 %v2572
        %v2612 = vunpack.c.l.b16 %v2573
        %v2613 = vunpack.c.l.b16 %v2574
        %v2614 = vunpack.c.l.b16 %v2575
        %v2615 = vunpack.c.l.b16 %v2576
        %v2616 = vunpack.c.l.b16 %v2577
        %v2617 = vunpack.c.l.b16 %v2578
        %v2618 = vunpack.c.l.b16 %v2579
        %v2619 = vunpack.c.l.b16 %v2580
        %v2620 = vunpack.c.l.b16 %v2581
        %v2621 = vunpack.c.l.b16 %v2582
        %v2622 = vpack.c.b16 %v2607, %v2606
        %v2623 = vpack.c.b16 %v2609, %v2608
        %v2624 = vpack.c.b16 %v2611, %v2610
        %v2625 = vpack.c.b16 %v2613, %v2612
        %v2626 = vpack.c.b16 %v2615, %v2614
        %v2627 = vpack.c.b16 %v2617, %v2616
        %v2628 = vpack.c.b16 %v2619, %v2618
        %v2629 = vpack.c.b16 %v2621, %v2620
        %2638 = vmatprep.subr.bf16.mxu0 0
        %2639 = vmatpush1.bf16.msra.mxu0 %v2629
        %2640 = vmatprep.subr.bf16.mxu0 0
        %2641 = vmatpush1.bf16.msra.mxu0 %v2628
        %2642 = vmatprep.subr.bf16.mxu0 0
        %2643 = vmatpush1.bf16.msra.mxu0 %v2627
        %2644 = vmatprep.subr.bf16.mxu0 0
        %2645 = vmatpush1.bf16.msra.mxu0 %v2626
        %2646 = vmatprep.subr.bf16.mxu0 0
        %2647 = vmatpush1.bf16.msra.mxu0 %v2625
        %2648 = vmatprep.subr.bf16.mxu0 0
        %2649 = vmatpush1.bf16.msra.mxu0 %v2624
        %2650 = vmatprep.subr.bf16.mxu0 0
        %2651 = vmatpush1.bf16.msra.mxu0 %v2623
        %2652 = vmatprep.subr.bf16.mxu0 0
        %2653 = vmatpush1.bf16.msra.mxu0 %v2622
        %2654 = vmatprep.subr.bf16.mxu0 0
        %2655 = vmatpush2.bf16.msra.mxu0 0
        %2656 = vmatprep.subr.bf16.mxu0 0
        %2657 = vmatpush2.bf16.msra.mxu0 0
        %2658 = vmatprep.subr.bf16.mxu0 0
        %2659 = vmatpush2.bf16.msra.mxu0 0
        %2660 = vmatprep.subr.bf16.mxu0 0
        %2661 = vmatpush2.bf16.msra.mxu0 0
        %2662 = vmatprep.subr.bf16.mxu0 0
        %2663 = vmatpush2.bf16.msra.mxu0 0
        %2664 = vmatprep.subr.bf16.mxu0 0
        %2665 = vmatpush2.bf16.msra.mxu0 0
        %2666 = vmatprep.subr.bf16.mxu0 0
        %2667 = vmatpush2.bf16.msra.mxu0 0
        %2668 = vmatprep.subr.bf16.mxu0 0
        %2669 = vmatpush2.bf16.msra.mxu0 0
        %2670 = vmatprep.mubr.bf16.mxu0 0
        %2671 = vmatmul.mubr.bf16.gmra.mxu0 %v2566
        %v2672 = vpop.f32.mrf.mxu0
        %v2673 = vadd.f32 %v2588, %v2672
        %v2674 = vpop.f32.mrf.mxu0
        %v2675 = vpop.f32.mrf.mxu0
        %v2676 = vpop.f32.mrf.mxu0
        %2677 = vdwg.mxu0
        %v2678 = vmax.f32 %v2673, 0.0
        %v2679 = vpack.c.bf16 %v2678, %v2678
        %v2680 = vld [vmem:[#allocation16] sm:$0xf]
        %v2681 = vld [vmem:[#allocation16 + $0x4] sm:$0xf]
        %v2682 = vld [vmem:[#allocation16 + $0x8] sm:$0xf]
        %v2683 = vld [vmem:[#allocation16 + $0xc] sm:$0xf]
        %v2684 = vld [vmem:[#allocation16 + $0x10] sm:$0xf]
        %v2685 = vld [vmem:[#allocation16 + $0x14] sm:$0xf]
        %v2686 = vld [vmem:[#allocation16 + $0x18] sm:$0xf]
        %v2687 = vld [vmem:[#allocation16 + $0x1c] sm:$0xf]
        %v2688 = vld [vmem:[#allocation16 + $0x20] sm:$0xf]
        %v2689 = vld [vmem:[#allocation16 + $0x24] sm:$0xf]
        %v2690 = vld [vmem:[#allocation16 + $0x28] sm:$0xf]
        %v2691 = vld [vmem:[#allocation16 + $0x2c] sm:$0xf]
        %v2692 = vld [vmem:[#allocation16 + $0x30] sm:$0xf]
        %v2693 = vld [vmem:[#allocation16 + $0x34] sm:$0xf]
        %v2694 = vld [vmem:[#allocation16 + $0x38] sm:$0xf]
        %v2695 = vld [vmem:[#allocation16 + $0x3c] sm:$0xf]
        %v2696 = vld [vmem:[%s14] sm:$0x1]
        %v2698 = vlaneseq
        %v2699 = vshrl.u32 %v2698, 7
        %v2700 = vsub.s32 0, %v2699
        %v2701 = vrot.slane %v2696, %v2700
        %v2719 = vunpack.c.l.b16 %v2680
        %v2720 = vunpack.c.l.b16 %v2681
        %v2721 = vunpack.c.l.b16 %v2682
        %v2722 = vunpack.c.l.b16 %v2683
        %v2723 = vunpack.c.l.b16 %v2684
        %v2724 = vunpack.c.l.b16 %v2685
        %v2725 = vunpack.c.l.b16 %v2686
        %v2726 = vunpack.c.l.b16 %v2687
        %v2727 = vunpack.c.l.b16 %v2688
        %v2728 = vunpack.c.l.b16 %v2689
        %v2729 = vunpack.c.l.b16 %v2690
        %v2730 = vunpack.c.l.b16 %v2691
        %v2731 = vunpack.c.l.b16 %v2692
        %v2732 = vunpack.c.l.b16 %v2693
        %v2733 = vunpack.c.l.b16 %v2694
        %v2734 = vunpack.c.l.b16 %v2695
        %v2735 = vpack.c.b16 %v2720, %v2719
        %v2736 = vpack.c.b16 %v2722, %v2721
        %v2737 = vpack.c.b16 %v2724, %v2723
        %v2738 = vpack.c.b16 %v2726, %v2725
        %v2739 = vpack.c.b16 %v2728, %v2727
        %v2740 = vpack.c.b16 %v2730, %v2729
        %v2741 = vpack.c.b16 %v2732, %v2731
        %v2742 = vpack.c.b16 %v2734, %v2733
        %2751 = vmatprep.subr.bf16.mxu0 0
        %2752 = vmatpush1.bf16.msra.mxu0 %v2742
        %2753 = vmatprep.subr.bf16.mxu0 0
        %2754 = vmatpush1.bf16.msra.mxu0 %v2741
        %2755 = vmatprep.subr.bf16.mxu0 0
        %2756 = vmatpush1.bf16.msra.mxu0 %v2740
        %2757 = vmatprep.subr.bf16.mxu0 0
        %2758 = vmatpush1.bf16.msra.mxu0 %v2739
        %2759 = vmatprep.subr.bf16.mxu0 0
        %2760 = vmatpush1.bf16.msra.mxu0 %v2738
        %2761 = vmatprep.subr.bf16.mxu0 0
        %2762 = vmatpush1.bf16.msra.mxu0 %v2737
        %2763 = vmatprep.subr.bf16.mxu0 0
        %2764 = vmatpush1.bf16.msra.mxu0 %v2736
        %2765 = vmatprep.subr.bf16.mxu0 0
        %2766 = vmatpush1.bf16.msra.mxu0 %v2735
        %2767 = vmatprep.subr.bf16.mxu0 0
        %2768 = vmatpush2.bf16.msra.mxu0 0
        %2769 = vmatprep.subr.bf16.mxu0 0
        %2770 = vmatpush2.bf16.msra.mxu0 0
        %2771 = vmatprep.subr.bf16.mxu0 0
        %2772 = vmatpush2.bf16.msra.mxu0 0
        %2773 = vmatprep.subr.bf16.mxu0 0
        %2774 = vmatpush2.bf16.msra.mxu0 0
        %2775 = vmatprep.subr.bf16.mxu0 0
        %2776 = vmatpush2.bf16.msra.mxu0 0
        %2777 = vmatprep.subr.bf16.mxu0 0
        %2778 = vmatpush2.bf16.msra.mxu0 0
        %2779 = vmatprep.subr.bf16.mxu0 0
        %2780 = vmatpush2.bf16.msra.mxu0 0
        %2781 = vmatprep.subr.bf16.mxu0 0
        %2782 = vmatpush2.bf16.msra.mxu0 0
        %2783 = vmatprep.mubr.bf16.mxu0 0
        %2784 = vmatmul.mubr.bf16.gmra.mxu0 %v2679
        %v2785 = vpop.f32.mrf.mxu0
        %v2786 = vadd.f32 %v2701, %v2785
        %v2787 = vpop.f32.mrf.mxu0
        %v2788 = vpop.f32.mrf.mxu0
        %v2789 = vpop.f32.mrf.mxu0
        %2790 = vdwg.mxu0
        %v2791 = vadd.f32 %v2565, %v2786
        %v2792 = vld [vmem:[%s17] sm:$0x1]
        %v2793 = vld [vmem:[%s18] sm:$0x1]
        %2794 = vadd.xlane.f32.xlu0 %v2791
        %v2795 = vpop.xlane.xlu0 %2794
        %v2796 = vmul.f32 %v2795, 0.03125
        %v2797 = vsub.f32 %v2791, %v2796
        %v2798 = vmul.f32 %v2797, %v798
        %v2799 = vmul.f32 %v2798, %v2798
        %2800 = vadd.xlane.f32.xlu0 %v2799
        %v2801 = vpop.xlane.xlu0 %2800
        %v2802 = vmul.f32 %v2801, 0.03125
        %v2803 = vadd.f32 %v2802, 1e-05
        %v2804 = vrsqrt.pop %v2803
        %v2805 = vmul.f32 %v2798, %v2804
        %v2807 = vlaneseq
        %v2808 = vshrl.u32 %v2807, 7
        %v2809 = vsub.s32 0, %v2808
        %v2810 = vrot.slane %v2792, %v2809
        %v2812 = vmul.f32 %v2805, %v2810
        %v2814 = vlaneseq
        %v2815 = vshrl.u32 %v2814, 7
        %v2816 = vsub.s32 0, %v2815
        %v2817 = vrot.slane %v2793, %v2816
        %v2819 = vadd.f32 %v2812, %v2817
        %2820 = vst [vmem:[%s789] sm:$0xff] %v2819
        %s2821 = sand.u32 %s480, 1
        %s2822 = scalar_lea.sflag [#allocation4], %s2821
        %s2823 = sand.u32 %s480, 1
        %s2824 = smul.addr %s2823, 8
        %s2825 = scalar_lea.vmem [#allocation17], %s2824
        // Predicated region
        $region133: #{tpu_custom_call.1} parent=95 // pred_check
          %p2826 = pneg %p490
        $region134: #{tpu_custom_call.1} parent=95 // pred_check_branch
          %2828 = sbr.rel (%p2826) target = $region136
        $region135: #{tpu_custom_call.1} parent=95 // pred_region
          %s2830 = ssub.s32 128, 128
          %2831 = vsyncadd %s2822, %s2830
          %s2832 = sadd.s32 %s47, %s46
          %s2833 = smul.addr %s2832, 128
          %s2834 = scalar_lea.hbm %s19, %s2833
          %s2836 = sshll.u32 %s2825, 4
          %s2837 = int_to_ptr.vmem [resolvable:$true] %s2836
          %2839 = dma.vmem_to_hbm [thread:$0]  %s2837, 128, %s2834, %s2822
        $region136: #{tpu_custom_call.1} parent=95 // pred_fallthru
          _
      $region96: #{tpu_custom_call.1} parent=5 // pred_fallthru
        _
      %p2840 = scmp.le.s32.totalorder 2, %s37
      // Predicated region
      $region137: #{tpu_custom_call.1} parent=5 // pred_check
        %p2841 = pneg %p2840
      $region138: #{tpu_custom_call.1} parent=5 // pred_check_branch
        %2843 = sbr.rel (%p2841) target = $region140
      $region139: #{tpu_custom_call.1} parent=5 // pred_region
        %s2844 = ssub.s32 %s37, 2
        // Predicated region
        $region141: #{tpu_custom_call.1} parent=139 // pred_check
          %p2845 = pneg %p496
        $region142: #{tpu_custom_call.1} parent=139 // pred_check_branch
          %2847 = sbr.rel (%p2845) target = $region144
        $region143: #{tpu_custom_call.1} parent=139 // pred_region
          %s2848 = sand.u32 %s481, 1
          %s2849 = scalar_lea.sflag [#allocation4], %s2848
          %s2850 = sand.u32 %s481, 1
          %s2851 = smul.addr %s2850, 8
          %s2852 = scalar_lea.vmem [#allocation17], %s2851
          %2853 = dma.done %s2849, 128
        $region144: #{tpu_custom_call.1} parent=139 // pred_fallthru
          _
      $region140: #{tpu_custom_call.1} parent=5 // pred_fallthru
        _
    $region6: #{tpu_custom_call.1} parent=1 // loop_footer
      %s41 = sadd.s32 1, %s37
    $region7: #{tpu_custom_call.1} parent=1 // loop_footer_branch
      %36 = sbr.rel target = $region3
    $region8: #{tpu_custom_call.1} parent=1 // loop_exit
      _
    %2854 = vsyncpa [#allocation3], 1
    %s2855 = scalar_lea.sflag [#allocation3], 1
    %2856 = vsyncpa %s2855, 1
    %2857 = vsyncpa [#allocation6], 1
    %s2858 = scalar_lea.sflag [#allocation6], 1
    %2859 = vsyncpa %s2858, 1
    %2860 = vsyncpa [#allocation9], 1
    %2861 = vsyncpa [#allocation12], 1
    %2862 = vsyncpa [#allocation15], 1
    %2863 = vsyncpa [#allocation4], 1
    %s2864 = scalar_lea.sflag [#allocation4], 1
    %2865 = vsyncpa %s2864, 1

</llo_original>
